<compile_context>
chip_gen: v7x
topology: tpu7x:2x2x1
jax: 0.10.0
libtpu: 0.0.40
codegen_flags: <defaults>
</compile_context>

<pallas_src>
import functools

import jax
import jax.numpy as jnp
import numpy as np
from jax.experimental import pallas as pl
from jax.experimental.pallas import tpu as pltpu


# ---------------------------------------------------------------------------
# Fused Pallas kernel: bidirectional multi-layer LSTM + FC head
# ---------------------------------------------------------------------------
def _bilstm_fc_kernel(*refs, num_layers, hidden_size, seq_len, batch):
    """refs = (x_fwd, x_rev, [A, C, Wblk, bias] * L, w1T, b1, w2T, b2, w3T, b3,
               w4_row, b4, out_ref, yf_scratch, yr_scratch).

    x_fwd / x_rev: (T*B, D_in)  time-major flats, forward / reversed time order
    A, C:          (D_l, 8H)    input-proj weights, fwd / bwd gate column slots
    Wblk:          (2H, 8H)     block recurrent weights ([h_f | h_b] -> all gates)
    bias:          (1, 8H)      fused b_ih + b_hh in interleaved gate slots
    w1T..w3T:      pre-transposed FC weights; w4_row: (1, 64); b4: (1, 1)
    yf_scratch:    (T*B, 2H)    layer output, time order     (row block t = y[t])
    yr_scratch:    (T*B, 2H)    layer output, reversed time  (row block s = y[T-1-s])
    """
    H = hidden_size
    T = seq_len
    B = batch

    idx = 0
    xf_ref = refs[idx]; idx += 1
    xr_ref = refs[idx]; idx += 1
    lstm = []
    for _ in range(num_layers):
        lstm.append(tuple(refs[idx:idx + 4]))
        idx += 4
    (w1_ref, b1_ref, w2_ref, b2_ref,
     w3_ref, b3_ref, w4_ref, b4_ref) = refs[idx:idx + 8]
    idx += 8
    out_ref = refs[idx]; idx += 1
    yf_ref = refs[idx]; idx += 1
    yr_ref = refs[idx]; idx += 1

    for l in range(num_layers):
        a_ref, c_ref, wblk_ref, bias_ref = lstm[l]
        last = (l == num_layers - 1)

        # ---- Hoisted input projection for BOTH directions (off the serial chain).
        # Row block s of xp holds: fwd gates for time s (fwd slots) and bwd gates
        # for time T-1-s (bwd slots) -> one contiguous (B, 8H) slice per step.
        if l == 0:
            y_f = xf_ref[...]
            y_r = xr_ref[...]
        else:
            y_f = yf_ref[...]
            y_r = yr_ref[...]
        xp = (jnp.dot(y_f, a_ref[...], preferred_element_type=jnp.float32)
              + jnp.dot(y_r, c_ref[...], preferred_element_type=jnp.float32)
              + bias_ref[...])                                   # (T*B, 8H)

        wblk = wblk_ref[...]                                     # (2H, 8H)
        h_cat = jnp.zeros((B, 2 * H), jnp.float32)               # [h_fwd | h_bwd]
        c_cat = jnp.zeros((B, 2 * H), jnp.float32)

        for s in range(T):
            # fwd processes time t = s, bwd processes time t = T-1-s, in one step.
            gates = (jnp.dot(h_cat, wblk, preferred_element_type=jnp.float32)
                     + xp[s * B:(s + 1) * B, :])                 # (B, 8H)
            # Interleaved gate columns: [i_f i_b | f_f f_b | g_f g_b | o_f o_b].
            sig_if = jax.nn.sigmoid(gates[:, 0:4 * H])           # i,f for both dirs
            go = gates[:, 4 * H:8 * H]                           # g,o for both dirs
            th_g = jnp.tanh(go)
            sig_o = jax.nn.sigmoid(go)
            i_cat = sig_if[:, 0:2 * H]
            f_cat = sig_if[:, 2 * H:4 * H]
            g_cat = th_g[:, 0:2 * H]
            o_cat = sig_o[:, 2 * H:4 * H]
            c_cat = f_cat * c_cat + i_cat * g_cat
            h_cat = o_cat * jnp.tanh(c_cat)

            # Stage outputs in VMEM scratch in the layouts the next consumers need
            # (no lane-axis concatenates anywhere; stores are off the h/c chain).
            tf0, tf1 = s * B, (s + 1) * B                # rows for time s
            tb0, tb1 = (T - 1 - s) * B, (T - s) * B      # rows for time T-1-s
            yf_ref[tf0:tf1, 0:H] = h_cat[:, 0:H]             # fwd output @ time s
            yf_ref[tb0:tb1, H:2 * H] = h_cat[:, H:2 * H]     # bwd output @ time T-1-s
            if not last:
                yr_ref[tb0:tb1, 0:H] = h_cat[:, 0:H]
                yr_ref[tf0:tf1, H:2 * H] = h_cat[:, H:2 * H]

    # ---- FC head.  fc1 consumed as T accumulating matmuls so the (B, T*2H)
    # feature vector is never materialized / concatenated.
    yf = yf_ref[...]                                             # (T*B, 2H)
    acc = b1_ref[...]                                            # (1, 256)
    for t in range(T):
        acc = acc + jnp.dot(yf[t * B:(t + 1) * B, :],
                            w1_ref[t * 2 * H:(t + 1) * 2 * H, :],
                            preferred_element_type=jnp.float32)
    h1 = jax.nn.relu(acc)                                        # (B, 256)
    h2 = jax.nn.relu(jnp.dot(h1, w2_ref[...],
                             preferred_element_type=jnp.float32) + b2_ref[...])
    h3 = jax.nn.relu(jnp.dot(h2, w3_ref[...],
                             preferred_element_type=jnp.float32) + b3_ref[...])
    # fc4 (64 -> 1): VPU multiply + lane reduction instead of an N=1 MXU matmul.
    out = jnp.sum(h3 * w4_ref[...], axis=-1, keepdims=True) + b4_ref[...]
    out_ref[...] = out.astype(out_ref.dtype)


# ---------------------------------------------------------------------------
# Wrapper: one pallas_call, everything VMEM-resident
# ---------------------------------------------------------------------------
def bilstm_forward(params, x, *, hidden_size, num_layers):
    """x: (B, T, input_size) batch-first. Returns (B, 1), matching the module."""
    B, T, D = x.shape
    H = hidden_size

    x_tm = jnp.transpose(x, (1, 0, 2))          # (T, B, D)
    x_fwd = x_tm.reshape(T * B, D)              # flat, forward time order
    x_rev = x_tm[::-1].reshape(T * B, D)        # flat, reversed time order

    lstm_args = []
    for l in range(num_layers):
        lstm_args += list(params["lstm"][l])    # (A, C, Wblk, bias)
    fc_args = list(params["fc"])
    inputs = [x_fwd, x_rev, *lstm_args, *fc_args]

    kernel = functools.partial(_bilstm_fc_kernel, num_layers=num_layers,
                               hidden_size=H, seq_len=T, batch=B)
    vmem = pl.BlockSpec(memory_space=pltpu.MemorySpace.VMEM)

    # Advisory cost estimate for XLA's scheduler around this custom call.
    flops = 0
    for l in range(num_layers):
        d_in = D if l == 0 else 2 * H
        flops += 2 * (2 * (T * B) * d_in * 8 * H)      # hoisted input projections
        flops += T * (2 * B * (2 * H) * 8 * H)         # per-step recurrent matmul
    flops += 2 * B * (T * 2 * H) * 256 + 2 * B * 256 * 128 + 2 * B * 128 * 64 + 2 * B * 64
    transcendentals = num_layers * T * (B * 14 * H)
    bytes_accessed = sum(int(a.size) * a.dtype.itemsize for a in inputs) + B * 4

    return pl.pallas_call(
        kernel,
        out_shape=jax.ShapeDtypeStruct((B, 1), jnp.float32),
        in_specs=[vmem] * len(inputs),
        out_specs=vmem,
        scratch_shapes=[pltpu.VMEM((T * B, 2 * H), jnp.float32),
                        pltpu.VMEM((T * B, 2 * H), jnp.float32)],
        cost_estimate=pl.CostEstimate(flops=int(flops),
                                      transcendentals=int(transcendentals),
                                      bytes_accessed=int(bytes_accessed)),
    )(*inputs)


# ---------------------------------------------------------------------------
# Pure-JAX reference (PyTorch math, raw weights, true f32) for correctness
# ---------------------------------------------------------------------------
def _reference_forward(params, x, *, hidden_size, num_layers):
    B, T, _ = x.shape
    H = hidden_size
    hp = jax.lax.Precision.HIGHEST

    def run_dir(seq, w_ih, w_hh, b_ih, b_hh, reverse):
        h = jnp.zeros((B, H), jnp.float32)
        c = jnp.zeros((B, H), jnp.float32)
        outs = [None] * T
        order = range(T - 1, -1, -1) if reverse else range(T)
        for t in order:
            g = (jnp.dot(seq[t], w_ih.T, precision=hp)
                 + jnp.dot(h, w_hh.T, precision=hp) + b_ih + b_hh)
            i = jax.nn.sigmoid(g[:, 0:H])
            f = jax.nn.sigmoid(g[:, H:2 * H])
            gg = jnp.tanh(g[:, 2 * H:3 * H])
            o = jax.nn.sigmoid(g[:, 3 * H:4 * H])
            c = f * c + i * gg
            h = o * jnp.tanh(c)
            outs[t] = h
        return outs

    seq = [x[:, t, :] for t in range(T)]
    for l in range(num_layers):
        (wif, whf, bif, bhf), (wib, whb, bib, bhb) = params["raw_lstm"][l]
        fwd = run_dir(seq, wif, whf, bif, bhf, False)
        bwd = run_dir(seq, wib, whb, bib, bhb, True)
        seq = [jnp.concatenate([fwd[t], bwd[t]], axis=-1) for t in range(T)]
    feat = jnp.concatenate(seq, axis=-1)
    w1, b1, w2, b2, w3, b3, w4, b4 = params["raw_fc"]
    h1 = jax.nn.relu(jnp.dot(feat, w1.T, precision=hp) + b1)
    h2 = jax.nn.relu(jnp.dot(h1, w2.T, precision=hp) + b2)
    h3 = jax.nn.relu(jnp.dot(h2, w3.T, precision=hp) + b3)
    return jnp.dot(h3, w4.T, precision=hp) + b4


# ---------------------------------------------------------------------------
# Parameter init (PyTorch-style uniform) + packing into the kernel layout
# ---------------------------------------------------------------------------
def init_params(key, input_size, hidden_size, seq_len, num_layers):
    H = hidden_size
    k = 1.0 / float(np.sqrt(H))
    raw_lstm, packed_lstm = [], []

    for l in range(num_layers):
        d_in = input_size if l == 0 else 2 * H
        dirs = []
        for _ in range(2):  # forward, backward
            key, k1, k2, k3, k4 = jax.random.split(key, 5)
            w_ih = jax.random.uniform(k1, (4 * H, d_in), jnp.float32, -k, k)
            w_hh = jax.random.uniform(k2, (4 * H, H), jnp.float32, -k, k)
            b_ih = jax.random.uniform(k3, (4 * H,), jnp.float32, -k, k)
            b_hh = jax.random.uniform(k4, (4 * H,), jnp.float32, -k, k)
            dirs.append((w_ih, w_hh, b_ih, b_hh))
        raw_lstm.append(tuple(dirs))

        # Pack into interleaved gate columns [i_f i_b | f_f f_b | g_f g_b | o_f o_b]
        # so all the layout gymnastics happen once here, not per step in the kernel.
        (wif, whf, bif, bhf), (wib, whb, bib, bhb) = dirs
        wif_n, whf_n = np.asarray(wif), np.asarray(whf)
        wib_n, whb_n = np.asarray(wib), np.asarray(whb)
        bf_n = np.asarray(bif) + np.asarray(bhf)
        bb_n = np.asarray(bib) + np.asarray(bhb)
        A = np.zeros((d_in, 8 * H), np.float32)      # fwd input-proj slots
        C = np.zeros((d_in, 8 * H), np.float32)      # bwd input-proj slots
        Wblk = np.zeros((2 * H, 8 * H), np.float32)  # block recurrent weights
        bias = np.zeros((8 * H,), np.float32)
        for g in range(4):                           # PyTorch gate order [i, f, g, o]
            src = slice(g * H, (g + 1) * H)
            fsl = slice((2 * g) * H, (2 * g + 1) * H)
            bsl = slice((2 * g + 1) * H, (2 * g + 2) * H)
            A[:, fsl] = wif_n[src, :].T
            C[:, bsl] = wib_n[src, :].T
            Wblk[0:H, fsl] = whf_n[src, :].T
            Wblk[H:2 * H, bsl] = whb_n[src, :].T
            bias[fsl] = bf_n[src]
            bias[bsl] = bb_n[src]
        packed_lstm.append((jnp.asarray(A), jnp.asarray(C),
                            jnp.asarray(Wblk), jnp.asarray(bias)[None, :]))

    def linear(key, fan_in, fan_out):
        kk = 1.0 / float(np.sqrt(fan_in))
        key, kw, kb = jax.random.split(key, 3)
        w = jax.random.uniform(kw, (fan_out, fan_in), jnp.float32, -kk, kk)
        b = jax.random.uniform(kb, (fan_out,), jnp.float32, -kk, kk)
        return key, w, b

    key, w1, b1 = linear(key, 2 * H * seq_len, 256)
    key, w2, b2 = linear(key, 256, 128)
    key, w3, b3 = linear(key, 128, 64)
    key, w4, b4 = linear(key, 64, 1)
    raw_fc = (w1, b1, w2, b2, w3, b3, w4, b4)
    packed_fc = (w1.T, b1[None, :],
                 w2.T, b2[None, :],
                 w3.T, b3[None, :],
                 w4, b4[None, :])   # w4 kept as (1, 64) row for the VPU reduce

    return {"lstm": packed_lstm, "fc": packed_fc,
            "raw_lstm": raw_lstm, "raw_fc": raw_fc}


if __name__ == "__main__":
    input_size = 8
    hidden_size = 32
    sequence_length = 8
    num_layers = 2
    batch = 2

    key = jax.random.PRNGKey(0)
    key, kx, kp = jax.random.split(key, 3)

    x = jax.random.normal(kx, (batch, sequence_length, input_size), jnp.float32)
    params = init_params(kp, input_size, hidden_size, sequence_length, num_layers)

    fwd = jax.jit(functools.partial(bilstm_forward, hidden_size=hidden_size,
                                    num_layers=num_layers))
    out = fwd(params, x)
    out = jax.block_until_ready(out)

    ref = _reference_forward(params, x, hidden_size=hidden_size,
                             num_layers=num_layers)
    ref = jax.block_until_ready(ref)

    assert out.shape == (batch, 1), out.shape
    np.testing.assert_allclose(np.asarray(out), np.asarray(ref),
                               rtol=2e-4, atol=2e-4)
    print("KERNEL_OK")
</pallas_src>

<mosaic_0001>
module attributes {stable_mosaic.version = 11 : i64} {
  func.func @_bilstm_fc_kernel(%arg0: memref<16x8xf32, #tpu.memory_space<vmem>>, %arg1: memref<16x8xf32, #tpu.memory_space<vmem>>, %arg2: memref<8x256xf32, #tpu.memory_space<vmem>>, %arg3: memref<8x256xf32, #tpu.memory_space<vmem>>, %arg4: memref<64x256xf32, #tpu.memory_space<vmem>>, %arg5: memref<1x256xf32, #tpu.memory_space<vmem>>, %arg6: memref<64x256xf32, #tpu.memory_space<vmem>>, %arg7: memref<64x256xf32, #tpu.memory_space<vmem>>, %arg8: memref<64x256xf32, #tpu.memory_space<vmem>>, %arg9: memref<1x256xf32, #tpu.memory_space<vmem>>, %arg10: memref<512x256xf32, #tpu.memory_space<vmem>>, %arg11: memref<1x256xf32, #tpu.memory_space<vmem>>, %arg12: memref<256x128xf32, #tpu.memory_space<vmem>>, %arg13: memref<1x128xf32, #tpu.memory_space<vmem>>, %arg14: memref<128x64xf32, #tpu.memory_space<vmem>>, %arg15: memref<1x64xf32, #tpu.memory_space<vmem>>, %arg16: memref<1x64xf32, #tpu.memory_space<vmem>>, %arg17: memref<1x1xf32, #tpu.memory_space<vmem>>, %arg18: memref<2x1xf32, #tpu.memory_space<vmem>>, %arg19: memref<16x64xf32, #tpu.memory_space<vmem>>, %arg20: memref<16x64xf32, #tpu.memory_space<vmem>>) attributes {dimension_semantics = [], scalar_prefetch = 0 : i64, scratch_operands = 2 : i64, tpu.core_type = #tpu.core_type<tc>} {
    %c0 = arith.constant 0 : index
    %c0_0 = arith.constant 0 : index
    %0 = vector.load %arg0[%c0, %c0_0] : memref<16x8xf32, #tpu.memory_space<vmem>>, vector<16x8xf32>
    %c0_1 = arith.constant 0 : index
    %c0_2 = arith.constant 0 : index
    %1 = vector.load %arg1[%c0_1, %c0_2] : memref<16x8xf32, #tpu.memory_space<vmem>>, vector<16x8xf32>
    %c0_3 = arith.constant 0 : index
    %c0_4 = arith.constant 0 : index
    %2 = vector.load %arg2[%c0_3, %c0_4] : memref<8x256xf32, #tpu.memory_space<vmem>>, vector<8x256xf32>
    %cst = arith.constant dense<0.000000e+00> : vector<16x256xf32>
    %3 = tpu.matmul %0, %2, %cst {dimension_numbers = #tpu.dot_dimension_numbers<[1], [0], [0], [1], [0, 0, 1, 1], [], []>} : vector<16x8xf32>, vector<8x256xf32>, vector<16x256xf32> -> vector<16x256xf32>
    %c0_5 = arith.constant 0 : index
    %c0_6 = arith.constant 0 : index
    %4 = vector.load %arg3[%c0_5, %c0_6] : memref<8x256xf32, #tpu.memory_space<vmem>>, vector<8x256xf32>
    %cst_7 = arith.constant dense<0.000000e+00> : vector<16x256xf32>
    %5 = tpu.matmul %1, %4, %cst_7 {dimension_numbers = #tpu.dot_dimension_numbers<[1], [0], [0], [1], [0, 0, 1, 1], [], []>} : vector<16x8xf32>, vector<8x256xf32>, vector<16x256xf32> -> vector<16x256xf32>
    %6 = arith.addf %3, %5 : vector<16x256xf32>
    %c0_8 = arith.constant 0 : index
    %c0_9 = arith.constant 0 : index
    %7 = vector.load %arg5[%c0_8, %c0_9] : memref<1x256xf32, #tpu.memory_space<vmem>>, vector<1x256xf32>
    %8 = vector.broadcast %7 : vector<1x256xf32> to vector<16x256xf32>
    %9 = arith.addf %6, %8 : vector<16x256xf32>
    %c0_10 = arith.constant 0 : index
    %c0_11 = arith.constant 0 : index
    %10 = vector.load %arg4[%c0_10, %c0_11] : memref<64x256xf32, #tpu.memory_space<vmem>>, vector<64x256xf32>
    %cst_12 = arith.constant 0.000000e+00 : f32
    %11 = vector.broadcast %cst_12 : f32 to vector<2x64xf32>
    %cst_13 = arith.constant 0.000000e+00 : f32
    %12 = vector.broadcast %cst_13 : f32 to vector<2x64xf32>
    %cst_14 = arith.constant dense<0.000000e+00> : vector<2x256xf32>
    %13 = tpu.matmul %11, %10, %cst_14 {dimension_numbers = #tpu.dot_dimension_numbers<[1], [0], [0], [1], [0, 0, 1, 1], [], []>} : vector<2x64xf32>, vector<64x256xf32>, vector<2x256xf32> -> vector<2x256xf32>
    %14 = vector.extract_strided_slice %9 {offsets = [0, 0], sizes = [2, 256], strides = [1, 1]} : vector<16x256xf32> to vector<2x256xf32>
    %15 = arith.addf %13, %14 : vector<2x256xf32>
    %16 = vector.extract_strided_slice %15 {offsets = [0, 0], sizes = [2, 128], strides = [1, 1]} : vector<2x256xf32> to vector<2x128xf32>
    %17 = arith.negf %16 : vector<2x128xf32>
    %18 = math.exp %17 : vector<2x128xf32>
    %cst_15 = arith.constant 1.000000e+00 : f32
    %19 = vector.broadcast %cst_15 : f32 to vector<2x128xf32>
    %20 = arith.addf %19, %18 : vector<2x128xf32>
    %21 = arith.divf %19, %20 : vector<2x128xf32>
    %22 = vector.extract_strided_slice %15 {offsets = [0, 128], sizes = [2, 128], strides = [1, 1]} : vector<2x256xf32> to vector<2x128xf32>
    %23 = math.tanh %22 : vector<2x128xf32>
    %24 = arith.negf %22 : vector<2x128xf32>
    %25 = math.exp %24 : vector<2x128xf32>
    %cst_16 = arith.constant 1.000000e+00 : f32
    %26 = vector.broadcast %cst_16 : f32 to vector<2x128xf32>
    %27 = arith.addf %26, %25 : vector<2x128xf32>
    %28 = arith.divf %26, %27 : vector<2x128xf32>
    %29 = vector.extract_strided_slice %21 {offsets = [0, 0], sizes = [2, 64], strides = [1, 1]} : vector<2x128xf32> to vector<2x64xf32>
    %30 = vector.extract_strided_slice %21 {offsets = [0, 64], sizes = [2, 64], strides = [1, 1]} : vector<2x128xf32> to vector<2x64xf32>
    %31 = vector.extract_strided_slice %23 {offsets = [0, 0], sizes = [2, 64], strides = [1, 1]} : vector<2x128xf32> to vector<2x64xf32>
    %32 = vector.extract_strided_slice %28 {offsets = [0, 64], sizes = [2, 64], strides = [1, 1]} : vector<2x128xf32> to vector<2x64xf32>
    %33 = arith.mulf %30, %12 : vector<2x64xf32>
    %34 = arith.mulf %29, %31 : vector<2x64xf32>
    %35 = arith.addf %33, %34 : vector<2x64xf32>
    %36 = math.tanh %35 : vector<2x64xf32>
    %37 = arith.mulf %32, %36 : vector<2x64xf32>
    %38 = vector.extract_strided_slice %37 {offsets = [0, 0], sizes = [2, 32], strides = [1, 1]} : vector<2x64xf32> to vector<2x32xf32>
    %c0_17 = arith.constant 0 : index
    %c0_18 = arith.constant 0 : index
    %39 = vector.load %arg19[%c0_17, %c0_18] : memref<16x64xf32, #tpu.memory_space<vmem>>, vector<2x32xf32>
    tpu.vector_store %arg19[%c0_17, %c0_18], %38 {strides = array<i32>} : memref<16x64xf32, #tpu.memory_space<vmem>>, vector<2x32xf32>,
    %40 = vector.extract_strided_slice %37 {offsets = [0, 32], sizes = [2, 32], strides = [1, 1]} : vector<2x64xf32> to vector<2x32xf32>
    %c14 = arith.constant 14 : index
    %c32 = arith.constant 32 : index
    %41 = vector.load %arg19[%c14, %c32] : memref<16x64xf32, #tpu.memory_space<vmem>>, vector<2x32xf32>
    tpu.vector_store %arg19[%c14, %c32], %40 {strides = array<i32>} : memref<16x64xf32, #tpu.memory_space<vmem>>, vector<2x32xf32>,
    %42 = vector.extract_strided_slice %37 {offsets = [0, 0], sizes = [2, 32], strides = [1, 1]} : vector<2x64xf32> to vector<2x32xf32>
    %c14_19 = arith.constant 14 : index
    %c0_20 = arith.constant 0 : index
    %43 = vector.load %arg20[%c14_19, %c0_20] : memref<16x64xf32, #tpu.memory_space<vmem>>, vector<2x32xf32>
    tpu.vector_store %arg20[%c14_19, %c0_20], %42 {strides = array<i32>} : memref<16x64xf32, #tpu.memory_space<vmem>>, vector<2x32xf32>,
    %44 = vector.extract_strided_slice %37 {offsets = [0, 32], sizes = [2, 32], strides = [1, 1]} : vector<2x64xf32> to vector<2x32xf32>
    %c0_21 = arith.constant 0 : index
    %c32_22 = arith.constant 32 : index
    %45 = vector.load %arg20[%c0_21, %c32_22] : memref<16x64xf32, #tpu.memory_space<vmem>>, vector<2x32xf32>
    tpu.vector_store %arg20[%c0_21, %c32_22], %44 {strides = array<i32>} : memref<16x64xf32, #tpu.memory_space<vmem>>, vector<2x32xf32>,
    %cst_23 = arith.constant dense<0.000000e+00> : vector<2x256xf32>
    %46 = tpu.matmul %37, %10, %cst_23 {dimension_numbers = #tpu.dot_dimension_numbers<[1], [0], [0], [1], [0, 0, 1, 1], [], []>} : vector<2x64xf32>, vector<64x256xf32>, vector<2x256xf32> -> vector<2x256xf32>
    %47 = vector.extract_strided_slice %9 {offsets = [2, 0], sizes = [2, 256], strides = [1, 1]} : vector<16x256xf32> to vector<2x256xf32>
    %48 = arith.addf %46, %47 : vector<2x256xf32>
    %49 = vector.extract_strided_slice %48 {offsets = [0, 0], sizes = [2, 128], strides = [1, 1]} : vector<2x256xf32> to vector<2x128xf32>
    %50 = arith.negf %49 : vector<2x128xf32>
    %51 = math.exp %50 : vector<2x128xf32>
    %cst_24 = arith.constant 1.000000e+00 : f32
    %52 = vector.broadcast %cst_24 : f32 to vector<2x128xf32>
    %53 = arith.addf %52, %51 : vector<2x128xf32>
    %54 = arith.divf %52, %53 : vector<2x128xf32>
    %55 = vector.extract_strided_slice %48 {offsets = [0, 128], sizes = [2, 128], strides = [1, 1]} : vector<2x256xf32> to vector<2x128xf32>
    %56 = math.tanh %55 : vector<2x128xf32>
    %57 = arith.negf %55 : vector<2x128xf32>
    %58 = math.exp %57 : vector<2x128xf32>
    %cst_25 = arith.constant 1.000000e+00 : f32
    %59 = vector.broadcast %cst_25 : f32 to vector<2x128xf32>
    %60 = arith.addf %59, %58 : vector<2x128xf32>
    %61 = arith.divf %59, %60 : vector<2x128xf32>
    %62 = vector.extract_strided_slice %54 {offsets = [0, 0], sizes = [2, 64], strides = [1, 1]} : vector<2x128xf32> to vector<2x64xf32>
    %63 = vector.extract_strided_slice %54 {offsets = [0, 64], sizes = [2, 64], strides = [1, 1]} : vector<2x128xf32> to vector<2x64xf32>
    %64 = vector.extract_strided_slice %56 {offsets = [0, 0], sizes = [2, 64], strides = [1, 1]} : vector<2x128xf32> to vector<2x64xf32>
    %65 = vector.extract_strided_slice %61 {offsets = [0, 64], sizes = [2, 64], strides = [1, 1]} : vector<2x128xf32> to vector<2x64xf32>
    %66 = arith.mulf %63, %35 : vector<2x64xf32>
    %67 = arith.mulf %62, %64 : vector<2x64xf32>
    %68 = arith.addf %66, %67 : vector<2x64xf32>
    %69 = math.tanh %68 : vector<2x64xf32>
    %70 = arith.mulf %65, %69 : vector<2x64xf32>
    %71 = vector.extract_strided_slice %70 {offsets = [0, 0], sizes = [2, 32], strides = [1, 1]} : vector<2x64xf32> to vector<2x32xf32>
    %c2 = arith.constant 2 : index
    %c0_26 = arith.constant 0 : index
    %72 = vector.load %arg19[%c2, %c0_26] : memref<16x64xf32, #tpu.memory_space<vmem>>, vector<2x32xf32>
    tpu.vector_store %arg19[%c2, %c0_26], %71 {strides = array<i32>} : memref<16x64xf32, #tpu.memory_space<vmem>>, vector<2x32xf32>,
    %73 = vector.extract_strided_slice %70 {offsets = [0, 32], sizes = [2, 32], strides = [1, 1]} : vector<2x64xf32> to vector<2x32xf32>
    %c12 = arith.constant 12 : index
    %c32_27 = arith.constant 32 : index
    %74 = vector.load %arg19[%c12, %c32_27] : memref<16x64xf32, #tpu.memory_space<vmem>>, vector<2x32xf32>
    tpu.vector_store %arg19[%c12, %c32_27], %73 {strides = array<i32>} : memref<16x64xf32, #tpu.memory_space<vmem>>, vector<2x32xf32>,
    %75 = vector.extract_strided_slice %70 {offsets = [0, 0], sizes = [2, 32], strides = [1, 1]} : vector<2x64xf32> to vector<2x32xf32>
    %c12_28 = arith.constant 12 : index
    %c0_29 = arith.constant 0 : index
    %76 = vector.load %arg20[%c12_28, %c0_29] : memref<16x64xf32, #tpu.memory_space<vmem>>, vector<2x32xf32>
    tpu.vector_store %arg20[%c12_28, %c0_29], %75 {strides = array<i32>} : memref<16x64xf32, #tpu.memory_space<vmem>>, vector<2x32xf32>,
    %77 = vector.extract_strided_slice %70 {offsets = [0, 32], sizes = [2, 32], strides = [1, 1]} : vector<2x64xf32> to vector<2x32xf32>
    %c2_30 = arith.constant 2 : index
    %c32_31 = arith.constant 32 : index
    %78 = vector.load %arg20[%c2_30, %c32_31] : memref<16x64xf32, #tpu.memory_space<vmem>>, vector<2x32xf32>
    tpu.vector_store %arg20[%c2_30, %c32_31], %77 {strides = array<i32>} : memref<16x64xf32, #tpu.memory_space<vmem>>, vector<2x32xf32>,
    %cst_32 = arith.constant dense<0.000000e+00> : vector<2x256xf32>
    %79 = tpu.matmul %70, %10, %cst_32 {dimension_numbers = #tpu.dot_dimension_numbers<[1], [0], [0], [1], [0, 0, 1, 1], [], []>} : vector<2x64xf32>, vector<64x256xf32>, vector<2x256xf32> -> vector<2x256xf32>
    %80 = vector.extract_strided_slice %9 {offsets = [4, 0], sizes = [2, 256], strides = [1, 1]} : vector<16x256xf32> to vector<2x256xf32>
    %81 = arith.addf %79, %80 : vector<2x256xf32>
    %82 = vector.extract_strided_slice %81 {offsets = [0, 0], sizes = [2, 128], strides = [1, 1]} : vector<2x256xf32> to vector<2x128xf32>
    %83 = arith.negf %82 : vector<2x128xf32>
    %84 = math.exp %83 : vector<2x128xf32>
    %cst_33 = arith.constant 1.000000e+00 : f32
    %85 = vector.broadcast %cst_33 : f32 to vector<2x128xf32>
    %86 = arith.addf %85, %84 : vector<2x128xf32>
    %87 = arith.divf %85, %86 : vector<2x128xf32>
    %88 = vector.extract_strided_slice %81 {offsets = [0, 128], sizes = [2, 128], strides = [1, 1]} : vector<2x256xf32> to vector<2x128xf32>
    %89 = math.tanh %88 : vector<2x128xf32>
    %90 = arith.negf %88 : vector<2x128xf32>
    %91 = math.exp %90 : vector<2x128xf32>
    %cst_34 = arith.constant 1.000000e+00 : f32
    %92 = vector.broadcast %cst_34 : f32 to vector<2x128xf32>
    %93 = arith.addf %92, %91 : vector<2x128xf32>
    %94 = arith.divf %92, %93 : vector<2x128xf32>
    %95 = vector.extract_strided_slice %87 {offsets = [0, 0], sizes = [2, 64], strides = [1, 1]} : vector<2x128xf32> to vector<2x64xf32>
    %96 = vector.extract_strided_slice %87 {offsets = [0, 64], sizes = [2, 64], strides = [1, 1]} : vector<2x128xf32> to vector<2x64xf32>
    %97 = vector.extract_strided_slice %89 {offsets = [0, 0], sizes = [2, 64], strides = [1, 1]} : vector<2x128xf32> to vector<2x64xf32>
    %98 = vector.extract_strided_slice %94 {offsets = [0, 64], sizes = [2, 64], strides = [1, 1]} : vector<2x128xf32> to vector<2x64xf32>
    %99 = arith.mulf %96, %68 : vector<2x64xf32>
    %100 = arith.mulf %95, %97 : vector<2x64xf32>
    %101 = arith.addf %99, %100 : vector<2x64xf32>
    %102 = math.tanh %101 : vector<2x64xf32>
    %103 = arith.mulf %98, %102 : vector<2x64xf32>
    %104 = vector.extract_strided_slice %103 {offsets = [0, 0], sizes = [2, 32], strides = [1, 1]} : vector<2x64xf32> to vector<2x32xf32>
    %c4 = arith.constant 4 : index
    %c0_35 = arith.constant 0 : index
    %105 = vector.load %arg19[%c4, %c0_35] : memref<16x64xf32, #tpu.memory_space<vmem>>, vector<2x32xf32>
    tpu.vector_store %arg19[%c4, %c0_35], %104 {strides = array<i32>} : memref<16x64xf32, #tpu.memory_space<vmem>>, vector<2x32xf32>,
    %106 = vector.extract_strided_slice %103 {offsets = [0, 32], sizes = [2, 32], strides = [1, 1]} : vector<2x64xf32> to vector<2x32xf32>
    %c10 = arith.constant 10 : index
    %c32_36 = arith.constant 32 : index
    %107 = vector.load %arg19[%c10, %c32_36] : memref<16x64xf32, #tpu.memory_space<vmem>>, vector<2x32xf32>
    tpu.vector_store %arg19[%c10, %c32_36], %106 {strides = array<i32>} : memref<16x64xf32, #tpu.memory_space<vmem>>, vector<2x32xf32>,
    %108 = vector.extract_strided_slice %103 {offsets = [0, 0], sizes = [2, 32], strides = [1, 1]} : vector<2x64xf32> to vector<2x32xf32>
    %c10_37 = arith.constant 10 : index
    %c0_38 = arith.constant 0 : index
    %109 = vector.load %arg20[%c10_37, %c0_38] : memref<16x64xf32, #tpu.memory_space<vmem>>, vector<2x32xf32>
    tpu.vector_store %arg20[%c10_37, %c0_38], %108 {strides = array<i32>} : memref<16x64xf32, #tpu.memory_space<vmem>>, vector<2x32xf32>,
    %110 = vector.extract_strided_slice %103 {offsets = [0, 32], sizes = [2, 32], strides = [1, 1]} : vector<2x64xf32> to vector<2x32xf32>
    %c4_39 = arith.constant 4 : index
    %c32_40 = arith.constant 32 : index
    %111 = vector.load %arg20[%c4_39, %c32_40] : memref<16x64xf32, #tpu.memory_space<vmem>>, vector<2x32xf32>
    tpu.vector_store %arg20[%c4_39, %c32_40], %110 {strides = array<i32>} : memref<16x64xf32, #tpu.memory_space<vmem>>, vector<2x32xf32>,
    %cst_41 = arith.constant dense<0.000000e+00> : vector<2x256xf32>
    %112 = tpu.matmul %103, %10, %cst_41 {dimension_numbers = #tpu.dot_dimension_numbers<[1], [0], [0], [1], [0, 0, 1, 1], [], []>} : vector<2x64xf32>, vector<64x256xf32>, vector<2x256xf32> -> vector<2x256xf32>
    %113 = vector.extract_strided_slice %9 {offsets = [6, 0], sizes = [2, 256], strides = [1, 1]} : vector<16x256xf32> to vector<2x256xf32>
    %114 = arith.addf %112, %113 : vector<2x256xf32>
    %115 = vector.extract_strided_slice %114 {offsets = [0, 0], sizes = [2, 128], strides = [1, 1]} : vector<2x256xf32> to vector<2x128xf32>
    %116 = arith.negf %115 : vector<2x128xf32>
    %117 = math.exp %116 : vector<2x128xf32>
    %cst_42 = arith.constant 1.000000e+00 : f32
    %118 = vector.broadcast %cst_42 : f32 to vector<2x128xf32>
    %119 = arith.addf %118, %117 : vector<2x128xf32>
    %120 = arith.divf %118, %119 : vector<2x128xf32>
    %121 = vector.extract_strided_slice %114 {offsets = [0, 128], sizes = [2, 128], strides = [1, 1]} : vector<2x256xf32> to vector<2x128xf32>
    %122 = math.tanh %121 : vector<2x128xf32>
    %123 = arith.negf %121 : vector<2x128xf32>
    %124 = math.exp %123 : vector<2x128xf32>
    %cst_43 = arith.constant 1.000000e+00 : f32
    %125 = vector.broadcast %cst_43 : f32 to vector<2x128xf32>
    %126 = arith.addf %125, %124 : vector<2x128xf32>
    %127 = arith.divf %125, %126 : vector<2x128xf32>
    %128 = vector.extract_strided_slice %120 {offsets = [0, 0], sizes = [2, 64], strides = [1, 1]} : vector<2x128xf32> to vector<2x64xf32>
    %129 = vector.extract_strided_slice %120 {offsets = [0, 64], sizes = [2, 64], strides = [1, 1]} : vector<2x128xf32> to vector<2x64xf32>
    %130 = vector.extract_strided_slice %122 {offsets = [0, 0], sizes = [2, 64], strides = [1, 1]} : vector<2x128xf32> to vector<2x64xf32>
    %131 = vector.extract_strided_slice %127 {offsets = [0, 64], sizes = [2, 64], strides = [1, 1]} : vector<2x128xf32> to vector<2x64xf32>
    %132 = arith.mulf %129, %101 : vector<2x64xf32>
    %133 = arith.mulf %128, %130 : vector<2x64xf32>
    %134 = arith.addf %132, %133 : vector<2x64xf32>
    %135 = math.tanh %134 : vector<2x64xf32>
    %136 = arith.mulf %131, %135 : vector<2x64xf32>
    %137 = vector.extract_strided_slice %136 {offsets = [0, 0], sizes = [2, 32], strides = [1, 1]} : vector<2x64xf32> to vector<2x32xf32>
    %c6 = arith.constant 6 : index
    %c0_44 = arith.constant 0 : index
    %138 = vector.load %arg19[%c6, %c0_44] : memref<16x64xf32, #tpu.memory_space<vmem>>, vector<2x32xf32>
    tpu.vector_store %arg19[%c6, %c0_44], %137 {strides = array<i32>} : memref<16x64xf32, #tpu.memory_space<vmem>>, vector<2x32xf32>,
    %139 = vector.extract_strided_slice %136 {offsets = [0, 32], sizes = [2, 32], strides = [1, 1]} : vector<2x64xf32> to vector<2x32xf32>
    %c8 = arith.constant 8 : index
    %c32_45 = arith.constant 32 : index
    %140 = vector.load %arg19[%c8, %c32_45] : memref<16x64xf32, #tpu.memory_space<vmem>>, vector<2x32xf32>
    tpu.vector_store %arg19[%c8, %c32_45], %139 {strides = array<i32>} : memref<16x64xf32, #tpu.memory_space<vmem>>, vector<2x32xf32>,
    %141 = vector.extract_strided_slice %136 {offsets = [0, 0], sizes = [2, 32], strides = [1, 1]} : vector<2x64xf32> to vector<2x32xf32>
    %c8_46 = arith.constant 8 : index
    %c0_47 = arith.constant 0 : index
    %142 = vector.load %arg20[%c8_46, %c0_47] : memref<16x64xf32, #tpu.memory_space<vmem>>, vector<2x32xf32>
    tpu.vector_store %arg20[%c8_46, %c0_47], %141 {strides = array<i32>} : memref<16x64xf32, #tpu.memory_space<vmem>>, vector<2x32xf32>,
    %143 = vector.extract_strided_slice %136 {offsets = [0, 32], sizes = [2, 32], strides = [1, 1]} : vector<2x64xf32> to vector<2x32xf32>
    %c6_48 = arith.constant 6 : index
    %c32_49 = arith.constant 32 : index
    %144 = vector.load %arg20[%c6_48, %c32_49] : memref<16x64xf32, #tpu.memory_space<vmem>>, vector<2x32xf32>
    tpu.vector_store %arg20[%c6_48, %c32_49], %143 {strides = array<i32>} : memref<16x64xf32, #tpu.memory_space<vmem>>, vector<2x32xf32>,
    %cst_50 = arith.constant dense<0.000000e+00> : vector<2x256xf32>
    %145 = tpu.matmul %136, %10, %cst_50 {dimension_numbers = #tpu.dot_dimension_numbers<[1], [0], [0], [1], [0, 0, 1, 1], [], []>} : vector<2x64xf32>, vector<64x256xf32>, vector<2x256xf32> -> vector<2x256xf32>
    %146 = vector.extract_strided_slice %9 {offsets = [8, 0], sizes = [2, 256], strides = [1, 1]} : vector<16x256xf32> to vector<2x256xf32>
    %147 = arith.addf %145, %146 : vector<2x256xf32>
    %148 = vector.extract_strided_slice %147 {offsets = [0, 0], sizes = [2, 128], strides = [1, 1]} : vector<2x256xf32> to vector<2x128xf32>
    %149 = arith.negf %148 : vector<2x128xf32>
    %150 = math.exp %149 : vector<2x128xf32>
    %cst_51 = arith.constant 1.000000e+00 : f32
    %151 = vector.broadcast %cst_51 : f32 to vector<2x128xf32>
    %152 = arith.addf %151, %150 : vector<2x128xf32>
    %153 = arith.divf %151, %152 : vector<2x128xf32>
    %154 = vector.extract_strided_slice %147 {offsets = [0, 128], sizes = [2, 128], strides = [1, 1]} : vector<2x256xf32> to vector<2x128xf32>
    %155 = math.tanh %154 : vector<2x128xf32>
    %156 = arith.negf %154 : vector<2x128xf32>
    %157 = math.exp %156 : vector<2x128xf32>
    %cst_52 = arith.constant 1.000000e+00 : f32
    %158 = vector.broadcast %cst_52 : f32 to vector<2x128xf32>
    %159 = arith.addf %158, %157 : vector<2x128xf32>
    %160 = arith.divf %158, %159 : vector<2x128xf32>
    %161 = vector.extract_strided_slice %153 {offsets = [0, 0], sizes = [2, 64], strides = [1, 1]} : vector<2x128xf32> to vector<2x64xf32>
    %162 = vector.extract_strided_slice %153 {offsets = [0, 64], sizes = [2, 64], strides = [1, 1]} : vector<2x128xf32> to vector<2x64xf32>
    %163 = vector.extract_strided_slice %155 {offsets = [0, 0], sizes = [2, 64], strides = [1, 1]} : vector<2x128xf32> to vector<2x64xf32>
    %164 = vector.extract_strided_slice %160 {offsets = [0, 64], sizes = [2, 64], strides = [1, 1]} : vector<2x128xf32> to vector<2x64xf32>
    %165 = arith.mulf %162, %134 : vector<2x64xf32>
    %166 = arith.mulf %161, %163 : vector<2x64xf32>
    %167 = arith.addf %165, %166 : vector<2x64xf32>
    %168 = math.tanh %167 : vector<2x64xf32>
    %169 = arith.mulf %164, %168 : vector<2x64xf32>
    %170 = vector.extract_strided_slice %169 {offsets = [0, 0], sizes = [2, 32], strides = [1, 1]} : vector<2x64xf32> to vector<2x32xf32>
    %c8_53 = arith.constant 8 : index
    %c0_54 = arith.constant 0 : index
    %171 = vector.load %arg19[%c8_53, %c0_54] : memref<16x64xf32, #tpu.memory_space<vmem>>, vector<2x32xf32>
    tpu.vector_store %arg19[%c8_53, %c0_54], %170 {strides = array<i32>} : memref<16x64xf32, #tpu.memory_space<vmem>>, vector<2x32xf32>,
    %172 = vector.extract_strided_slice %169 {offsets = [0, 32], sizes = [2, 32], strides = [1, 1]} : vector<2x64xf32> to vector<2x32xf32>
    %c6_55 = arith.constant 6 : index
    %c32_56 = arith.constant 32 : index
    %173 = vector.load %arg19[%c6_55, %c32_56] : memref<16x64xf32, #tpu.memory_space<vmem>>, vector<2x32xf32>
    tpu.vector_store %arg19[%c6_55, %c32_56], %172 {strides = array<i32>} : memref<16x64xf32, #tpu.memory_space<vmem>>, vector<2x32xf32>,
    %174 = vector.extract_strided_slice %169 {offsets = [0, 0], sizes = [2, 32], strides = [1, 1]} : vector<2x64xf32> to vector<2x32xf32>
    %c6_57 = arith.constant 6 : index
    %c0_58 = arith.constant 0 : index
    %175 = vector.load %arg20[%c6_57, %c0_58] : memref<16x64xf32, #tpu.memory_space<vmem>>, vector<2x32xf32>
    tpu.vector_store %arg20[%c6_57, %c0_58], %174 {strides = array<i32>} : memref<16x64xf32, #tpu.memory_space<vmem>>, vector<2x32xf32>,
    %176 = vector.extract_strided_slice %169 {offsets = [0, 32], sizes = [2, 32], strides = [1, 1]} : vector<2x64xf32> to vector<2x32xf32>
    %c8_59 = arith.constant 8 : index
    %c32_60 = arith.constant 32 : index
    %177 = vector.load %arg20[%c8_59, %c32_60] : memref<16x64xf32, #tpu.memory_space<vmem>>, vector<2x32xf32>
    tpu.vector_store %arg20[%c8_59, %c32_60], %176 {strides = array<i32>} : memref<16x64xf32, #tpu.memory_space<vmem>>, vector<2x32xf32>,
    %cst_61 = arith.constant dense<0.000000e+00> : vector<2x256xf32>
    %178 = tpu.matmul %169, %10, %cst_61 {dimension_numbers = #tpu.dot_dimension_numbers<[1], [0], [0], [1], [0, 0, 1, 1], [], []>} : vector<2x64xf32>, vector<64x256xf32>, vector<2x256xf32> -> vector<2x256xf32>
    %179 = vector.extract_strided_slice %9 {offsets = [10, 0], sizes = [2, 256], strides = [1, 1]} : vector<16x256xf32> to vector<2x256xf32>
    %180 = arith.addf %178, %179 : vector<2x256xf32>
    %181 = vector.extract_strided_slice %180 {offsets = [0, 0], sizes = [2, 128], strides = [1, 1]} : vector<2x256xf32> to vector<2x128xf32>
    %182 = arith.negf %181 : vector<2x128xf32>
    %183 = math.exp %182 : vector<2x128xf32>
    %cst_62 = arith.constant 1.000000e+00 : f32
    %184 = vector.broadcast %cst_62 : f32 to vector<2x128xf32>
    %185 = arith.addf %184, %183 : vector<2x128xf32>
    %186 = arith.divf %184, %185 : vector<2x128xf32>
    %187 = vector.extract_strided_slice %180 {offsets = [0, 128], sizes = [2, 128], strides = [1, 1]} : vector<2x256xf32> to vector<2x128xf32>
    %188 = math.tanh %187 : vector<2x128xf32>
    %189 = arith.negf %187 : vector<2x128xf32>
    %190 = math.exp %189 : vector<2x128xf32>
    %cst_63 = arith.constant 1.000000e+00 : f32
    %191 = vector.broadcast %cst_63 : f32 to vector<2x128xf32>
    %192 = arith.addf %191, %190 : vector<2x128xf32>
    %193 = arith.divf %191, %192 : vector<2x128xf32>
    %194 = vector.extract_strided_slice %186 {offsets = [0, 0], sizes = [2, 64], strides = [1, 1]} : vector<2x128xf32> to vector<2x64xf32>
    %195 = vector.extract_strided_slice %186 {offsets = [0, 64], sizes = [2, 64], strides = [1, 1]} : vector<2x128xf32> to vector<2x64xf32>
    %196 = vector.extract_strided_slice %188 {offsets = [0, 0], sizes = [2, 64], strides = [1, 1]} : vector<2x128xf32> to vector<2x64xf32>
    %197 = vector.extract_strided_slice %193 {offsets = [0, 64], sizes = [2, 64], strides = [1, 1]} : vector<2x128xf32> to vector<2x64xf32>
    %198 = arith.mulf %195, %167 : vector<2x64xf32>
    %199 = arith.mulf %194, %196 : vector<2x64xf32>
    %200 = arith.addf %198, %199 : vector<2x64xf32>
    %201 = math.tanh %200 : vector<2x64xf32>
    %202 = arith.mulf %197, %201 : vector<2x64xf32>
    %203 = vector.extract_strided_slice %202 {offsets = [0, 0], sizes = [2, 32], strides = [1, 1]} : vector<2x64xf32> to vector<2x32xf32>
    %c10_64 = arith.constant 10 : index
    %c0_65 = arith.constant 0 : index
    %204 = vector.load %arg19[%c10_64, %c0_65] : memref<16x64xf32, #tpu.memory_space<vmem>>, vector<2x32xf32>
    tpu.vector_store %arg19[%c10_64, %c0_65], %203 {strides = array<i32>} : memref<16x64xf32, #tpu.memory_space<vmem>>, vector<2x32xf32>,
    %205 = vector.extract_strided_slice %202 {offsets = [0, 32], sizes = [2, 32], strides = [1, 1]} : vector<2x64xf32> to vector<2x32xf32>
    %c4_66 = arith.constant 4 : index
    %c32_67 = arith.constant 32 : index
    %206 = vector.load %arg19[%c4_66, %c32_67] : memref<16x64xf32, #tpu.memory_space<vmem>>, vector<2x32xf32>
    tpu.vector_store %arg19[%c4_66, %c32_67], %205 {strides = array<i32>} : memref<16x64xf32, #tpu.memory_space<vmem>>, vector<2x32xf32>,
    %207 = vector.extract_strided_slice %202 {offsets = [0, 0], sizes = [2, 32], strides = [1, 1]} : vector<2x64xf32> to vector<2x32xf32>
    %c4_68 = arith.constant 4 : index
    %c0_69 = arith.constant 0 : index
    %208 = vector.load %arg20[%c4_68, %c0_69] : memref<16x64xf32, #tpu.memory_space<vmem>>, vector<2x32xf32>
    tpu.vector_store %arg20[%c4_68, %c0_69], %207 {strides = array<i32>} : memref<16x64xf32, #tpu.memory_space<vmem>>, vector<2x32xf32>,
    %209 = vector.extract_strided_slice %202 {offsets = [0, 32], sizes = [2, 32], strides = [1, 1]} : vector<2x64xf32> to vector<2x32xf32>
    %c10_70 = arith.constant 10 : index
    %c32_71 = arith.constant 32 : index
    %210 = vector.load %arg20[%c10_70, %c32_71] : memref<16x64xf32, #tpu.memory_space<vmem>>, vector<2x32xf32>
    tpu.vector_store %arg20[%c10_70, %c32_71], %209 {strides = array<i32>} : memref<16x64xf32, #tpu.memory_space<vmem>>, vector<2x32xf32>,
    %cst_72 = arith.constant dense<0.000000e+00> : vector<2x256xf32>
    %211 = tpu.matmul %202, %10, %cst_72 {dimension_numbers = #tpu.dot_dimension_numbers<[1], [0], [0], [1], [0, 0, 1, 1], [], []>} : vector<2x64xf32>, vector<64x256xf32>, vector<2x256xf32> -> vector<2x256xf32>
    %212 = vector.extract_strided_slice %9 {offsets = [12, 0], sizes = [2, 256], strides = [1, 1]} : vector<16x256xf32> to vector<2x256xf32>
    %213 = arith.addf %211, %212 : vector<2x256xf32>
    %214 = vector.extract_strided_slice %213 {offsets = [0, 0], sizes = [2, 128], strides = [1, 1]} : vector<2x256xf32> to vector<2x128xf32>
    %215 = arith.negf %214 : vector<2x128xf32>
    %216 = math.exp %215 : vector<2x128xf32>
    %cst_73 = arith.constant 1.000000e+00 : f32
    %217 = vector.broadcast %cst_73 : f32 to vector<2x128xf32>
    %218 = arith.addf %217, %216 : vector<2x128xf32>
    %219 = arith.divf %217, %218 : vector<2x128xf32>
    %220 = vector.extract_strided_slice %213 {offsets = [0, 128], sizes = [2, 128], strides = [1, 1]} : vector<2x256xf32> to vector<2x128xf32>
    %221 = math.tanh %220 : vector<2x128xf32>
    %222 = arith.negf %220 : vector<2x128xf32>
    %223 = math.exp %222 : vector<2x128xf32>
    %cst_74 = arith.constant 1.000000e+00 : f32
    %224 = vector.broadcast %cst_74 : f32 to vector<2x128xf32>
    %225 = arith.addf %224, %223 : vector<2x128xf32>
    %226 = arith.divf %224, %225 : vector<2x128xf32>
    %227 = vector.extract_strided_slice %219 {offsets = [0, 0], sizes = [2, 64], strides = [1, 1]} : vector<2x128xf32> to vector<2x64xf32>
    %228 = vector.extract_strided_slice %219 {offsets = [0, 64], sizes = [2, 64], strides = [1, 1]} : vector<2x128xf32> to vector<2x64xf32>
    %229 = vector.extract_strided_slice %221 {offsets = [0, 0], sizes = [2, 64], strides = [1, 1]} : vector<2x128xf32> to vector<2x64xf32>
    %230 = vector.extract_strided_slice %226 {offsets = [0, 64], sizes = [2, 64], strides = [1, 1]} : vector<2x128xf32> to vector<2x64xf32>
    %231 = arith.mulf %228, %200 : vector<2x64xf32>
    %232 = arith.mulf %227, %229 : vector<2x64xf32>
    %233 = arith.addf %231, %232 : vector<2x64xf32>
    %234 = math.tanh %233 : vector<2x64xf32>
    %235 = arith.mulf %230, %234 : vector<2x64xf32>
    %236 = vector.extract_strided_slice %235 {offsets = [0, 0], sizes = [2, 32], strides = [1, 1]} : vector<2x64xf32> to vector<2x32xf32>
    %c12_75 = arith.constant 12 : index
    %c0_76 = arith.constant 0 : index
    %237 = vector.load %arg19[%c12_75, %c0_76] : memref<16x64xf32, #tpu.memory_space<vmem>>, vector<2x32xf32>
    tpu.vector_store %arg19[%c12_75, %c0_76], %236 {strides = array<i32>} : memref<16x64xf32, #tpu.memory_space<vmem>>, vector<2x32xf32>,
    %238 = vector.extract_strided_slice %235 {offsets = [0, 32], sizes = [2, 32], strides = [1, 1]} : vector<2x64xf32> to vector<2x32xf32>
    %c2_77 = arith.constant 2 : index
    %c32_78 = arith.constant 32 : index
    %239 = vector.load %arg19[%c2_77, %c32_78] : memref<16x64xf32, #tpu.memory_space<vmem>>, vector<2x32xf32>
    tpu.vector_store %arg19[%c2_77, %c32_78], %238 {strides = array<i32>} : memref<16x64xf32, #tpu.memory_space<vmem>>, vector<2x32xf32>,
    %240 = vector.extract_strided_slice %235 {offsets = [0, 0], sizes = [2, 32], strides = [1, 1]} : vector<2x64xf32> to vector<2x32xf32>
    %c2_79 = arith.constant 2 : index
    %c0_80 = arith.constant 0 : index
    %241 = vector.load %arg20[%c2_79, %c0_80] : memref<16x64xf32, #tpu.memory_space<vmem>>, vector<2x32xf32>
    tpu.vector_store %arg20[%c2_79, %c0_80], %240 {strides = array<i32>} : memref<16x64xf32, #tpu.memory_space<vmem>>, vector<2x32xf32>,
    %242 = vector.extract_strided_slice %235 {offsets = [0, 32], sizes = [2, 32], strides = [1, 1]} : vector<2x64xf32> to vector<2x32xf32>
    %c12_81 = arith.constant 12 : index
    %c32_82 = arith.constant 32 : index
    %243 = vector.load %arg20[%c12_81, %c32_82] : memref<16x64xf32, #tpu.memory_space<vmem>>, vector<2x32xf32>
    tpu.vector_store %arg20[%c12_81, %c32_82], %242 {strides = array<i32>} : memref<16x64xf32, #tpu.memory_space<vmem>>, vector<2x32xf32>,
    %cst_83 = arith.constant dense<0.000000e+00> : vector<2x256xf32>
    %244 = tpu.matmul %235, %10, %cst_83 {dimension_numbers = #tpu.dot_dimension_numbers<[1], [0], [0], [1], [0, 0, 1, 1], [], []>} : vector<2x64xf32>, vector<64x256xf32>, vector<2x256xf32> -> vector<2x256xf32>
    %245 = vector.extract_strided_slice %9 {offsets = [14, 0], sizes = [2, 256], strides = [1, 1]} : vector<16x256xf32> to vector<2x256xf32>
    %246 = arith.addf %244, %245 : vector<2x256xf32>
    %247 = vector.extract_strided_slice %246 {offsets = [0, 0], sizes = [2, 128], strides = [1, 1]} : vector<2x256xf32> to vector<2x128xf32>
    %248 = arith.negf %247 : vector<2x128xf32>
    %249 = math.exp %248 : vector<2x128xf32>
    %cst_84 = arith.constant 1.000000e+00 : f32
    %250 = vector.broadcast %cst_84 : f32 to vector<2x128xf32>
    %251 = arith.addf %250, %249 : vector<2x128xf32>
    %252 = arith.divf %250, %251 : vector<2x128xf32>
    %253 = vector.extract_strided_slice %246 {offsets = [0, 128], sizes = [2, 128], strides = [1, 1]} : vector<2x256xf32> to vector<2x128xf32>
    %254 = math.tanh %253 : vector<2x128xf32>
    %255 = arith.negf %253 : vector<2x128xf32>
    %256 = math.exp %255 : vector<2x128xf32>
    %cst_85 = arith.constant 1.000000e+00 : f32
    %257 = vector.broadcast %cst_85 : f32 to vector<2x128xf32>
    %258 = arith.addf %257, %256 : vector<2x128xf32>
    %259 = arith.divf %257, %258 : vector<2x128xf32>
    %260 = vector.extract_strided_slice %252 {offsets = [0, 0], sizes = [2, 64], strides = [1, 1]} : vector<2x128xf32> to vector<2x64xf32>
    %261 = vector.extract_strided_slice %252 {offsets = [0, 64], sizes = [2, 64], strides = [1, 1]} : vector<2x128xf32> to vector<2x64xf32>
    %262 = vector.extract_strided_slice %254 {offsets = [0, 0], sizes = [2, 64], strides = [1, 1]} : vector<2x128xf32> to vector<2x64xf32>
    %263 = vector.extract_strided_slice %259 {offsets = [0, 64], sizes = [2, 64], strides = [1, 1]} : vector<2x128xf32> to vector<2x64xf32>
    %264 = arith.mulf %261, %233 : vector<2x64xf32>
    %265 = arith.mulf %260, %262 : vector<2x64xf32>
    %266 = arith.addf %264, %265 : vector<2x64xf32>
    %267 = math.tanh %266 : vector<2x64xf32>
    %268 = arith.mulf %263, %267 : vector<2x64xf32>
    %269 = vector.extract_strided_slice %268 {offsets = [0, 0], sizes = [2, 32], strides = [1, 1]} : vector<2x64xf32> to vector<2x32xf32>
    %c14_86 = arith.constant 14 : index
    %c0_87 = arith.constant 0 : index
    %270 = vector.load %arg19[%c14_86, %c0_87] : memref<16x64xf32, #tpu.memory_space<vmem>>, vector<2x32xf32>
    tpu.vector_store %arg19[%c14_86, %c0_87], %269 {strides = array<i32>} : memref<16x64xf32, #tpu.memory_space<vmem>>, vector<2x32xf32>,
    %271 = vector.extract_strided_slice %268 {offsets = [0, 32], sizes = [2, 32], strides = [1, 1]} : vector<2x64xf32> to vector<2x32xf32>
    %c0_88 = arith.constant 0 : index
    %c32_89 = arith.constant 32 : index
    %272 = vector.load %arg19[%c0_88, %c32_89] : memref<16x64xf32, #tpu.memory_space<vmem>>, vector<2x32xf32>
    tpu.vector_store %arg19[%c0_88, %c32_89], %271 {strides = array<i32>} : memref<16x64xf32, #tpu.memory_space<vmem>>, vector<2x32xf32>,
    %273 = vector.extract_strided_slice %268 {offsets = [0, 0], sizes = [2, 32], strides = [1, 1]} : vector<2x64xf32> to vector<2x32xf32>
    %c0_90 = arith.constant 0 : index
    %c0_91 = arith.constant 0 : index
    %274 = vector.load %arg20[%c0_90, %c0_91] : memref<16x64xf32, #tpu.memory_space<vmem>>, vector<2x32xf32>
    tpu.vector_store %arg20[%c0_90, %c0_91], %273 {strides = array<i32>} : memref<16x64xf32, #tpu.memory_space<vmem>>, vector<2x32xf32>,
    %275 = vector.extract_strided_slice %268 {offsets = [0, 32], sizes = [2, 32], strides = [1, 1]} : vector<2x64xf32> to vector<2x32xf32>
    %c14_92 = arith.constant 14 : index
    %c32_93 = arith.constant 32 : index
    %276 = vector.load %arg20[%c14_92, %c32_93] : memref<16x64xf32, #tpu.memory_space<vmem>>, vector<2x32xf32>
    tpu.vector_store %arg20[%c14_92, %c32_93], %275 {strides = array<i32>} : memref<16x64xf32, #tpu.memory_space<vmem>>, vector<2x32xf32>,
    %c0_94 = arith.constant 0 : index
    %c0_95 = arith.constant 0 : index
    %277 = vector.load %arg19[%c0_94, %c0_95] : memref<16x64xf32, #tpu.memory_space<vmem>>, vector<16x64xf32>
    %c0_96 = arith.constant 0 : index
    %c0_97 = arith.constant 0 : index
    %278 = vector.load %arg20[%c0_96, %c0_97] : memref<16x64xf32, #tpu.memory_space<vmem>>, vector<16x64xf32>
    %c0_98 = arith.constant 0 : index
    %c0_99 = arith.constant 0 : index
    %279 = vector.load %arg6[%c0_98, %c0_99] : memref<64x256xf32, #tpu.memory_space<vmem>>, vector<64x256xf32>
    %cst_100 = arith.constant dense<0.000000e+00> : vector<16x256xf32>
    %280 = tpu.matmul %277, %279, %cst_100 {dimension_numbers = #tpu.dot_dimension_numbers<[1], [0], [0], [1], [0, 0, 1, 1], [], []>} : vector<16x64xf32>, vector<64x256xf32>, vector<16x256xf32> -> vector<16x256xf32>
    %c0_101 = arith.constant 0 : index
    %c0_102 = arith.constant 0 : index
    %281 = vector.load %arg7[%c0_101, %c0_102] : memref<64x256xf32, #tpu.memory_space<vmem>>, vector<64x256xf32>
    %cst_103 = arith.constant dense<0.000000e+00> : vector<16x256xf32>
    %282 = tpu.matmul %278, %281, %cst_103 {dimension_numbers = #tpu.dot_dimension_numbers<[1], [0], [0], [1], [0, 0, 1, 1], [], []>} : vector<16x64xf32>, vector<64x256xf32>, vector<16x256xf32> -> vector<16x256xf32>
    %283 = arith.addf %280, %282 : vector<16x256xf32>
    %c0_104 = arith.constant 0 : index
    %c0_105 = arith.constant 0 : index
    %284 = vector.load %arg9[%c0_104, %c0_105] : memref<1x256xf32, #tpu.memory_space<vmem>>, vector<1x256xf32>
    %285 = vector.broadcast %284 : vector<1x256xf32> to vector<16x256xf32>
    %286 = arith.addf %283, %285 : vector<16x256xf32>
    %c0_106 = arith.constant 0 : index
    %c0_107 = arith.constant 0 : index
    %287 = vector.load %arg8[%c0_106, %c0_107] : memref<64x256xf32, #tpu.memory_space<vmem>>, vector<64x256xf32>
    %cst_108 = arith.constant 0.000000e+00 : f32
    %288 = vector.broadcast %cst_108 : f32 to vector<2x64xf32>
    %cst_109 = arith.constant 0.000000e+00 : f32
    %289 = vector.broadcast %cst_109 : f32 to vector<2x64xf32>
    %cst_110 = arith.constant dense<0.000000e+00> : vector<2x256xf32>
    %290 = tpu.matmul %288, %287, %cst_110 {dimension_numbers = #tpu.dot_dimension_numbers<[1], [0], [0], [1], [0, 0, 1, 1], [], []>} : vector<2x64xf32>, vector<64x256xf32>, vector<2x256xf32> -> vector<2x256xf32>
    %291 = vector.extract_strided_slice %286 {offsets = [0, 0], sizes = [2, 256], strides = [1, 1]} : vector<16x256xf32> to vector<2x256xf32>
    %292 = arith.addf %290, %291 : vector<2x256xf32>
    %293 = vector.extract_strided_slice %292 {offsets = [0, 0], sizes = [2, 128], strides = [1, 1]} : vector<2x256xf32> to vector<2x128xf32>
    %294 = arith.negf %293 : vector<2x128xf32>
    %295 = math.exp %294 : vector<2x128xf32>
    %cst_111 = arith.constant 1.000000e+00 : f32
    %296 = vector.broadcast %cst_111 : f32 to vector<2x128xf32>
    %297 = arith.addf %296, %295 : vector<2x128xf32>
    %298 = arith.divf %296, %297 : vector<2x128xf32>
    %299 = vector.extract_strided_slice %292 {offsets = [0, 128], sizes = [2, 128], strides = [1, 1]} : vector<2x256xf32> to vector<2x128xf32>
    %300 = math.tanh %299 : vector<2x128xf32>
    %301 = arith.negf %299 : vector<2x128xf32>
    %302 = math.exp %301 : vector<2x128xf32>
    %cst_112 = arith.constant 1.000000e+00 : f32
    %303 = vector.broadcast %cst_112 : f32 to vector<2x128xf32>
    %304 = arith.addf %303, %302 : vector<2x128xf32>
    %305 = arith.divf %303, %304 : vector<2x128xf32>
    %306 = vector.extract_strided_slice %298 {offsets = [0, 0], sizes = [2, 64], strides = [1, 1]} : vector<2x128xf32> to vector<2x64xf32>
    %307 = vector.extract_strided_slice %298 {offsets = [0, 64], sizes = [2, 64], strides = [1, 1]} : vector<2x128xf32> to vector<2x64xf32>
    %308 = vector.extract_strided_slice %300 {offsets = [0, 0], sizes = [2, 64], strides = [1, 1]} : vector<2x128xf32> to vector<2x64xf32>
    %309 = vector.extract_strided_slice %305 {offsets = [0, 64], sizes = [2, 64], strides = [1, 1]} : vector<2x128xf32> to vector<2x64xf32>
    %310 = arith.mulf %307, %289 : vector<2x64xf32>
    %311 = arith.mulf %306, %308 : vector<2x64xf32>
    %312 = arith.addf %310, %311 : vector<2x64xf32>
    %313 = math.tanh %312 : vector<2x64xf32>
    %314 = arith.mulf %309, %313 : vector<2x64xf32>
    %315 = vector.extract_strided_slice %314 {offsets = [0, 0], sizes = [2, 32], strides = [1, 1]} : vector<2x64xf32> to vector<2x32xf32>
    %c0_113 = arith.constant 0 : index
    %c0_114 = arith.constant 0 : index
    %316 = vector.load %arg19[%c0_113, %c0_114] : memref<16x64xf32, #tpu.memory_space<vmem>>, vector<2x32xf32>
    tpu.vector_store %arg19[%c0_113, %c0_114], %315 {strides = array<i32>} : memref<16x64xf32, #tpu.memory_space<vmem>>, vector<2x32xf32>,
    %317 = vector.extract_strided_slice %314 {offsets = [0, 32], sizes = [2, 32], strides = [1, 1]} : vector<2x64xf32> to vector<2x32xf32>
    %c14_115 = arith.constant 14 : index
    %c32_116 = arith.constant 32 : index
    %318 = vector.load %arg19[%c14_115, %c32_116] : memref<16x64xf32, #tpu.memory_space<vmem>>, vector<2x32xf32>
    tpu.vector_store %arg19[%c14_115, %c32_116], %317 {strides = array<i32>} : memref<16x64xf32, #tpu.memory_space<vmem>>, vector<2x32xf32>,
    %cst_117 = arith.constant dense<0.000000e+00> : vector<2x256xf32>
    %319 = tpu.matmul %314, %287, %cst_117 {dimension_numbers = #tpu.dot_dimension_numbers<[1], [0], [0], [1], [0, 0, 1, 1], [], []>} : vector<2x64xf32>, vector<64x256xf32>, vector<2x256xf32> -> vector<2x256xf32>
    %320 = vector.extract_strided_slice %286 {offsets = [2, 0], sizes = [2, 256], strides = [1, 1]} : vector<16x256xf32> to vector<2x256xf32>
    %321 = arith.addf %319, %320 : vector<2x256xf32>
    %322 = vector.extract_strided_slice %321 {offsets = [0, 0], sizes = [2, 128], strides = [1, 1]} : vector<2x256xf32> to vector<2x128xf32>
    %323 = arith.negf %322 : vector<2x128xf32>
    %324 = math.exp %323 : vector<2x128xf32>
    %cst_118 = arith.constant 1.000000e+00 : f32
    %325 = vector.broadcast %cst_118 : f32 to vector<2x128xf32>
    %326 = arith.addf %325, %324 : vector<2x128xf32>
    %327 = arith.divf %325, %326 : vector<2x128xf32>
    %328 = vector.extract_strided_slice %321 {offsets = [0, 128], sizes = [2, 128], strides = [1, 1]} : vector<2x256xf32> to vector<2x128xf32>
    %329 = math.tanh %328 : vector<2x128xf32>
    %330 = arith.negf %328 : vector<2x128xf32>
    %331 = math.exp %330 : vector<2x128xf32>
    %cst_119 = arith.constant 1.000000e+00 : f32
    %332 = vector.broadcast %cst_119 : f32 to vector<2x128xf32>
    %333 = arith.addf %332, %331 : vector<2x128xf32>
    %334 = arith.divf %332, %333 : vector<2x128xf32>
    %335 = vector.extract_strided_slice %327 {offsets = [0, 0], sizes = [2, 64], strides = [1, 1]} : vector<2x128xf32> to vector<2x64xf32>
    %336 = vector.extract_strided_slice %327 {offsets = [0, 64], sizes = [2, 64], strides = [1, 1]} : vector<2x128xf32> to vector<2x64xf32>
    %337 = vector.extract_strided_slice %329 {offsets = [0, 0], sizes = [2, 64], strides = [1, 1]} : vector<2x128xf32> to vector<2x64xf32>
    %338 = vector.extract_strided_slice %334 {offsets = [0, 64], sizes = [2, 64], strides = [1, 1]} : vector<2x128xf32> to vector<2x64xf32>
    %339 = arith.mulf %336, %312 : vector<2x64xf32>
    %340 = arith.mulf %335, %337 : vector<2x64xf32>
    %341 = arith.addf %339, %340 : vector<2x64xf32>
    %342 = math.tanh %341 : vector<2x64xf32>
    %343 = arith.mulf %338, %342 : vector<2x64xf32>
    %344 = vector.extract_strided_slice %343 {offsets = [0, 0], sizes = [2, 32], strides = [1, 1]} : vector<2x64xf32> to vector<2x32xf32>
    %c2_120 = arith.constant 2 : index
    %c0_121 = arith.constant 0 : index
    %345 = vector.load %arg19[%c2_120, %c0_121] : memref<16x64xf32, #tpu.memory_space<vmem>>, vector<2x32xf32>
    tpu.vector_store %arg19[%c2_120, %c0_121], %344 {strides = array<i32>} : memref<16x64xf32, #tpu.memory_space<vmem>>, vector<2x32xf32>,
    %346 = vector.extract_strided_slice %343 {offsets = [0, 32], sizes = [2, 32], strides = [1, 1]} : vector<2x64xf32> to vector<2x32xf32>
    %c12_122 = arith.constant 12 : index
    %c32_123 = arith.constant 32 : index
    %347 = vector.load %arg19[%c12_122, %c32_123] : memref<16x64xf32, #tpu.memory_space<vmem>>, vector<2x32xf32>
    tpu.vector_store %arg19[%c12_122, %c32_123], %346 {strides = array<i32>} : memref<16x64xf32, #tpu.memory_space<vmem>>, vector<2x32xf32>,
    %cst_124 = arith.constant dense<0.000000e+00> : vector<2x256xf32>
    %348 = tpu.matmul %343, %287, %cst_124 {dimension_numbers = #tpu.dot_dimension_numbers<[1], [0], [0], [1], [0, 0, 1, 1], [], []>} : vector<2x64xf32>, vector<64x256xf32>, vector<2x256xf32> -> vector<2x256xf32>
    %349 = vector.extract_strided_slice %286 {offsets = [4, 0], sizes = [2, 256], strides = [1, 1]} : vector<16x256xf32> to vector<2x256xf32>
    %350 = arith.addf %348, %349 : vector<2x256xf32>
    %351 = vector.extract_strided_slice %350 {offsets = [0, 0], sizes = [2, 128], strides = [1, 1]} : vector<2x256xf32> to vector<2x128xf32>
    %352 = arith.negf %351 : vector<2x128xf32>
    %353 = math.exp %352 : vector<2x128xf32>
    %cst_125 = arith.constant 1.000000e+00 : f32
    %354 = vector.broadcast %cst_125 : f32 to vector<2x128xf32>
    %355 = arith.addf %354, %353 : vector<2x128xf32>
    %356 = arith.divf %354, %355 : vector<2x128xf32>
    %357 = vector.extract_strided_slice %350 {offsets = [0, 128], sizes = [2, 128], strides = [1, 1]} : vector<2x256xf32> to vector<2x128xf32>
    %358 = math.tanh %357 : vector<2x128xf32>
    %359 = arith.negf %357 : vector<2x128xf32>
    %360 = math.exp %359 : vector<2x128xf32>
    %cst_126 = arith.constant 1.000000e+00 : f32
    %361 = vector.broadcast %cst_126 : f32 to vector<2x128xf32>
    %362 = arith.addf %361, %360 : vector<2x128xf32>
    %363 = arith.divf %361, %362 : vector<2x128xf32>
    %364 = vector.extract_strided_slice %356 {offsets = [0, 0], sizes = [2, 64], strides = [1, 1]} : vector<2x128xf32> to vector<2x64xf32>
    %365 = vector.extract_strided_slice %356 {offsets = [0, 64], sizes = [2, 64], strides = [1, 1]} : vector<2x128xf32> to vector<2x64xf32>
    %366 = vector.extract_strided_slice %358 {offsets = [0, 0], sizes = [2, 64], strides = [1, 1]} : vector<2x128xf32> to vector<2x64xf32>
    %367 = vector.extract_strided_slice %363 {offsets = [0, 64], sizes = [2, 64], strides = [1, 1]} : vector<2x128xf32> to vector<2x64xf32>
    %368 = arith.mulf %365, %341 : vector<2x64xf32>
    %369 = arith.mulf %364, %366 : vector<2x64xf32>
    %370 = arith.addf %368, %369 : vector<2x64xf32>
    %371 = math.tanh %370 : vector<2x64xf32>
    %372 = arith.mulf %367, %371 : vector<2x64xf32>
    %373 = vector.extract_strided_slice %372 {offsets = [0, 0], sizes = [2, 32], strides = [1, 1]} : vector<2x64xf32> to vector<2x32xf32>
    %c4_127 = arith.constant 4 : index
    %c0_128 = arith.constant 0 : index
    %374 = vector.load %arg19[%c4_127, %c0_128] : memref<16x64xf32, #tpu.memory_space<vmem>>, vector<2x32xf32>
    tpu.vector_store %arg19[%c4_127, %c0_128], %373 {strides = array<i32>} : memref<16x64xf32, #tpu.memory_space<vmem>>, vector<2x32xf32>,
    %375 = vector.extract_strided_slice %372 {offsets = [0, 32], sizes = [2, 32], strides = [1, 1]} : vector<2x64xf32> to vector<2x32xf32>
    %c10_129 = arith.constant 10 : index
    %c32_130 = arith.constant 32 : index
    %376 = vector.load %arg19[%c10_129, %c32_130] : memref<16x64xf32, #tpu.memory_space<vmem>>, vector<2x32xf32>
    tpu.vector_store %arg19[%c10_129, %c32_130], %375 {strides = array<i32>} : memref<16x64xf32, #tpu.memory_space<vmem>>, vector<2x32xf32>,
    %cst_131 = arith.constant dense<0.000000e+00> : vector<2x256xf32>
    %377 = tpu.matmul %372, %287, %cst_131 {dimension_numbers = #tpu.dot_dimension_numbers<[1], [0], [0], [1], [0, 0, 1, 1], [], []>} : vector<2x64xf32>, vector<64x256xf32>, vector<2x256xf32> -> vector<2x256xf32>
    %378 = vector.extract_strided_slice %286 {offsets = [6, 0], sizes = [2, 256], strides = [1, 1]} : vector<16x256xf32> to vector<2x256xf32>
    %379 = arith.addf %377, %378 : vector<2x256xf32>
    %380 = vector.extract_strided_slice %379 {offsets = [0, 0], sizes = [2, 128], strides = [1, 1]} : vector<2x256xf32> to vector<2x128xf32>
    %381 = arith.negf %380 : vector<2x128xf32>
    %382 = math.exp %381 : vector<2x128xf32>
    %cst_132 = arith.constant 1.000000e+00 : f32
    %383 = vector.broadcast %cst_132 : f32 to vector<2x128xf32>
    %384 = arith.addf %383, %382 : vector<2x128xf32>
    %385 = arith.divf %383, %384 : vector<2x128xf32>
    %386 = vector.extract_strided_slice %379 {offsets = [0, 128], sizes = [2, 128], strides = [1, 1]} : vector<2x256xf32> to vector<2x128xf32>
    %387 = math.tanh %386 : vector<2x128xf32>
    %388 = arith.negf %386 : vector<2x128xf32>
    %389 = math.exp %388 : vector<2x128xf32>
    %cst_133 = arith.constant 1.000000e+00 : f32
    %390 = vector.broadcast %cst_133 : f32 to vector<2x128xf32>
    %391 = arith.addf %390, %389 : vector<2x128xf32>
    %392 = arith.divf %390, %391 : vector<2x128xf32>
    %393 = vector.extract_strided_slice %385 {offsets = [0, 0], sizes = [2, 64], strides = [1, 1]} : vector<2x128xf32> to vector<2x64xf32>
    %394 = vector.extract_strided_slice %385 {offsets = [0, 64], sizes = [2, 64], strides = [1, 1]} : vector<2x128xf32> to vector<2x64xf32>
    %395 = vector.extract_strided_slice %387 {offsets = [0, 0], sizes = [2, 64], strides = [1, 1]} : vector<2x128xf32> to vector<2x64xf32>
    %396 = vector.extract_strided_slice %392 {offsets = [0, 64], sizes = [2, 64], strides = [1, 1]} : vector<2x128xf32> to vector<2x64xf32>
    %397 = arith.mulf %394, %370 : vector<2x64xf32>
    %398 = arith.mulf %393, %395 : vector<2x64xf32>
    %399 = arith.addf %397, %398 : vector<2x64xf32>
    %400 = math.tanh %399 : vector<2x64xf32>
    %401 = arith.mulf %396, %400 : vector<2x64xf32>
    %402 = vector.extract_strided_slice %401 {offsets = [0, 0], sizes = [2, 32], strides = [1, 1]} : vector<2x64xf32> to vector<2x32xf32>
    %c6_134 = arith.constant 6 : index
    %c0_135 = arith.constant 0 : index
    %403 = vector.load %arg19[%c6_134, %c0_135] : memref<16x64xf32, #tpu.memory_space<vmem>>, vector<2x32xf32>
    tpu.vector_store %arg19[%c6_134, %c0_135], %402 {strides = array<i32>} : memref<16x64xf32, #tpu.memory_space<vmem>>, vector<2x32xf32>,
    %404 = vector.extract_strided_slice %401 {offsets = [0, 32], sizes = [2, 32], strides = [1, 1]} : vector<2x64xf32> to vector<2x32xf32>
    %c8_136 = arith.constant 8 : index
    %c32_137 = arith.constant 32 : index
    %405 = vector.load %arg19[%c8_136, %c32_137] : memref<16x64xf32, #tpu.memory_space<vmem>>, vector<2x32xf32>
    tpu.vector_store %arg19[%c8_136, %c32_137], %404 {strides = array<i32>} : memref<16x64xf32, #tpu.memory_space<vmem>>, vector<2x32xf32>,
    %cst_138 = arith.constant dense<0.000000e+00> : vector<2x256xf32>
    %406 = tpu.matmul %401, %287, %cst_138 {dimension_numbers = #tpu.dot_dimension_numbers<[1], [0], [0], [1], [0, 0, 1, 1], [], []>} : vector<2x64xf32>, vector<64x256xf32>, vector<2x256xf32> -> vector<2x256xf32>
    %407 = vector.extract_strided_slice %286 {offsets = [8, 0], sizes = [2, 256], strides = [1, 1]} : vector<16x256xf32> to vector<2x256xf32>
    %408 = arith.addf %406, %407 : vector<2x256xf32>
    %409 = vector.extract_strided_slice %408 {offsets = [0, 0], sizes = [2, 128], strides = [1, 1]} : vector<2x256xf32> to vector<2x128xf32>
    %410 = arith.negf %409 : vector<2x128xf32>
    %411 = math.exp %410 : vector<2x128xf32>
    %cst_139 = arith.constant 1.000000e+00 : f32
    %412 = vector.broadcast %cst_139 : f32 to vector<2x128xf32>
    %413 = arith.addf %412, %411 : vector<2x128xf32>
    %414 = arith.divf %412, %413 : vector<2x128xf32>
    %415 = vector.extract_strided_slice %408 {offsets = [0, 128], sizes = [2, 128], strides = [1, 1]} : vector<2x256xf32> to vector<2x128xf32>
    %416 = math.tanh %415 : vector<2x128xf32>
    %417 = arith.negf %415 : vector<2x128xf32>
    %418 = math.exp %417 : vector<2x128xf32>
    %cst_140 = arith.constant 1.000000e+00 : f32
    %419 = vector.broadcast %cst_140 : f32 to vector<2x128xf32>
    %420 = arith.addf %419, %418 : vector<2x128xf32>
    %421 = arith.divf %419, %420 : vector<2x128xf32>
    %422 = vector.extract_strided_slice %414 {offsets = [0, 0], sizes = [2, 64], strides = [1, 1]} : vector<2x128xf32> to vector<2x64xf32>
    %423 = vector.extract_strided_slice %414 {offsets = [0, 64], sizes = [2, 64], strides = [1, 1]} : vector<2x128xf32> to vector<2x64xf32>
    %424 = vector.extract_strided_slice %416 {offsets = [0, 0], sizes = [2, 64], strides = [1, 1]} : vector<2x128xf32> to vector<2x64xf32>
    %425 = vector.extract_strided_slice %421 {offsets = [0, 64], sizes = [2, 64], strides = [1, 1]} : vector<2x128xf32> to vector<2x64xf32>
    %426 = arith.mulf %423, %399 : vector<2x64xf32>
    %427 = arith.mulf %422, %424 : vector<2x64xf32>
    %428 = arith.addf %426, %427 : vector<2x64xf32>
    %429 = math.tanh %428 : vector<2x64xf32>
    %430 = arith.mulf %425, %429 : vector<2x64xf32>
    %431 = vector.extract_strided_slice %430 {offsets = [0, 0], sizes = [2, 32], strides = [1, 1]} : vector<2x64xf32> to vector<2x32xf32>
    %c8_141 = arith.constant 8 : index
    %c0_142 = arith.constant 0 : index
    %432 = vector.load %arg19[%c8_141, %c0_142] : memref<16x64xf32, #tpu.memory_space<vmem>>, vector<2x32xf32>
    tpu.vector_store %arg19[%c8_141, %c0_142], %431 {strides = array<i32>} : memref<16x64xf32, #tpu.memory_space<vmem>>, vector<2x32xf32>,
    %433 = vector.extract_strided_slice %430 {offsets = [0, 32], sizes = [2, 32], strides = [1, 1]} : vector<2x64xf32> to vector<2x32xf32>
    %c6_143 = arith.constant 6 : index
    %c32_144 = arith.constant 32 : index
    %434 = vector.load %arg19[%c6_143, %c32_144] : memref<16x64xf32, #tpu.memory_space<vmem>>, vector<2x32xf32>
    tpu.vector_store %arg19[%c6_143, %c32_144], %433 {strides = array<i32>} : memref<16x64xf32, #tpu.memory_space<vmem>>, vector<2x32xf32>,
    %cst_145 = arith.constant dense<0.000000e+00> : vector<2x256xf32>
    %435 = tpu.matmul %430, %287, %cst_145 {dimension_numbers = #tpu.dot_dimension_numbers<[1], [0], [0], [1], [0, 0, 1, 1], [], []>} : vector<2x64xf32>, vector<64x256xf32>, vector<2x256xf32> -> vector<2x256xf32>
    %436 = vector.extract_strided_slice %286 {offsets = [10, 0], sizes = [2, 256], strides = [1, 1]} : vector<16x256xf32> to vector<2x256xf32>
    %437 = arith.addf %435, %436 : vector<2x256xf32>
    %438 = vector.extract_strided_slice %437 {offsets = [0, 0], sizes = [2, 128], strides = [1, 1]} : vector<2x256xf32> to vector<2x128xf32>
    %439 = arith.negf %438 : vector<2x128xf32>
    %440 = math.exp %439 : vector<2x128xf32>
    %cst_146 = arith.constant 1.000000e+00 : f32
    %441 = vector.broadcast %cst_146 : f32 to vector<2x128xf32>
    %442 = arith.addf %441, %440 : vector<2x128xf32>
    %443 = arith.divf %441, %442 : vector<2x128xf32>
    %444 = vector.extract_strided_slice %437 {offsets = [0, 128], sizes = [2, 128], strides = [1, 1]} : vector<2x256xf32> to vector<2x128xf32>
    %445 = math.tanh %444 : vector<2x128xf32>
    %446 = arith.negf %444 : vector<2x128xf32>
    %447 = math.exp %446 : vector<2x128xf32>
    %cst_147 = arith.constant 1.000000e+00 : f32
    %448 = vector.broadcast %cst_147 : f32 to vector<2x128xf32>
    %449 = arith.addf %448, %447 : vector<2x128xf32>
    %450 = arith.divf %448, %449 : vector<2x128xf32>
    %451 = vector.extract_strided_slice %443 {offsets = [0, 0], sizes = [2, 64], strides = [1, 1]} : vector<2x128xf32> to vector<2x64xf32>
    %452 = vector.extract_strided_slice %443 {offsets = [0, 64], sizes = [2, 64], strides = [1, 1]} : vector<2x128xf32> to vector<2x64xf32>
    %453 = vector.extract_strided_slice %445 {offsets = [0, 0], sizes = [2, 64], strides = [1, 1]} : vector<2x128xf32> to vector<2x64xf32>
    %454 = vector.extract_strided_slice %450 {offsets = [0, 64], sizes = [2, 64], strides = [1, 1]} : vector<2x128xf32> to vector<2x64xf32>
    %455 = arith.mulf %452, %428 : vector<2x64xf32>
    %456 = arith.mulf %451, %453 : vector<2x64xf32>
    %457 = arith.addf %455, %456 : vector<2x64xf32>
    %458 = math.tanh %457 : vector<2x64xf32>
    %459 = arith.mulf %454, %458 : vector<2x64xf32>
    %460 = vector.extract_strided_slice %459 {offsets = [0, 0], sizes = [2, 32], strides = [1, 1]} : vector<2x64xf32> to vector<2x32xf32>
    %c10_148 = arith.constant 10 : index
    %c0_149 = arith.constant 0 : index
    %461 = vector.load %arg19[%c10_148, %c0_149] : memref<16x64xf32, #tpu.memory_space<vmem>>, vector<2x32xf32>
    tpu.vector_store %arg19[%c10_148, %c0_149], %460 {strides = array<i32>} : memref<16x64xf32, #tpu.memory_space<vmem>>, vector<2x32xf32>,
    %462 = vector.extract_strided_slice %459 {offsets = [0, 32], sizes = [2, 32], strides = [1, 1]} : vector<2x64xf32> to vector<2x32xf32>
    %c4_150 = arith.constant 4 : index
    %c32_151 = arith.constant 32 : index
    %463 = vector.load %arg19[%c4_150, %c32_151] : memref<16x64xf32, #tpu.memory_space<vmem>>, vector<2x32xf32>
    tpu.vector_store %arg19[%c4_150, %c32_151], %462 {strides = array<i32>} : memref<16x64xf32, #tpu.memory_space<vmem>>, vector<2x32xf32>,
    %cst_152 = arith.constant dense<0.000000e+00> : vector<2x256xf32>
    %464 = tpu.matmul %459, %287, %cst_152 {dimension_numbers = #tpu.dot_dimension_numbers<[1], [0], [0], [1], [0, 0, 1, 1], [], []>} : vector<2x64xf32>, vector<64x256xf32>, vector<2x256xf32> -> vector<2x256xf32>
    %465 = vector.extract_strided_slice %286 {offsets = [12, 0], sizes = [2, 256], strides = [1, 1]} : vector<16x256xf32> to vector<2x256xf32>
    %466 = arith.addf %464, %465 : vector<2x256xf32>
    %467 = vector.extract_strided_slice %466 {offsets = [0, 0], sizes = [2, 128], strides = [1, 1]} : vector<2x256xf32> to vector<2x128xf32>
    %468 = arith.negf %467 : vector<2x128xf32>
    %469 = math.exp %468 : vector<2x128xf32>
    %cst_153 = arith.constant 1.000000e+00 : f32
    %470 = vector.broadcast %cst_153 : f32 to vector<2x128xf32>
    %471 = arith.addf %470, %469 : vector<2x128xf32>
    %472 = arith.divf %470, %471 : vector<2x128xf32>
    %473 = vector.extract_strided_slice %466 {offsets = [0, 128], sizes = [2, 128], strides = [1, 1]} : vector<2x256xf32> to vector<2x128xf32>
    %474 = math.tanh %473 : vector<2x128xf32>
    %475 = arith.negf %473 : vector<2x128xf32>
    %476 = math.exp %475 : vector<2x128xf32>
    %cst_154 = arith.constant 1.000000e+00 : f32
    %477 = vector.broadcast %cst_154 : f32 to vector<2x128xf32>
    %478 = arith.addf %477, %476 : vector<2x128xf32>
    %479 = arith.divf %477, %478 : vector<2x128xf32>
    %480 = vector.extract_strided_slice %472 {offsets = [0, 0], sizes = [2, 64], strides = [1, 1]} : vector<2x128xf32> to vector<2x64xf32>
    %481 = vector.extract_strided_slice %472 {offsets = [0, 64], sizes = [2, 64], strides = [1, 1]} : vector<2x128xf32> to vector<2x64xf32>
    %482 = vector.extract_strided_slice %474 {offsets = [0, 0], sizes = [2, 64], strides = [1, 1]} : vector<2x128xf32> to vector<2x64xf32>
    %483 = vector.extract_strided_slice %479 {offsets = [0, 64], sizes = [2, 64], strides = [1, 1]} : vector<2x128xf32> to vector<2x64xf32>
    %484 = arith.mulf %481, %457 : vector<2x64xf32>
    %485 = arith.mulf %480, %482 : vector<2x64xf32>
    %486 = arith.addf %484, %485 : vector<2x64xf32>
    %487 = math.tanh %486 : vector<2x64xf32>
    %488 = arith.mulf %483, %487 : vector<2x64xf32>
    %489 = vector.extract_strided_slice %488 {offsets = [0, 0], sizes = [2, 32], strides = [1, 1]} : vector<2x64xf32> to vector<2x32xf32>
    %c12_155 = arith.constant 12 : index
    %c0_156 = arith.constant 0 : index
    %490 = vector.load %arg19[%c12_155, %c0_156] : memref<16x64xf32, #tpu.memory_space<vmem>>, vector<2x32xf32>
    tpu.vector_store %arg19[%c12_155, %c0_156], %489 {strides = array<i32>} : memref<16x64xf32, #tpu.memory_space<vmem>>, vector<2x32xf32>,
    %491 = vector.extract_strided_slice %488 {offsets = [0, 32], sizes = [2, 32], strides = [1, 1]} : vector<2x64xf32> to vector<2x32xf32>
    %c2_157 = arith.constant 2 : index
    %c32_158 = arith.constant 32 : index
    %492 = vector.load %arg19[%c2_157, %c32_158] : memref<16x64xf32, #tpu.memory_space<vmem>>, vector<2x32xf32>
    tpu.vector_store %arg19[%c2_157, %c32_158], %491 {strides = array<i32>} : memref<16x64xf32, #tpu.memory_space<vmem>>, vector<2x32xf32>,
    %cst_159 = arith.constant dense<0.000000e+00> : vector<2x256xf32>
    %493 = tpu.matmul %488, %287, %cst_159 {dimension_numbers = #tpu.dot_dimension_numbers<[1], [0], [0], [1], [0, 0, 1, 1], [], []>} : vector<2x64xf32>, vector<64x256xf32>, vector<2x256xf32> -> vector<2x256xf32>
    %494 = vector.extract_strided_slice %286 {offsets = [14, 0], sizes = [2, 256], strides = [1, 1]} : vector<16x256xf32> to vector<2x256xf32>
    %495 = arith.addf %493, %494 : vector<2x256xf32>
    %496 = vector.extract_strided_slice %495 {offsets = [0, 0], sizes = [2, 128], strides = [1, 1]} : vector<2x256xf32> to vector<2x128xf32>
    %497 = arith.negf %496 : vector<2x128xf32>
    %498 = math.exp %497 : vector<2x128xf32>
    %cst_160 = arith.constant 1.000000e+00 : f32
    %499 = vector.broadcast %cst_160 : f32 to vector<2x128xf32>
    %500 = arith.addf %499, %498 : vector<2x128xf32>
    %501 = arith.divf %499, %500 : vector<2x128xf32>
    %502 = vector.extract_strided_slice %495 {offsets = [0, 128], sizes = [2, 128], strides = [1, 1]} : vector<2x256xf32> to vector<2x128xf32>
    %503 = math.tanh %502 : vector<2x128xf32>
    %504 = arith.negf %502 : vector<2x128xf32>
    %505 = math.exp %504 : vector<2x128xf32>
    %cst_161 = arith.constant 1.000000e+00 : f32
    %506 = vector.broadcast %cst_161 : f32 to vector<2x128xf32>
    %507 = arith.addf %506, %505 : vector<2x128xf32>
    %508 = arith.divf %506, %507 : vector<2x128xf32>
    %509 = vector.extract_strided_slice %501 {offsets = [0, 0], sizes = [2, 64], strides = [1, 1]} : vector<2x128xf32> to vector<2x64xf32>
    %510 = vector.extract_strided_slice %501 {offsets = [0, 64], sizes = [2, 64], strides = [1, 1]} : vector<2x128xf32> to vector<2x64xf32>
    %511 = vector.extract_strided_slice %503 {offsets = [0, 0], sizes = [2, 64], strides = [1, 1]} : vector<2x128xf32> to vector<2x64xf32>
    %512 = vector.extract_strided_slice %508 {offsets = [0, 64], sizes = [2, 64], strides = [1, 1]} : vector<2x128xf32> to vector<2x64xf32>
    %513 = arith.mulf %510, %486 : vector<2x64xf32>
    %514 = arith.mulf %509, %511 : vector<2x64xf32>
    %515 = arith.addf %513, %514 : vector<2x64xf32>
    %516 = math.tanh %515 : vector<2x64xf32>
    %517 = arith.mulf %512, %516 : vector<2x64xf32>
    %518 = vector.extract_strided_slice %517 {offsets = [0, 0], sizes = [2, 32], strides = [1, 1]} : vector<2x64xf32> to vector<2x32xf32>
    %c14_162 = arith.constant 14 : index
    %c0_163 = arith.constant 0 : index
    %519 = vector.load %arg19[%c14_162, %c0_163] : memref<16x64xf32, #tpu.memory_space<vmem>>, vector<2x32xf32>
    tpu.vector_store %arg19[%c14_162, %c0_163], %518 {strides = array<i32>} : memref<16x64xf32, #tpu.memory_space<vmem>>, vector<2x32xf32>,
    %520 = vector.extract_strided_slice %517 {offsets = [0, 32], sizes = [2, 32], strides = [1, 1]} : vector<2x64xf32> to vector<2x32xf32>
    %c0_164 = arith.constant 0 : index
    %c32_165 = arith.constant 32 : index
    %521 = vector.load %arg19[%c0_164, %c32_165] : memref<16x64xf32, #tpu.memory_space<vmem>>, vector<2x32xf32>
    tpu.vector_store %arg19[%c0_164, %c32_165], %520 {strides = array<i32>} : memref<16x64xf32, #tpu.memory_space<vmem>>, vector<2x32xf32>,
    %c0_166 = arith.constant 0 : index
    %c0_167 = arith.constant 0 : index
    %522 = vector.load %arg19[%c0_166, %c0_167] : memref<16x64xf32, #tpu.memory_space<vmem>>, vector<16x64xf32>
    %c0_168 = arith.constant 0 : index
    %c0_169 = arith.constant 0 : index
    %523 = vector.load %arg11[%c0_168, %c0_169] : memref<1x256xf32, #tpu.memory_space<vmem>>, vector<1x256xf32>
    %524 = vector.extract_strided_slice %522 {offsets = [0, 0], sizes = [2, 64], strides = [1, 1]} : vector<16x64xf32> to vector<2x64xf32>
    %c0_170 = arith.constant 0 : index
    %c0_171 = arith.constant 0 : index
    %525 = vector.load %arg10[%c0_170, %c0_171] : memref<512x256xf32, #tpu.memory_space<vmem>>, vector<64x256xf32>
    %cst_172 = arith.constant dense<0.000000e+00> : vector<2x256xf32>
    %526 = tpu.matmul %524, %525, %cst_172 {dimension_numbers = #tpu.dot_dimension_numbers<[1], [0], [0], [1], [0, 0, 1, 1], [], []>} : vector<2x64xf32>, vector<64x256xf32>, vector<2x256xf32> -> vector<2x256xf32>
    %527 = vector.broadcast %523 : vector<1x256xf32> to vector<2x256xf32>
    %528 = arith.addf %527, %526 : vector<2x256xf32>
    %529 = vector.extract_strided_slice %522 {offsets = [2, 0], sizes = [2, 64], strides = [1, 1]} : vector<16x64xf32> to vector<2x64xf32>
    %c64 = arith.constant 64 : index
    %c0_173 = arith.constant 0 : index
    %530 = vector.load %arg10[%c64, %c0_173] : memref<512x256xf32, #tpu.memory_space<vmem>>, vector<64x256xf32>
    %cst_174 = arith.constant dense<0.000000e+00> : vector<2x256xf32>
    %531 = tpu.matmul %529, %530, %cst_174 {dimension_numbers = #tpu.dot_dimension_numbers<[1], [0], [0], [1], [0, 0, 1, 1], [], []>} : vector<2x64xf32>, vector<64x256xf32>, vector<2x256xf32> -> vector<2x256xf32>
    %532 = arith.addf %528, %531 : vector<2x256xf32>
    %533 = vector.extract_strided_slice %522 {offsets = [4, 0], sizes = [2, 64], strides = [1, 1]} : vector<16x64xf32> to vector<2x64xf32>
    %c128 = arith.constant 128 : index
    %c0_175 = arith.constant 0 : index
    %534 = vector.load %arg10[%c128, %c0_175] : memref<512x256xf32, #tpu.memory_space<vmem>>, vector<64x256xf32>
    %cst_176 = arith.constant dense<0.000000e+00> : vector<2x256xf32>
    %535 = tpu.matmul %533, %534, %cst_176 {dimension_numbers = #tpu.dot_dimension_numbers<[1], [0], [0], [1], [0, 0, 1, 1], [], []>} : vector<2x64xf32>, vector<64x256xf32>, vector<2x256xf32> -> vector<2x256xf32>
    %536 = arith.addf %532, %535 : vector<2x256xf32>
    %537 = vector.extract_strided_slice %522 {offsets = [6, 0], sizes = [2, 64], strides = [1, 1]} : vector<16x64xf32> to vector<2x64xf32>
    %c192 = arith.constant 192 : index
    %c0_177 = arith.constant 0 : index
    %538 = vector.load %arg10[%c192, %c0_177] : memref<512x256xf32, #tpu.memory_space<vmem>>, vector<64x256xf32>
    %cst_178 = arith.constant dense<0.000000e+00> : vector<2x256xf32>
    %539 = tpu.matmul %537, %538, %cst_178 {dimension_numbers = #tpu.dot_dimension_numbers<[1], [0], [0], [1], [0, 0, 1, 1], [], []>} : vector<2x64xf32>, vector<64x256xf32>, vector<2x256xf32> -> vector<2x256xf32>
    %540 = arith.addf %536, %539 : vector<2x256xf32>
    %541 = vector.extract_strided_slice %522 {offsets = [8, 0], sizes = [2, 64], strides = [1, 1]} : vector<16x64xf32> to vector<2x64xf32>
    %c256 = arith.constant 256 : index
    %c0_179 = arith.constant 0 : index
    %542 = vector.load %arg10[%c256, %c0_179] : memref<512x256xf32, #tpu.memory_space<vmem>>, vector<64x256xf32>
    %cst_180 = arith.constant dense<0.000000e+00> : vector<2x256xf32>
    %543 = tpu.matmul %541, %542, %cst_180 {dimension_numbers = #tpu.dot_dimension_numbers<[1], [0], [0], [1], [0, 0, 1, 1], [], []>} : vector<2x64xf32>, vector<64x256xf32>, vector<2x256xf32> -> vector<2x256xf32>
    %544 = arith.addf %540, %543 : vector<2x256xf32>
    %545 = vector.extract_strided_slice %522 {offsets = [10, 0], sizes = [2, 64], strides = [1, 1]} : vector<16x64xf32> to vector<2x64xf32>
    %c320 = arith.constant 320 : index
    %c0_181 = arith.constant 0 : index
    %546 = vector.load %arg10[%c320, %c0_181] : memref<512x256xf32, #tpu.memory_space<vmem>>, vector<64x256xf32>
    %cst_182 = arith.constant dense<0.000000e+00> : vector<2x256xf32>
    %547 = tpu.matmul %545, %546, %cst_182 {dimension_numbers = #tpu.dot_dimension_numbers<[1], [0], [0], [1], [0, 0, 1, 1], [], []>} : vector<2x64xf32>, vector<64x256xf32>, vector<2x256xf32> -> vector<2x256xf32>
    %548 = arith.addf %544, %547 : vector<2x256xf32>
    %549 = vector.extract_strided_slice %522 {offsets = [12, 0], sizes = [2, 64], strides = [1, 1]} : vector<16x64xf32> to vector<2x64xf32>
    %c384 = arith.constant 384 : index
    %c0_183 = arith.constant 0 : index
    %550 = vector.load %arg10[%c384, %c0_183] : memref<512x256xf32, #tpu.memory_space<vmem>>, vector<64x256xf32>
    %cst_184 = arith.constant dense<0.000000e+00> : vector<2x256xf32>
    %551 = tpu.matmul %549, %550, %cst_184 {dimension_numbers = #tpu.dot_dimension_numbers<[1], [0], [0], [1], [0, 0, 1, 1], [], []>} : vector<2x64xf32>, vector<64x256xf32>, vector<2x256xf32> -> vector<2x256xf32>
    %552 = arith.addf %548, %551 : vector<2x256xf32>
    %553 = vector.extract_strided_slice %522 {offsets = [14, 0], sizes = [2, 64], strides = [1, 1]} : vector<16x64xf32> to vector<2x64xf32>
    %c448 = arith.constant 448 : index
    %c0_185 = arith.constant 0 : index
    %554 = vector.load %arg10[%c448, %c0_185] : memref<512x256xf32, #tpu.memory_space<vmem>>, vector<64x256xf32>
    %cst_186 = arith.constant dense<0.000000e+00> : vector<2x256xf32>
    %555 = tpu.matmul %553, %554, %cst_186 {dimension_numbers = #tpu.dot_dimension_numbers<[1], [0], [0], [1], [0, 0, 1, 1], [], []>} : vector<2x64xf32>, vector<64x256xf32>, vector<2x256xf32> -> vector<2x256xf32>
    %556 = arith.addf %552, %555 : vector<2x256xf32>
    %cst_187 = arith.constant 0.000000e+00 : f32
    %557 = vector.broadcast %cst_187 : f32 to vector<2x256xf32>
    %558 = arith.maximumf %556, %557 : vector<2x256xf32>
    %c0_188 = arith.constant 0 : index
    %c0_189 = arith.constant 0 : index
    %559 = vector.load %arg12[%c0_188, %c0_189] : memref<256x128xf32, #tpu.memory_space<vmem>>, vector<256x128xf32>
    %cst_190 = arith.constant dense<0.000000e+00> : vector<2x128xf32>
    %560 = tpu.matmul %558, %559, %cst_190 {dimension_numbers = #tpu.dot_dimension_numbers<[1], [0], [0], [1], [0, 0, 1, 1], [], []>} : vector<2x256xf32>, vector<256x128xf32>, vector<2x128xf32> -> vector<2x128xf32>
    %c0_191 = arith.constant 0 : index
    %c0_192 = arith.constant 0 : index
    %561 = vector.load %arg13[%c0_191, %c0_192] : memref<1x128xf32, #tpu.memory_space<vmem>>, vector<1x128xf32>
    %562 = vector.broadcast %561 : vector<1x128xf32> to vector<2x128xf32>
    %563 = arith.addf %560, %562 : vector<2x128xf32>
    %cst_193 = arith.constant 0.000000e+00 : f32
    %564 = vector.broadcast %cst_193 : f32 to vector<2x128xf32>
    %565 = arith.maximumf %563, %564 : vector<2x128xf32>
    %c0_194 = arith.constant 0 : index
    %c0_195 = arith.constant 0 : index
    %566 = vector.load %arg14[%c0_194, %c0_195] : memref<128x64xf32, #tpu.memory_space<vmem>>, vector<128x64xf32>
    %cst_196 = arith.constant dense<0.000000e+00> : vector<2x64xf32>
    %567 = tpu.matmul %565, %566, %cst_196 {dimension_numbers = #tpu.dot_dimension_numbers<[1], [0], [0], [1], [0, 0, 1, 1], [], []>} : vector<2x128xf32>, vector<128x64xf32>, vector<2x64xf32> -> vector<2x64xf32>
    %c0_197 = arith.constant 0 : index
    %c0_198 = arith.constant 0 : index
    %568 = vector.load %arg15[%c0_197, %c0_198] : memref<1x64xf32, #tpu.memory_space<vmem>>, vector<1x64xf32>
    %569 = vector.broadcast %568 : vector<1x64xf32> to vector<2x64xf32>
    %570 = arith.addf %567, %569 : vector<2x64xf32>
    %cst_199 = arith.constant 0.000000e+00 : f32
    %571 = vector.broadcast %cst_199 : f32 to vector<2x64xf32>
    %572 = arith.maximumf %570, %571 : vector<2x64xf32>
    %c0_200 = arith.constant 0 : index
    %c0_201 = arith.constant 0 : index
    %573 = vector.load %arg16[%c0_200, %c0_201] : memref<1x64xf32, #tpu.memory_space<vmem>>, vector<1x64xf32>
    %574 = vector.broadcast %573 : vector<1x64xf32> to vector<2x64xf32>
    %575 = arith.mulf %572, %574 : vector<2x64xf32>
    %cst_202 = arith.constant dense<0.000000e+00> : vector<2xf32>
    %576 = vector.multi_reduction <add>, %575, %cst_202 [1] : vector<2x64xf32> to vector<2xf32>
    %577 = vector.shape_cast %576 : vector<2xf32> to vector<2x1xf32>
    %c0_203 = arith.constant 0 : index
    %c0_204 = arith.constant 0 : index
    %578 = vector.load %arg17[%c0_203, %c0_204] : memref<1x1xf32, #tpu.memory_space<vmem>>, vector<1x1xf32>
    %579 = vector.broadcast %578 : vector<1x1xf32> to vector<2x1xf32>
    %580 = arith.addf %577, %579 : vector<2x1xf32>
    %c0_205 = arith.constant 0 : index
    %c0_206 = arith.constant 0 : index
    %581 = vector.load %arg18[%c0_205, %c0_206] : memref<2x1xf32, #tpu.memory_space<vmem>>, vector<2x1xf32>
    tpu.vector_store %arg18[%c0_205, %c0_206], %580 {strides = array<i32>} : memref<2x1xf32, #tpu.memory_space<vmem>>, vector<2x1xf32>,
    return
  }
}

</mosaic_0001>

<llo_original>
// kernel: bilstm_forward.1
$region0: #{bilstm_forward.1}
  #allocation0 [shape = 'u32[]', space=smem, size = 0x4, offset = 0x4, fixed_abs, tag = 'smem constant byte address 0x4 - core index']
  #allocation1 [shape = 'u32[144,128]{1,0:T(1,128)}', space=vmem, size = 0x12000, scoped, tag = 'internal scratch']
  #allocation2 [shape = 'f32[16,64]{1,0:T(8,128)}', space=vmem, size = 0x2000, scoped, tag = 'scratch operand']
  #allocation3 [shape = 'f32[16,64]{1,0:T(8,128)}', space=vmem, size = 0x2000, scoped, tag = 'scratch operand']
  #allocation4 [shape = 'f32[1,1]{1,0:T(1,128)S(1)}', space=vmem, size = 0x200, scoped, tag = 'scoped memory for bilstm_forward.1']
  %s0 = inlined_call_operand.vmem [shape: f32[16,8], index: 0, kind: input, shape index: {}]
  %s1 = inlined_call_operand.vmem [shape: f32[16,8], index: 1, kind: input, shape index: {}]
  %s2 = inlined_call_operand.vmem [shape: f32[8,256], index: 2, kind: input, shape index: {}]
  %s3 = inlined_call_operand.vmem [shape: f32[8,256], index: 3, kind: input, shape index: {}]
  %s4 = inlined_call_operand.hbm [shape: f32[64,256], index: 4, kind: input, shape index: {}]
  %s5 = inlined_call_operand.vmem [shape: f32[1,256], index: 5, kind: input, shape index: {}]
  %s6 = inlined_call_operand.hbm [shape: f32[64,256], index: 6, kind: input, shape index: {}]
  %s7 = inlined_call_operand.hbm [shape: f32[64,256], index: 7, kind: input, shape index: {}]
  %s8 = inlined_call_operand.hbm [shape: f32[64,256], index: 8, kind: input, shape index: {}]
  %s9 = inlined_call_operand.vmem [shape: f32[1,256], index: 9, kind: input, shape index: {}]
  %s10 = inlined_call_operand.hbm [shape: f32[512,256], index: 10, kind: input, shape index: {}]
  %s11 = inlined_call_operand.vmem [shape: f32[1,256], index: 11, kind: input, shape index: {}]
  %s12 = inlined_call_operand.vmem [shape: f32[256,128], index: 12, kind: input, shape index: {}]
  %s13 = inlined_call_operand.vmem [shape: f32[1,128], index: 13, kind: input, shape index: {}]
  %s14 = inlined_call_operand.vmem [shape: f32[128,64], index: 14, kind: input, shape index: {}]
  %s15 = inlined_call_operand.vmem [shape: f32[1,64], index: 15, kind: input, shape index: {}]
  %s16 = inlined_call_operand.vmem [shape: f32[1,64], index: 16, kind: input, shape index: {}]
  %s17 = inlined_call_operand.<no memory space> [shape: f32[1,1], index: 17, kind: input, shape index: {}]
  %s18 = inlined_call_operand.vmem [shape: f32[2,1], index: 18, kind: output, shape index: {}]
  %s19 = sld [smem:[#allocation0]]
  $region102: #{bilstm_forward.1} parent=0
    _
  %s21 = ssub.s32 1, %s19
  %s22 = scalar_select 0, %s21, %s19
  %v23 = vstv %s17
  %24 = vst [vmem:[#allocation4] sm:$0x1] %v23
  $region1: #{bilstm_forward.1} parent=0
    #allocation5 [shape = 'u8[65536]{0}', space=vmem, size = 0x10000, scoped, tag = 'input window, operand 4, single buffered']
    #allocation6 [shape = 's32[1]{0}', space=sflag, size = 0x4, scoped, tag = 'scoped memory for bilstm_forward.1']
    #allocation7 [shape = 'u8[65536]{0}', space=vmem, size = 0x10000, scoped, tag = 'input window, operand 6, single buffered']
    #allocation8 [shape = 's32[1]{0}', space=sflag, size = 0x4, scoped, tag = 'scoped memory for bilstm_forward.1']
    #allocation9 [shape = 'u8[65536]{0}', space=vmem, size = 0x10000, scoped, tag = 'input window, operand 7, single buffered']
    #allocation10 [shape = 'u8[65536]{0}', space=vmem, size = 0x10000, scoped, tag = 'input window, operand 8, single buffered']
    #allocation11 [shape = 's32[1]{0}', space=sflag, size = 0x4, scoped, tag = 'scoped memory for bilstm_forward.1']
    #allocation12 [shape = 'u8[524288]{0}', space=vmem, size = 0x80000, scoped, tag = 'input window, operand 10, single buffered']
    %25 = vsyncpa [#allocation6], 0
    %26 = vsyncpa [#allocation8], 0
    %27 = vsyncpa [#allocation11], 0
    // Predicated region
    $region2: #{bilstm_forward.1} parent=1 // pred_check
      _
    $region3: #{bilstm_forward.1} parent=1 // pred_check_branch
      %29 = sbr.rel (0) target = $region5
    $region4: #{bilstm_forward.1} parent=1 // pred_region
      _
    $region5: #{bilstm_forward.1} parent=1 // pred_fallthru
      _
    // Predicated region
    $region6: #{bilstm_forward.1} parent=1 // pred_check
      _
    $region7: #{bilstm_forward.1} parent=1 // pred_check_branch
      %31 = sbr.rel (0) target = $region9
    $region8: #{bilstm_forward.1} parent=1 // pred_region
      _
    $region9: #{bilstm_forward.1} parent=1 // pred_fallthru
      _
    // Predicated region
    $region10: #{bilstm_forward.1} parent=1 // pred_check
      _
    $region11: #{bilstm_forward.1} parent=1 // pred_check_branch
      %33 = sbr.rel (0) target = $region13
    $region12: #{bilstm_forward.1} parent=1 // pred_region
      _
    $region13: #{bilstm_forward.1} parent=1 // pred_fallthru
      _
    // Predicated region
    $region14: #{bilstm_forward.1} parent=1 // pred_check
      _
    $region15: #{bilstm_forward.1} parent=1 // pred_check_branch
      %35 = sbr.rel (0) target = $region17
    $region16: #{bilstm_forward.1} parent=1 // pred_region
      _
    $region17: #{bilstm_forward.1} parent=1 // pred_fallthru
      _
    // Predicated region
    $region18: #{bilstm_forward.1} parent=1 // pred_check
      _
    $region19: #{bilstm_forward.1} parent=1 // pred_check_branch
      %37 = sbr.rel (0) target = $region21
    $region20: #{bilstm_forward.1} parent=1 // pred_region
      %s39 = ssub.s32 2048, 2048
      %40 = vsyncadd [#allocation6], %s39
      %s41 = sshll.u32 [#allocation5], 4
      %s42 = int_to_ptr.vmem [resolvable:$true] %s41
      %47 = dma.hbm_to_vmem [thread:$0]  %s4, 2048, %s42, [#allocation6], 256, 256, 16
    $region21: #{bilstm_forward.1} parent=1 // pred_fallthru
      _
    // Predicated region
    $region22: #{bilstm_forward.1} parent=1 // pred_check
      _
    $region23: #{bilstm_forward.1} parent=1 // pred_check_branch
      %49 = sbr.rel (0) target = $region25
    $region24: #{bilstm_forward.1} parent=1 // pred_region
      _
    $region25: #{bilstm_forward.1} parent=1 // pred_fallthru
      _
    // Predicated region
    $region26: #{bilstm_forward.1} parent=1 // pred_check
      _
    $region27: #{bilstm_forward.1} parent=1 // pred_check_branch
      %51 = sbr.rel (0) target = $region29
    $region28: #{bilstm_forward.1} parent=1 // pred_region
      %s53 = ssub.s32 2048, 2048
      %54 = vsyncadd [#allocation8], %s53
      %s55 = sshll.u32 [#allocation7], 4
      %s56 = int_to_ptr.vmem [resolvable:$true] %s55
      %61 = dma.hbm_to_vmem [thread:$0]  %s6, 2048, %s56, [#allocation8], 256, 256, 16
    $region29: #{bilstm_forward.1} parent=1 // pred_fallthru
      _
    // Predicated region
    $region30: #{bilstm_forward.1} parent=1 // pred_check
      _
    $region31: #{bilstm_forward.1} parent=1 // pred_check_branch
      %63 = sbr.rel (0) target = $region33
    $region32: #{bilstm_forward.1} parent=1 // pred_region
      %s65 = ssub.s32 2048, 2048
      %66 = vsyncadd [#allocation8], %s65
      %s67 = sshll.u32 [#allocation9], 4
      %s68 = int_to_ptr.vmem [resolvable:$true] %s67
      %73 = dma.hbm_to_vmem [thread:$0]  %s7, 2048, %s68, [#allocation8], 256, 256, 16
    $region33: #{bilstm_forward.1} parent=1 // pred_fallthru
      _
    // Predicated region
    $region34: #{bilstm_forward.1} parent=1 // pred_check
      _
    $region35: #{bilstm_forward.1} parent=1 // pred_check_branch
      %75 = sbr.rel (0) target = $region37
    $region36: #{bilstm_forward.1} parent=1 // pred_region
      %s77 = ssub.s32 2048, 2048
      %78 = vsyncadd [#allocation11], %s77
      %s79 = sshll.u32 [#allocation10], 4
      %s80 = int_to_ptr.vmem [resolvable:$true] %s79
      %85 = dma.hbm_to_vmem [thread:$0]  %s8, 2048, %s80, [#allocation11], 256, 256, 16
    $region37: #{bilstm_forward.1} parent=1 // pred_fallthru
      _
    // Predicated region
    $region38: #{bilstm_forward.1} parent=1 // pred_check
      _
    $region39: #{bilstm_forward.1} parent=1 // pred_check_branch
      %87 = sbr.rel (0) target = $region41
    $region40: #{bilstm_forward.1} parent=1 // pred_region
      _
    $region41: #{bilstm_forward.1} parent=1 // pred_fallthru
      _
    // Predicated region
    $region42: #{bilstm_forward.1} parent=1 // pred_check
      _
    $region43: #{bilstm_forward.1} parent=1 // pred_check_branch
      %89 = sbr.rel (0) target = $region45
    $region44: #{bilstm_forward.1} parent=1 // pred_region
      %s91 = ssub.s32 16384, 16384
      %92 = vsyncadd [#allocation11], %s91
      %s93 = sshll.u32 [#allocation12], 4
      %s94 = int_to_ptr.vmem [resolvable:$true] %s93
      %99 = dma.hbm_to_vmem [thread:$0]  %s10, 16384, %s94, [#allocation11], 256, 256, 16
    $region45: #{bilstm_forward.1} parent=1 // pred_fallthru
      _
    // Predicated region
    $region46: #{bilstm_forward.1} parent=1 // pred_check
      _
    $region47: #{bilstm_forward.1} parent=1 // pred_check_branch
      %101 = sbr.rel (0) target = $region49
    $region48: #{bilstm_forward.1} parent=1 // pred_region
      _
    $region49: #{bilstm_forward.1} parent=1 // pred_fallthru
      _
    // Predicated region
    $region50: #{bilstm_forward.1} parent=1 // pred_check
      _
    $region51: #{bilstm_forward.1} parent=1 // pred_check_branch
      %103 = sbr.rel (0) target = $region53
    $region52: #{bilstm_forward.1} parent=1 // pred_region
      _
    $region53: #{bilstm_forward.1} parent=1 // pred_fallthru
      _
    // Predicated region
    $region54: #{bilstm_forward.1} parent=1 // pred_check
      _
    $region55: #{bilstm_forward.1} parent=1 // pred_check_branch
      %105 = sbr.rel (0) target = $region57
    $region56: #{bilstm_forward.1} parent=1 // pred_region
      _
    $region57: #{bilstm_forward.1} parent=1 // pred_fallthru
      _
    // Predicated region
    $region58: #{bilstm_forward.1} parent=1 // pred_check
      _
    $region59: #{bilstm_forward.1} parent=1 // pred_check_branch
      %107 = sbr.rel (0) target = $region61
    $region60: #{bilstm_forward.1} parent=1 // pred_region
      _
    $region61: #{bilstm_forward.1} parent=1 // pred_fallthru
      _
    // Predicated region
    $region62: #{bilstm_forward.1} parent=1 // pred_check
      _
    $region63: #{bilstm_forward.1} parent=1 // pred_check_branch
      %109 = sbr.rel (0) target = $region65
    $region64: #{bilstm_forward.1} parent=1 // pred_region
      _
    $region65: #{bilstm_forward.1} parent=1 // pred_fallthru
      _
    // Predicated region
    $region66: #{bilstm_forward.1} parent=1 // pred_check
      _
    $region67: #{bilstm_forward.1} parent=1 // pred_check_branch
      %111 = sbr.rel (0) target = $region69
    $region68: #{bilstm_forward.1} parent=1 // pred_region
      _
    $region69: #{bilstm_forward.1} parent=1 // pred_fallthru
      _
    // Predicated region
    $region70: #{bilstm_forward.1} parent=1 // pred_check
      _
    $region71: #{bilstm_forward.1} parent=1 // pred_check_branch
      %113 = sbr.rel (0) target = $region73
    $region72: #{bilstm_forward.1} parent=1 // pred_region
      _
    $region73: #{bilstm_forward.1} parent=1 // pred_fallthru
      _
    // Predicated region
    $region74: #{bilstm_forward.1} parent=1 // pred_check
      _
    $region75: #{bilstm_forward.1} parent=1 // pred_check_branch
      %115 = sbr.rel (0) target = $region77
    $region76: #{bilstm_forward.1} parent=1 // pred_region
      %116 = dma.done [#allocation6], 2048
    $region77: #{bilstm_forward.1} parent=1 // pred_fallthru
      _
    // Predicated region
    $region78: #{bilstm_forward.1} parent=1 // pred_check
      _
    $region79: #{bilstm_forward.1} parent=1 // pred_check_branch
      %118 = sbr.rel (0) target = $region81
    $region80: #{bilstm_forward.1} parent=1 // pred_region
      %119 = dma.done [#allocation8], 2048
    $region81: #{bilstm_forward.1} parent=1 // pred_fallthru
      _
    // Predicated region
    $region82: #{bilstm_forward.1} parent=1 // pred_check
      _
    $region83: #{bilstm_forward.1} parent=1 // pred_check_branch
      %121 = sbr.rel (0) target = $region85
    $region84: #{bilstm_forward.1} parent=1 // pred_region
      %122 = dma.done [#allocation8], 2048
    $region85: #{bilstm_forward.1} parent=1 // pred_fallthru
      _
    // Predicated region
    $region86: #{bilstm_forward.1} parent=1 // pred_check
      _
    $region87: #{bilstm_forward.1} parent=1 // pred_check_branch
      %124 = sbr.rel (0) target = $region89
    $region88: #{bilstm_forward.1} parent=1 // pred_region
      %125 = dma.done [#allocation11], 2048
    $region89: #{bilstm_forward.1} parent=1 // pred_fallthru
      _
    // Predicated region
    $region90: #{bilstm_forward.1} parent=1 // pred_check
      _
    $region91: #{bilstm_forward.1} parent=1 // pred_check_branch
      %127 = sbr.rel (0) target = $region93
    $region92: #{bilstm_forward.1} parent=1 // pred_region
      %128 = dma.done [#allocation11], 16384
    $region93: #{bilstm_forward.1} parent=1 // pred_fallthru
      _
    %v129 = vld [vmem:[%s0] sm:$0xff]
    %v130 = vld [vmem:[%s0 + $0x8] sm:$0xff]
    %v131 = vld [vmem:[%s1] sm:$0xff]
    %v132 = vld [vmem:[%s1 + $0x8] sm:$0xff]
    %v133 = vld [vmem:[%s2] sm:$0xff]
    %v134 = vld [vmem:[%s2 + $0x8] sm:$0xff]
    %v135 = vld [vmem:[%s3] sm:$0xff]
    %v136 = vld [vmem:[%s3 + $0x8] sm:$0xff]
    %vm137 = vcmask 64512
    %v139 = vsel %vm137, %v131, 0
    %v142 = vsel %vm137, %v132, 0
    %144 = vmatprep.subr.mxu0 %v136
    %145 = vmatpush1.msra.mxu0 %v135
    %146 = vmatprep.subr.mxu0 0.0
    %147 = vmatpush1.msra.mxu0 0.0
    %148 = vmatprep.subr.mxu0 0.0
    %149 = vmatpush1.msra.mxu0 0.0
    %150 = vmatprep.subr.mxu0 0.0
    %151 = vmatpush1.msra.mxu0 0.0
    %152 = vmatprep.subr.mxu0 0.0
    %153 = vmatpush1.msra.mxu0 0.0
    %154 = vmatprep.subr.mxu0 0.0
    %155 = vmatpush1.msra.mxu0 0.0
    %156 = vmatprep.subr.mxu0 0.0
    %157 = vmatpush1.msra.mxu0 0.0
    %158 = vmatprep.subr.mxu0 0.0
    %159 = vmatpush1.msra.mxu0 0.0
    %160 = vmatprep.subr.mxu0 0.0
    %161 = vmatpush1.msra.mxu0 0.0
    %162 = vmatprep.subr.mxu0 0.0
    %163 = vmatpush1.msra.mxu0 0.0
    %164 = vmatprep.subr.mxu0 0.0
    %165 = vmatpush1.msra.mxu0 0.0
    %166 = vmatprep.subr.mxu0 0.0
    %167 = vmatpush1.msra.mxu0 0.0
    %168 = vmatprep.subr.mxu0 0.0
    %169 = vmatpush1.msra.mxu0 0.0
    %170 = vmatprep.subr.mxu0 0.0
    %171 = vmatpush1.msra.mxu0 0.0
    %172 = vmatprep.subr.mxu0 0.0
    %173 = vmatpush1.msra.mxu0 0.0
    %174 = vmatprep.subr.mxu0 0.0
    %175 = vmatpush1.msra.mxu0 0.0
    %176 = vmatprep.subr.mxu0 0.0
    %177 = vmatpush1.msra.mxu0 0.0
    %178 = vmatprep.subr.mxu0 0.0
    %179 = vmatpush1.msra.mxu0 0.0
    %180 = vmatprep.subr.mxu0 0.0
    %181 = vmatpush1.msra.mxu0 0.0
    %182 = vmatprep.subr.mxu0 0.0
    %183 = vmatpush1.msra.mxu0 0.0
    %184 = vmatprep.subr.mxu0 0.0
    %185 = vmatpush1.msra.mxu0 0.0
    %186 = vmatprep.subr.mxu0 0.0
    %187 = vmatpush1.msra.mxu0 0.0
    %188 = vmatprep.subr.mxu0 0.0
    %189 = vmatpush1.msra.mxu0 0.0
    %190 = vmatprep.subr.mxu0 0.0
    %191 = vmatpush1.msra.mxu0 0.0
    %192 = vmatprep.subr.mxu0 0.0
    %193 = vmatpush1.msra.mxu0 0.0
    %194 = vmatprep.subr.mxu0 0.0
    %195 = vmatpush1.msra.mxu0 0.0
    %196 = vmatprep.subr.mxu0 0.0
    %197 = vmatpush1.msra.mxu0 0.0
    %198 = vmatprep.subr.mxu0 0.0
    %199 = vmatpush1.msra.mxu0 0.0
    %200 = vmatprep.subr.mxu0 0.0
    %201 = vmatpush1.msra.mxu0 0.0
    %202 = vmatprep.subr.mxu0 0.0
    %203 = vmatpush1.msra.mxu0 0.0
    %204 = vmatprep.subr.mxu0 0.0
    %205 = vmatpush1.msra.mxu0 0.0
    %206 = vmatprep.subr.mxu0 0.0
    %207 = vmatpush1.msra.mxu0 0.0
    %208 = vmatprep.mubr.f32.mxu0 0.0
    %209 = vmatmul.mubr.f32.gmra.mrb[0].mxu0 %v139
    %v210 = vpop.f32.mrb[0].mxu0
    %v211 = vadd.f32 0.0, %v210
    %v212 = vpop.f32.mrb[0].mxu0
    %v213 = vadd.f32 0.0, %v212
    %214 = vmatprep.mubr.f32.mxu0 0.0
    %215 = vmatmul.mubr.f32.gmra.mrb[0].mxu0 %v142
    %v216 = vpop.f32.mrb[0].mxu0
    %v217 = vadd.f32 0.0, %v216
    %v218 = vpop.f32.mrb[0].mxu0
    %v219 = vadd.f32 0.0, %v218
    %220 = vdwg.mxu0
    %v222 = vsel %vm137, %v129, 0
    %v225 = vsel %vm137, %v130, 0
    %227 = vmatprep.subr.mxu0 %v134
    %228 = vmatpush1.msra.mxu0 %v133
    %229 = vmatprep.subr.mxu0 0.0
    %230 = vmatpush1.msra.mxu0 0.0
    %231 = vmatprep.subr.mxu0 0.0
    %232 = vmatpush1.msra.mxu0 0.0
    %233 = vmatprep.subr.mxu0 0.0
    %234 = vmatpush1.msra.mxu0 0.0
    %235 = vmatprep.subr.mxu0 0.0
    %236 = vmatpush1.msra.mxu0 0.0
    %237 = vmatprep.subr.mxu0 0.0
    %238 = vmatpush1.msra.mxu0 0.0
    %239 = vmatprep.subr.mxu0 0.0
    %240 = vmatpush1.msra.mxu0 0.0
    %241 = vmatprep.subr.mxu0 0.0
    %242 = vmatpush1.msra.mxu0 0.0
    %243 = vmatprep.subr.mxu0 0.0
    %244 = vmatpush1.msra.mxu0 0.0
    %245 = vmatprep.subr.mxu0 0.0
    %246 = vmatpush1.msra.mxu0 0.0
    %247 = vmatprep.subr.mxu0 0.0
    %248 = vmatpush1.msra.mxu0 0.0
    %249 = vmatprep.subr.mxu0 0.0
    %250 = vmatpush1.msra.mxu0 0.0
    %251 = vmatprep.subr.mxu0 0.0
    %252 = vmatpush1.msra.mxu0 0.0
    %253 = vmatprep.subr.mxu0 0.0
    %254 = vmatpush1.msra.mxu0 0.0
    %255 = vmatprep.subr.mxu0 0.0
    %256 = vmatpush1.msra.mxu0 0.0
    %257 = vmatprep.subr.mxu0 0.0
    %258 = vmatpush1.msra.mxu0 0.0
    %259 = vmatprep.subr.mxu0 0.0
    %260 = vmatpush1.msra.mxu0 0.0
    %261 = vmatprep.subr.mxu0 0.0
    %262 = vmatpush1.msra.mxu0 0.0
    %263 = vmatprep.subr.mxu0 0.0
    %264 = vmatpush1.msra.mxu0 0.0
    %265 = vmatprep.subr.mxu0 0.0
    %266 = vmatpush1.msra.mxu0 0.0
    %267 = vmatprep.subr.mxu0 0.0
    %268 = vmatpush1.msra.mxu0 0.0
    %269 = vmatprep.subr.mxu0 0.0
    %270 = vmatpush1.msra.mxu0 0.0
    %271 = vmatprep.subr.mxu0 0.0
    %272 = vmatpush1.msra.mxu0 0.0
    %273 = vmatprep.subr.mxu0 0.0
    %274 = vmatpush1.msra.mxu0 0.0
    %275 = vmatprep.subr.mxu0 0.0
    %276 = vmatpush1.msra.mxu0 0.0
    %277 = vmatprep.subr.mxu0 0.0
    %278 = vmatpush1.msra.mxu0 0.0
    %279 = vmatprep.subr.mxu0 0.0
    %280 = vmatpush1.msra.mxu0 0.0
    %281 = vmatprep.subr.mxu0 0.0
    %282 = vmatpush1.msra.mxu0 0.0
    %283 = vmatprep.subr.mxu0 0.0
    %284 = vmatpush1.msra.mxu0 0.0
    %285 = vmatprep.subr.mxu0 0.0
    %286 = vmatpush1.msra.mxu0 0.0
    %287 = vmatprep.subr.mxu0 0.0
    %288 = vmatpush1.msra.mxu0 0.0
    %289 = vmatprep.subr.mxu0 0.0
    %290 = vmatpush1.msra.mxu0 0.0
    %291 = vmatprep.mubr.f32.mxu0 0.0
    %292 = vmatmul.mubr.f32.gmra.mrb[0].mxu0 %v222
    %v293 = vpop.f32.mrb[0].mxu0
    %v294 = vadd.f32 %v211, %v293
    %v295 = vpop.f32.mrb[0].mxu0
    %v296 = vadd.f32 %v213, %v295
    %297 = vmatprep.mubr.f32.mxu0 0.0
    %298 = vmatmul.mubr.f32.gmra.mrb[0].mxu0 %v225
    %v299 = vpop.f32.mrb[0].mxu0
    %v300 = vadd.f32 %v217, %v299
    %v301 = vpop.f32.mrb[0].mxu0
    %v302 = vadd.f32 %v219, %v301
    %303 = vdwg.mxu0
    %v304 = vld [vmem:[%s5] sm:$0x3]
    %v306 = vlaneseq
    %v307 = vshrl.u32 %v306, 7
    %v308 = vsub.s32 0, %v307
    %v309 = vrot.slane %v304, %v308
    %v310 = vlaneseq
    %v311 = vshrl.u32 %v310, 7
    %v312 = vsub.s32 1, %v311
    %v313 = vrot.slane %v304, %v312
    %v316 = vadd.f32 %v294, %v309
    %v317 = vadd.f32 %v296, %v313
    %v318 = vadd.f32 %v300, %v309
    %v319 = vadd.f32 %v302, %v313
    %v320 = vld [vmem:[#allocation5] sm:$0xff]
    %v321 = vld [vmem:[#allocation5 + $0x8] sm:$0xff]
    %v322 = vld [vmem:[#allocation5 + $0x10] sm:$0xff]
    %v323 = vld [vmem:[#allocation5 + $0x18] sm:$0xff]
    %v324 = vld [vmem:[#allocation5 + $0x20] sm:$0xff]
    %v325 = vld [vmem:[#allocation5 + $0x28] sm:$0xff]
    %v326 = vld [vmem:[#allocation5 + $0x30] sm:$0xff]
    %v327 = vld [vmem:[#allocation5 + $0x38] sm:$0xff]
    %v328 = vld [vmem:[#allocation5 + $0x40] sm:$0xff]
    %v329 = vld [vmem:[#allocation5 + $0x48] sm:$0xff]
    %v330 = vld [vmem:[#allocation5 + $0x50] sm:$0xff]
    %v331 = vld [vmem:[#allocation5 + $0x58] sm:$0xff]
    %v332 = vld [vmem:[#allocation5 + $0x60] sm:$0xff]
    %v333 = vld [vmem:[#allocation5 + $0x68] sm:$0xff]
    %v334 = vld [vmem:[#allocation5 + $0x70] sm:$0xff]
    %v335 = vld [vmem:[#allocation5 + $0x78] sm:$0xff]
    %vm336 = vcmask 523264
    %v338 = vsel %vm336, 0.0, 0
    %340 = vmatprep.subr.mxu0 %v321
    %341 = vmatpush1.msra.mxu0 %v320
    %342 = vmatprep.subr.mxu0 %v323
    %343 = vmatpush1.msra.mxu0 %v322
    %344 = vmatprep.subr.mxu0 %v325
    %345 = vmatpush1.msra.mxu0 %v324
    %346 = vmatprep.subr.mxu0 %v327
    %347 = vmatpush1.msra.mxu0 %v326
    %348 = vmatprep.subr.mxu0 %v329
    %349 = vmatpush1.msra.mxu0 %v328
    %350 = vmatprep.subr.mxu0 %v331
    %351 = vmatpush1.msra.mxu0 %v330
    %352 = vmatprep.subr.mxu0 %v333
    %353 = vmatpush1.msra.mxu0 %v332
    %354 = vmatprep.subr.mxu0 %v335
    %355 = vmatpush1.msra.mxu0 %v334
    %356 = vmatprep.subr.mxu0 0.0
    %357 = vmatpush1.msra.mxu0 0.0
    %358 = vmatprep.subr.mxu0 0.0
    %359 = vmatpush1.msra.mxu0 0.0
    %360 = vmatprep.subr.mxu0 0.0
    %361 = vmatpush1.msra.mxu0 0.0
    %362 = vmatprep.subr.mxu0 0.0
    %363 = vmatpush1.msra.mxu0 0.0
    %364 = vmatprep.subr.mxu0 0.0
    %365 = vmatpush1.msra.mxu0 0.0
    %366 = vmatprep.subr.mxu0 0.0
    %367 = vmatpush1.msra.mxu0 0.0
    %368 = vmatprep.subr.mxu0 0.0
    %369 = vmatpush1.msra.mxu0 0.0
    %370 = vmatprep.subr.mxu0 0.0
    %371 = vmatpush1.msra.mxu0 0.0
    %372 = vmatprep.subr.mxu0 0.0
    %373 = vmatpush1.msra.mxu0 0.0
    %374 = vmatprep.subr.mxu0 0.0
    %375 = vmatpush1.msra.mxu0 0.0
    %376 = vmatprep.subr.mxu0 0.0
    %377 = vmatpush1.msra.mxu0 0.0
    %378 = vmatprep.subr.mxu0 0.0
    %379 = vmatpush1.msra.mxu0 0.0
    %380 = vmatprep.subr.mxu0 0.0
    %381 = vmatpush1.msra.mxu0 0.0
    %382 = vmatprep.subr.mxu0 0.0
    %383 = vmatpush1.msra.mxu0 0.0
    %384 = vmatprep.subr.mxu0 0.0
    %385 = vmatpush1.msra.mxu0 0.0
    %386 = vmatprep.subr.mxu0 0.0
    %387 = vmatpush1.msra.mxu0 0.0
    %388 = vmatprep.subr.mxu0 0.0
    %389 = vmatpush1.msra.mxu0 0.0
    %390 = vmatprep.subr.mxu0 0.0
    %391 = vmatpush1.msra.mxu0 0.0
    %392 = vmatprep.subr.mxu0 0.0
    %393 = vmatpush1.msra.mxu0 0.0
    %394 = vmatprep.subr.mxu0 0.0
    %395 = vmatpush1.msra.mxu0 0.0
    %396 = vmatprep.subr.mxu0 0.0
    %397 = vmatpush1.msra.mxu0 0.0
    %398 = vmatprep.subr.mxu0 0.0
    %399 = vmatpush1.msra.mxu0 0.0
    %400 = vmatprep.subr.mxu0 0.0
    %401 = vmatpush1.msra.mxu0 0.0
    %402 = vmatprep.subr.mxu0 0.0
    %403 = vmatpush1.msra.mxu0 0.0
    %404 = vmatprep.mubr.f32.mxu0 0.0
    %405 = vmatmul.mubr.f32.gmra.mrb[0].mxu0 %v338
    %v406 = vpop.f32.mrb[0].mxu0
    %v407 = vadd.f32 %v316, %v406
    %v408 = vpop.f32.mrb[0].mxu0
    %v409 = vadd.f32 %v317, %v408
    %410 = vdwg.mxu0
    %v411 = vxor.u32 %v407, 2147483648
    %v412 = vmul.f32 %v411, 1.442695
    %v413 = vpow.pop %v412
    %v414 = vadd.f32 %v413, 1.0
    %v415 = vrcp.pop %v414
    %v416 = vmul.f32 1.0, %v415
    %v417 = vtanh.pop %v409
    %v418 = vxor.u32 %v409, 2147483648
    %v419 = vmul.f32 %v418, 1.442695
    %v420 = vpow.pop %v419
    %v421 = vadd.f32 %v420, 1.0
    %v422 = vrcp.pop %v421
    %v423 = vmul.f32 1.0, %v422
    %v424 = vmul.f32 %v416, 0.0
    %v425 = vmul.f32 %v416, %v417
    %427 = vrot.lane.b32.xlu0 %v425, 64
    %v428 = vpop.permute.xlu0 %427
    %v430 = vadd.f32 %v424, %v428
    %v431 = vtanh.pop %v430
    %v432 = vmul.f32 %v423, %v431
    %434 = vrot.lane.b32.xlu0 %v432, 64
    %v435 = vpop.permute.xlu0 %434
    %vm437 = vcmask 254976
    %438 = vst.msk [vmem:[#allocation2] sm:$0x3] %vm437, %v435
    %vm439 = vcmask 517376
    %440 = vst.msk [vmem:[#allocation2 + $0xe] sm:$0x3] %vm439, %v435
    %441 = vst.msk [vmem:[#allocation3 + $0xe] sm:$0x3] %vm437, %v435
    %442 = vst.msk [vmem:[#allocation3] sm:$0x3] %vm439, %v435
    %v445 = vrot.slane %v316, 2
    %v446 = vrot.slane %v317, 2
    %v449 = vsel %vm336, %v435, 0
    %451 = vmatprep.subr.mxu0 %v321
    %452 = vmatpush1.msra.mxu0 %v320
    %453 = vmatprep.subr.mxu0 %v323
    %454 = vmatpush1.msra.mxu0 %v322
    %455 = vmatprep.subr.mxu0 %v325
    %456 = vmatpush1.msra.mxu0 %v324
    %457 = vmatprep.subr.mxu0 %v327
    %458 = vmatpush1.msra.mxu0 %v326
    %459 = vmatprep.subr.mxu0 %v329
    %460 = vmatpush1.msra.mxu0 %v328
    %461 = vmatprep.subr.mxu0 %v331
    %462 = vmatpush1.msra.mxu0 %v330
    %463 = vmatprep.subr.mxu0 %v333
    %464 = vmatpush1.msra.mxu0 %v332
    %465 = vmatprep.subr.mxu0 %v335
    %466 = vmatpush1.msra.mxu0 %v334
    %467 = vmatprep.subr.mxu0 0.0
    %468 = vmatpush1.msra.mxu0 0.0
    %469 = vmatprep.subr.mxu0 0.0
    %470 = vmatpush1.msra.mxu0 0.0
    %471 = vmatprep.subr.mxu0 0.0
    %472 = vmatpush1.msra.mxu0 0.0
    %473 = vmatprep.subr.mxu0 0.0
    %474 = vmatpush1.msra.mxu0 0.0
    %475 = vmatprep.subr.mxu0 0.0
    %476 = vmatpush1.msra.mxu0 0.0
    %477 = vmatprep.subr.mxu0 0.0
    %478 = vmatpush1.msra.mxu0 0.0
    %479 = vmatprep.subr.mxu0 0.0
    %480 = vmatpush1.msra.mxu0 0.0
    %481 = vmatprep.subr.mxu0 0.0
    %482 = vmatpush1.msra.mxu0 0.0
    %483 = vmatprep.subr.mxu0 0.0
    %484 = vmatpush1.msra.mxu0 0.0
    %485 = vmatprep.subr.mxu0 0.0
    %486 = vmatpush1.msra.mxu0 0.0
    %487 = vmatprep.subr.mxu0 0.0
    %488 = vmatpush1.msra.mxu0 0.0
    %489 = vmatprep.subr.mxu0 0.0
    %490 = vmatpush1.msra.mxu0 0.0
    %491 = vmatprep.subr.mxu0 0.0
    %492 = vmatpush1.msra.mxu0 0.0
    %493 = vmatprep.subr.mxu0 0.0
    %494 = vmatpush1.msra.mxu0 0.0
    %495 = vmatprep.subr.mxu0 0.0
    %496 = vmatpush1.msra.mxu0 0.0
    %497 = vmatprep.subr.mxu0 0.0
    %498 = vmatpush1.msra.mxu0 0.0
    %499 = vmatprep.subr.mxu0 0.0
    %500 = vmatpush1.msra.mxu0 0.0
    %501 = vmatprep.subr.mxu0 0.0
    %502 = vmatpush1.msra.mxu0 0.0
    %503 = vmatprep.subr.mxu0 0.0
    %504 = vmatpush1.msra.mxu0 0.0
    %505 = vmatprep.subr.mxu0 0.0
    %506 = vmatpush1.msra.mxu0 0.0
    %507 = vmatprep.subr.mxu0 0.0
    %508 = vmatpush1.msra.mxu0 0.0
    %509 = vmatprep.subr.mxu0 0.0
    %510 = vmatpush1.msra.mxu0 0.0
    %511 = vmatprep.subr.mxu0 0.0
    %512 = vmatpush1.msra.mxu0 0.0
    %513 = vmatprep.subr.mxu0 0.0
    %514 = vmatpush1.msra.mxu0 0.0
    %515 = vmatprep.mubr.f32.mxu0 0.0
    %516 = vmatmul.mubr.f32.gmra.mrb[0].mxu0 %v449
    %v517 = vpop.f32.mrb[0].mxu0
    %v518 = vadd.f32 %v445, %v517
    %v519 = vpop.f32.mrb[0].mxu0
    %v520 = vadd.f32 %v446, %v519
    %521 = vdwg.mxu0
    %v522 = vxor.u32 %v518, 2147483648
    %v523 = vmul.f32 %v522, 1.442695
    %v524 = vpow.pop %v523
    %v525 = vadd.f32 %v524, 1.0
    %v526 = vrcp.pop %v525
    %v527 = vmul.f32 1.0, %v526
    %v528 = vtanh.pop %v520
    %v529 = vxor.u32 %v520, 2147483648
    %v530 = vmul.f32 %v529, 1.442695
    %v531 = vpow.pop %v530
    %v532 = vadd.f32 %v531, 1.0
    %v533 = vrcp.pop %v532
    %v534 = vmul.f32 1.0, %v533
    %v535 = vmul.f32 %v527, %v430
    %v536 = vmul.f32 %v527, %v528
    %538 = vrot.lane.b32.xlu0 %v536, 64
    %v539 = vpop.permute.xlu0 %538
    %v541 = vadd.f32 %v535, %v539
    %v542 = vtanh.pop %v541
    %v543 = vmul.f32 %v534, %v542
    %545 = vrot.lane.b32.xlu0 %v543, 64
    %v546 = vpop.permute.xlu0 %545
    %548 = vst.msk [vmem:[#allocation2 + $0x2] sm:$0x3] %vm437, %v546
    %549 = vst.msk [vmem:[#allocation2 + $0xc] sm:$0x3] %vm439, %v546
    %550 = vst.msk [vmem:[#allocation3 + $0xc] sm:$0x3] %vm437, %v546
    %551 = vst.msk [vmem:[#allocation3 + $0x2] sm:$0x3] %vm439, %v546
    %v552 = vrot.slane %v316, 4
    %v553 = vrot.slane %v317, 4
    %v556 = vsel %vm336, %v546, 0
    %558 = vmatprep.subr.mxu0 %v321
    %559 = vmatpush1.msra.mxu0 %v320
    %560 = vmatprep.subr.mxu0 %v323
    %561 = vmatpush1.msra.mxu0 %v322
    %562 = vmatprep.subr.mxu0 %v325
    %563 = vmatpush1.msra.mxu0 %v324
    %564 = vmatprep.subr.mxu0 %v327
    %565 = vmatpush1.msra.mxu0 %v326
    %566 = vmatprep.subr.mxu0 %v329
    %567 = vmatpush1.msra.mxu0 %v328
    %568 = vmatprep.subr.mxu0 %v331
    %569 = vmatpush1.msra.mxu0 %v330
    %570 = vmatprep.subr.mxu0 %v333
    %571 = vmatpush1.msra.mxu0 %v332
    %572 = vmatprep.subr.mxu0 %v335
    %573 = vmatpush1.msra.mxu0 %v334
    %574 = vmatprep.subr.mxu0 0.0
    %575 = vmatpush1.msra.mxu0 0.0
    %576 = vmatprep.subr.mxu0 0.0
    %577 = vmatpush1.msra.mxu0 0.0
    %578 = vmatprep.subr.mxu0 0.0
    %579 = vmatpush1.msra.mxu0 0.0
    %580 = vmatprep.subr.mxu0 0.0
    %581 = vmatpush1.msra.mxu0 0.0
    %582 = vmatprep.subr.mxu0 0.0
    %583 = vmatpush1.msra.mxu0 0.0
    %584 = vmatprep.subr.mxu0 0.0
    %585 = vmatpush1.msra.mxu0 0.0
    %586 = vmatprep.subr.mxu0 0.0
    %587 = vmatpush1.msra.mxu0 0.0
    %588 = vmatprep.subr.mxu0 0.0
    %589 = vmatpush1.msra.mxu0 0.0
    %590 = vmatprep.subr.mxu0 0.0
    %591 = vmatpush1.msra.mxu0 0.0
    %592 = vmatprep.subr.mxu0 0.0
    %593 = vmatpush1.msra.mxu0 0.0
    %594 = vmatprep.subr.mxu0 0.0
    %595 = vmatpush1.msra.mxu0 0.0
    %596 = vmatprep.subr.mxu0 0.0
    %597 = vmatpush1.msra.mxu0 0.0
    %598 = vmatprep.subr.mxu0 0.0
    %599 = vmatpush1.msra.mxu0 0.0
    %600 = vmatprep.subr.mxu0 0.0
    %601 = vmatpush1.msra.mxu0 0.0
    %602 = vmatprep.subr.mxu0 0.0
    %603 = vmatpush1.msra.mxu0 0.0
    %604 = vmatprep.subr.mxu0 0.0
    %605 = vmatpush1.msra.mxu0 0.0
    %606 = vmatprep.subr.mxu0 0.0
    %607 = vmatpush1.msra.mxu0 0.0
    %608 = vmatprep.subr.mxu0 0.0
    %609 = vmatpush1.msra.mxu0 0.0
    %610 = vmatprep.subr.mxu0 0.0
    %611 = vmatpush1.msra.mxu0 0.0
    %612 = vmatprep.subr.mxu0 0.0
    %613 = vmatpush1.msra.mxu0 0.0
    %614 = vmatprep.subr.mxu0 0.0
    %615 = vmatpush1.msra.mxu0 0.0
    %616 = vmatprep.subr.mxu0 0.0
    %617 = vmatpush1.msra.mxu0 0.0
    %618 = vmatprep.subr.mxu0 0.0
    %619 = vmatpush1.msra.mxu0 0.0
    %620 = vmatprep.subr.mxu0 0.0
    %621 = vmatpush1.msra.mxu0 0.0
    %622 = vmatprep.mubr.f32.mxu0 0.0
    %623 = vmatmul.mubr.f32.gmra.mrb[0].mxu0 %v556
    %v624 = vpop.f32.mrb[0].mxu0
    %v625 = vadd.f32 %v552, %v624
    %v626 = vpop.f32.mrb[0].mxu0
    %v627 = vadd.f32 %v553, %v626
    %628 = vdwg.mxu0
    %v629 = vxor.u32 %v625, 2147483648
    %v630 = vmul.f32 %v629, 1.442695
    %v631 = vpow.pop %v630
    %v632 = vadd.f32 %v631, 1.0
    %v633 = vrcp.pop %v632
    %v634 = vmul.f32 1.0, %v633
    %v635 = vtanh.pop %v627
    %v636 = vxor.u32 %v627, 2147483648
    %v637 = vmul.f32 %v636, 1.442695
    %v638 = vpow.pop %v637
    %v639 = vadd.f32 %v638, 1.0
    %v640 = vrcp.pop %v639
    %v641 = vmul.f32 1.0, %v640
    %v642 = vmul.f32 %v634, %v541
    %v643 = vmul.f32 %v634, %v635
    %645 = vrot.lane.b32.xlu0 %v643, 64
    %v646 = vpop.permute.xlu0 %645
    %v648 = vadd.f32 %v642, %v646
    %v649 = vtanh.pop %v648
    %v650 = vmul.f32 %v641, %v649
    %652 = vrot.lane.b32.xlu0 %v650, 64
    %v653 = vpop.permute.xlu0 %652
    %655 = vst.msk [vmem:[#allocation2 + $0x4] sm:$0x3] %vm437, %v653
    %656 = vst.msk [vmem:[#allocation2 + $0xa] sm:$0x3] %vm439, %v653
    %657 = vst.msk [vmem:[#allocation3 + $0xa] sm:$0x3] %vm437, %v653
    %658 = vst.msk [vmem:[#allocation3 + $0x4] sm:$0x3] %vm439, %v653
    %v659 = vrot.slane %v316, 6
    %v660 = vrot.slane %v317, 6
    %v663 = vsel %vm336, %v653, 0
    %665 = vmatprep.subr.mxu0 %v321
    %666 = vmatpush1.msra.mxu0 %v320
    %667 = vmatprep.subr.mxu0 %v323
    %668 = vmatpush1.msra.mxu0 %v322
    %669 = vmatprep.subr.mxu0 %v325
    %670 = vmatpush1.msra.mxu0 %v324
    %671 = vmatprep.subr.mxu0 %v327
    %672 = vmatpush1.msra.mxu0 %v326
    %673 = vmatprep.subr.mxu0 %v329
    %674 = vmatpush1.msra.mxu0 %v328
    %675 = vmatprep.subr.mxu0 %v331
    %676 = vmatpush1.msra.mxu0 %v330
    %677 = vmatprep.subr.mxu0 %v333
    %678 = vmatpush1.msra.mxu0 %v332
    %679 = vmatprep.subr.mxu0 %v335
    %680 = vmatpush1.msra.mxu0 %v334
    %681 = vmatprep.subr.mxu0 0.0
    %682 = vmatpush1.msra.mxu0 0.0
    %683 = vmatprep.subr.mxu0 0.0
    %684 = vmatpush1.msra.mxu0 0.0
    %685 = vmatprep.subr.mxu0 0.0
    %686 = vmatpush1.msra.mxu0 0.0
    %687 = vmatprep.subr.mxu0 0.0
    %688 = vmatpush1.msra.mxu0 0.0
    %689 = vmatprep.subr.mxu0 0.0
    %690 = vmatpush1.msra.mxu0 0.0
    %691 = vmatprep.subr.mxu0 0.0
    %692 = vmatpush1.msra.mxu0 0.0
    %693 = vmatprep.subr.mxu0 0.0
    %694 = vmatpush1.msra.mxu0 0.0
    %695 = vmatprep.subr.mxu0 0.0
    %696 = vmatpush1.msra.mxu0 0.0
    %697 = vmatprep.subr.mxu0 0.0
    %698 = vmatpush1.msra.mxu0 0.0
    %699 = vmatprep.subr.mxu0 0.0
    %700 = vmatpush1.msra.mxu0 0.0
    %701 = vmatprep.subr.mxu0 0.0
    %702 = vmatpush1.msra.mxu0 0.0
    %703 = vmatprep.subr.mxu0 0.0
    %704 = vmatpush1.msra.mxu0 0.0
    %705 = vmatprep.subr.mxu0 0.0
    %706 = vmatpush1.msra.mxu0 0.0
    %707 = vmatprep.subr.mxu0 0.0
    %708 = vmatpush1.msra.mxu0 0.0
    %709 = vmatprep.subr.mxu0 0.0
    %710 = vmatpush1.msra.mxu0 0.0
    %711 = vmatprep.subr.mxu0 0.0
    %712 = vmatpush1.msra.mxu0 0.0
    %713 = vmatprep.subr.mxu0 0.0
    %714 = vmatpush1.msra.mxu0 0.0
    %715 = vmatprep.subr.mxu0 0.0
    %716 = vmatpush1.msra.mxu0 0.0
    %717 = vmatprep.subr.mxu0 0.0
    %718 = vmatpush1.msra.mxu0 0.0
    %719 = vmatprep.subr.mxu0 0.0
    %720 = vmatpush1.msra.mxu0 0.0
    %721 = vmatprep.subr.mxu0 0.0
    %722 = vmatpush1.msra.mxu0 0.0
    %723 = vmatprep.subr.mxu0 0.0
    %724 = vmatpush1.msra.mxu0 0.0
    %725 = vmatprep.subr.mxu0 0.0
    %726 = vmatpush1.msra.mxu0 0.0
    %727 = vmatprep.subr.mxu0 0.0
    %728 = vmatpush1.msra.mxu0 0.0
    %729 = vmatprep.mubr.f32.mxu0 0.0
    %730 = vmatmul.mubr.f32.gmra.mrb[0].mxu0 %v663
    %v731 = vpop.f32.mrb[0].mxu0
    %v732 = vadd.f32 %v659, %v731
    %v733 = vpop.f32.mrb[0].mxu0
    %v734 = vadd.f32 %v660, %v733
    %735 = vdwg.mxu0
    %v736 = vxor.u32 %v732, 2147483648
    %v737 = vmul.f32 %v736, 1.442695
    %v738 = vpow.pop %v737
    %v739 = vadd.f32 %v738, 1.0
    %v740 = vrcp.pop %v739
    %v741 = vmul.f32 1.0, %v740
    %v742 = vtanh.pop %v734
    %v743 = vxor.u32 %v734, 2147483648
    %v744 = vmul.f32 %v743, 1.442695
    %v745 = vpow.pop %v744
    %v746 = vadd.f32 %v745, 1.0
    %v747 = vrcp.pop %v746
    %v748 = vmul.f32 1.0, %v747
    %v749 = vmul.f32 %v741, %v648
    %v750 = vmul.f32 %v741, %v742
    %752 = vrot.lane.b32.xlu0 %v750, 64
    %v753 = vpop.permute.xlu0 %752
    %v755 = vadd.f32 %v749, %v753
    %v756 = vtanh.pop %v755
    %v757 = vmul.f32 %v748, %v756
    %759 = vrot.lane.b32.xlu0 %v757, 64
    %v760 = vpop.permute.xlu0 %759
    %762 = vst.msk [vmem:[#allocation2 + $0x6] sm:$0x3] %vm437, %v760
    %763 = vst.msk [vmem:[#allocation2 + $0x8] sm:$0x3] %vm439, %v760
    %764 = vst.msk [vmem:[#allocation3 + $0x8] sm:$0x3] %vm437, %v760
    %765 = vst.msk [vmem:[#allocation3 + $0x6] sm:$0x3] %vm439, %v760
    %v766 = vsel %vm336, %v760, 0
    %768 = vmatprep.subr.mxu0 %v321
    %769 = vmatpush1.msra.mxu0 %v320
    %770 = vmatprep.subr.mxu0 %v323
    %771 = vmatpush1.msra.mxu0 %v322
    %772 = vmatprep.subr.mxu0 %v325
    %773 = vmatpush1.msra.mxu0 %v324
    %774 = vmatprep.subr.mxu0 %v327
    %775 = vmatpush1.msra.mxu0 %v326
    %776 = vmatprep.subr.mxu0 %v329
    %777 = vmatpush1.msra.mxu0 %v328
    %778 = vmatprep.subr.mxu0 %v331
    %779 = vmatpush1.msra.mxu0 %v330
    %780 = vmatprep.subr.mxu0 %v333
    %781 = vmatpush1.msra.mxu0 %v332
    %782 = vmatprep.subr.mxu0 %v335
    %783 = vmatpush1.msra.mxu0 %v334
    %784 = vmatprep.subr.mxu0 0.0
    %785 = vmatpush1.msra.mxu0 0.0
    %786 = vmatprep.subr.mxu0 0.0
    %787 = vmatpush1.msra.mxu0 0.0
    %788 = vmatprep.subr.mxu0 0.0
    %789 = vmatpush1.msra.mxu0 0.0
    %790 = vmatprep.subr.mxu0 0.0
    %791 = vmatpush1.msra.mxu0 0.0
    %792 = vmatprep.subr.mxu0 0.0
    %793 = vmatpush1.msra.mxu0 0.0
    %794 = vmatprep.subr.mxu0 0.0
    %795 = vmatpush1.msra.mxu0 0.0
    %796 = vmatprep.subr.mxu0 0.0
    %797 = vmatpush1.msra.mxu0 0.0
    %798 = vmatprep.subr.mxu0 0.0
    %799 = vmatpush1.msra.mxu0 0.0
    %800 = vmatprep.subr.mxu0 0.0
    %801 = vmatpush1.msra.mxu0 0.0
    %802 = vmatprep.subr.mxu0 0.0
    %803 = vmatpush1.msra.mxu0 0.0
    %804 = vmatprep.subr.mxu0 0.0
    %805 = vmatpush1.msra.mxu0 0.0
    %806 = vmatprep.subr.mxu0 0.0
    %807 = vmatpush1.msra.mxu0 0.0
    %808 = vmatprep.subr.mxu0 0.0
    %809 = vmatpush1.msra.mxu0 0.0
    %810 = vmatprep.subr.mxu0 0.0
    %811 = vmatpush1.msra.mxu0 0.0
    %812 = vmatprep.subr.mxu0 0.0
    %813 = vmatpush1.msra.mxu0 0.0
    %814 = vmatprep.subr.mxu0 0.0
    %815 = vmatpush1.msra.mxu0 0.0
    %816 = vmatprep.subr.mxu0 0.0
    %817 = vmatpush1.msra.mxu0 0.0
    %818 = vmatprep.subr.mxu0 0.0
    %819 = vmatpush1.msra.mxu0 0.0
    %820 = vmatprep.subr.mxu0 0.0
    %821 = vmatpush1.msra.mxu0 0.0
    %822 = vmatprep.subr.mxu0 0.0
    %823 = vmatpush1.msra.mxu0 0.0
    %824 = vmatprep.subr.mxu0 0.0
    %825 = vmatpush1.msra.mxu0 0.0
    %826 = vmatprep.subr.mxu0 0.0
    %827 = vmatpush1.msra.mxu0 0.0
    %828 = vmatprep.subr.mxu0 0.0
    %829 = vmatpush1.msra.mxu0 0.0
    %830 = vmatprep.subr.mxu0 0.0
    %831 = vmatpush1.msra.mxu0 0.0
    %832 = vmatprep.mubr.f32.mxu0 0.0
    %833 = vmatmul.mubr.f32.gmra.mrb[0].mxu0 %v766
    %v834 = vpop.f32.mrb[0].mxu0
    %v835 = vadd.f32 %v318, %v834
    %v836 = vpop.f32.mrb[0].mxu0
    %v837 = vadd.f32 %v319, %v836
    %838 = vdwg.mxu0
    %v839 = vxor.u32 %v835, 2147483648
    %v840 = vmul.f32 %v839, 1.442695
    %v841 = vpow.pop %v840
    %v842 = vadd.f32 %v841, 1.0
    %v843 = vrcp.pop %v842
    %v844 = vmul.f32 1.0, %v843
    %v845 = vtanh.pop %v837
    %v846 = vxor.u32 %v837, 2147483648
    %v847 = vmul.f32 %v846, 1.442695
    %v848 = vpow.pop %v847
    %v849 = vadd.f32 %v848, 1.0
    %v850 = vrcp.pop %v849
    %v851 = vmul.f32 1.0, %v850
    %v852 = vmul.f32 %v844, %v755
    %v853 = vmul.f32 %v844, %v845
    %855 = vrot.lane.b32.xlu0 %v853, 64
    %v856 = vpop.permute.xlu0 %855
    %v858 = vadd.f32 %v852, %v856
    %v859 = vtanh.pop %v858
    %v860 = vmul.f32 %v851, %v859
    %862 = vrot.lane.b32.xlu0 %v860, 64
    %v863 = vpop.permute.xlu0 %862
    %865 = vst.msk [vmem:[#allocation2 + $0x8] sm:$0x3] %vm437, %v863
    %866 = vst.msk [vmem:[#allocation2 + $0x6] sm:$0x3] %vm439, %v863
    %867 = vst.msk [vmem:[#allocation3 + $0x6] sm:$0x3] %vm437, %v863
    %868 = vst.msk [vmem:[#allocation3 + $0x8] sm:$0x3] %vm439, %v863
    %v871 = vrot.slane %v318, 2
    %v872 = vrot.slane %v319, 2
    %v875 = vsel %vm336, %v863, 0
    %877 = vmatprep.subr.mxu0 %v321
    %878 = vmatpush1.msra.mxu0 %v320
    %879 = vmatprep.subr.mxu0 %v323
    %880 = vmatpush1.msra.mxu0 %v322
    %881 = vmatprep.subr.mxu0 %v325
    %882 = vmatpush1.msra.mxu0 %v324
    %883 = vmatprep.subr.mxu0 %v327
    %884 = vmatpush1.msra.mxu0 %v326
    %885 = vmatprep.subr.mxu0 %v329
    %886 = vmatpush1.msra.mxu0 %v328
    %887 = vmatprep.subr.mxu0 %v331
    %888 = vmatpush1.msra.mxu0 %v330
    %889 = vmatprep.subr.mxu0 %v333
    %890 = vmatpush1.msra.mxu0 %v332
    %891 = vmatprep.subr.mxu0 %v335
    %892 = vmatpush1.msra.mxu0 %v334
    %893 = vmatprep.subr.mxu0 0.0
    %894 = vmatpush1.msra.mxu0 0.0
    %895 = vmatprep.subr.mxu0 0.0
    %896 = vmatpush1.msra.mxu0 0.0
    %897 = vmatprep.subr.mxu0 0.0
    %898 = vmatpush1.msra.mxu0 0.0
    %899 = vmatprep.subr.mxu0 0.0
    %900 = vmatpush1.msra.mxu0 0.0
    %901 = vmatprep.subr.mxu0 0.0
    %902 = vmatpush1.msra.mxu0 0.0
    %903 = vmatprep.subr.mxu0 0.0
    %904 = vmatpush1.msra.mxu0 0.0
    %905 = vmatprep.subr.mxu0 0.0
    %906 = vmatpush1.msra.mxu0 0.0
    %907 = vmatprep.subr.mxu0 0.0
    %908 = vmatpush1.msra.mxu0 0.0
    %909 = vmatprep.subr.mxu0 0.0
    %910 = vmatpush1.msra.mxu0 0.0
    %911 = vmatprep.subr.mxu0 0.0
    %912 = vmatpush1.msra.mxu0 0.0
    %913 = vmatprep.subr.mxu0 0.0
    %914 = vmatpush1.msra.mxu0 0.0
    %915 = vmatprep.subr.mxu0 0.0
    %916 = vmatpush1.msra.mxu0 0.0
    %917 = vmatprep.subr.mxu0 0.0
    %918 = vmatpush1.msra.mxu0 0.0
    %919 = vmatprep.subr.mxu0 0.0
    %920 = vmatpush1.msra.mxu0 0.0
    %921 = vmatprep.subr.mxu0 0.0
    %922 = vmatpush1.msra.mxu0 0.0
    %923 = vmatprep.subr.mxu0 0.0
    %924 = vmatpush1.msra.mxu0 0.0
    %925 = vmatprep.subr.mxu0 0.0
    %926 = vmatpush1.msra.mxu0 0.0
    %927 = vmatprep.subr.mxu0 0.0
    %928 = vmatpush1.msra.mxu0 0.0
    %929 = vmatprep.subr.mxu0 0.0
    %930 = vmatpush1.msra.mxu0 0.0
    %931 = vmatprep.subr.mxu0 0.0
    %932 = vmatpush1.msra.mxu0 0.0
    %933 = vmatprep.subr.mxu0 0.0
    %934 = vmatpush1.msra.mxu0 0.0
    %935 = vmatprep.subr.mxu0 0.0
    %936 = vmatpush1.msra.mxu0 0.0
    %937 = vmatprep.subr.mxu0 0.0
    %938 = vmatpush1.msra.mxu0 0.0
    %939 = vmatprep.subr.mxu0 0.0
    %940 = vmatpush1.msra.mxu0 0.0
    %941 = vmatprep.mubr.f32.mxu0 0.0
    %942 = vmatmul.mubr.f32.gmra.mrb[0].mxu0 %v875
    %v943 = vpop.f32.mrb[0].mxu0
    %v944 = vadd.f32 %v871, %v943
    %v945 = vpop.f32.mrb[0].mxu0
    %v946 = vadd.f32 %v872, %v945
    %947 = vdwg.mxu0
    %v948 = vxor.u32 %v944, 2147483648
    %v949 = vmul.f32 %v948, 1.442695
    %v950 = vpow.pop %v949
    %v951 = vadd.f32 %v950, 1.0
    %v952 = vrcp.pop %v951
    %v953 = vmul.f32 1.0, %v952
    %v954 = vtanh.pop %v946
    %v955 = vxor.u32 %v946, 2147483648
    %v956 = vmul.f32 %v955, 1.442695
    %v957 = vpow.pop %v956
    %v958 = vadd.f32 %v957, 1.0
    %v959 = vrcp.pop %v958
    %v960 = vmul.f32 1.0, %v959
    %v961 = vmul.f32 %v953, %v858
    %v962 = vmul.f32 %v953, %v954
    %964 = vrot.lane.b32.xlu0 %v962, 64
    %v965 = vpop.permute.xlu0 %964
    %v967 = vadd.f32 %v961, %v965
    %v968 = vtanh.pop %v967
    %v969 = vmul.f32 %v960, %v968
    %971 = vrot.lane.b32.xlu0 %v969, 64
    %v972 = vpop.permute.xlu0 %971
    %974 = vst.msk [vmem:[#allocation2 + $0xa] sm:$0x3] %vm437, %v972
    %975 = vst.msk [vmem:[#allocation2 + $0x4] sm:$0x3] %vm439, %v972
    %976 = vst.msk [vmem:[#allocation3 + $0x4] sm:$0x3] %vm437, %v972
    %977 = vst.msk [vmem:[#allocation3 + $0xa] sm:$0x3] %vm439, %v972
    %v978 = vrot.slane %v318, 4
    %v979 = vrot.slane %v319, 4
    %v982 = vsel %vm336, %v972, 0
    %984 = vmatprep.subr.mxu0 %v321
    %985 = vmatpush1.msra.mxu0 %v320
    %986 = vmatprep.subr.mxu0 %v323
    %987 = vmatpush1.msra.mxu0 %v322
    %988 = vmatprep.subr.mxu0 %v325
    %989 = vmatpush1.msra.mxu0 %v324
    %990 = vmatprep.subr.mxu0 %v327
    %991 = vmatpush1.msra.mxu0 %v326
    %992 = vmatprep.subr.mxu0 %v329
    %993 = vmatpush1.msra.mxu0 %v328
    %994 = vmatprep.subr.mxu0 %v331
    %995 = vmatpush1.msra.mxu0 %v330
    %996 = vmatprep.subr.mxu0 %v333
    %997 = vmatpush1.msra.mxu0 %v332
    %998 = vmatprep.subr.mxu0 %v335
    %999 = vmatpush1.msra.mxu0 %v334
    %1000 = vmatprep.subr.mxu0 0.0
    %1001 = vmatpush1.msra.mxu0 0.0
    %1002 = vmatprep.subr.mxu0 0.0
    %1003 = vmatpush1.msra.mxu0 0.0
    %1004 = vmatprep.subr.mxu0 0.0
    %1005 = vmatpush1.msra.mxu0 0.0
    %1006 = vmatprep.subr.mxu0 0.0
    %1007 = vmatpush1.msra.mxu0 0.0
    %1008 = vmatprep.subr.mxu0 0.0
    %1009 = vmatpush1.msra.mxu0 0.0
    %1010 = vmatprep.subr.mxu0 0.0
    %1011 = vmatpush1.msra.mxu0 0.0
    %1012 = vmatprep.subr.mxu0 0.0
    %1013 = vmatpush1.msra.mxu0 0.0
    %1014 = vmatprep.subr.mxu0 0.0
    %1015 = vmatpush1.msra.mxu0 0.0
    %1016 = vmatprep.subr.mxu0 0.0
    %1017 = vmatpush1.msra.mxu0 0.0
    %1018 = vmatprep.subr.mxu0 0.0
    %1019 = vmatpush1.msra.mxu0 0.0
    %1020 = vmatprep.subr.mxu0 0.0
    %1021 = vmatpush1.msra.mxu0 0.0
    %1022 = vmatprep.subr.mxu0 0.0
    %1023 = vmatpush1.msra.mxu0 0.0
    %1024 = vmatprep.subr.mxu0 0.0
    %1025 = vmatpush1.msra.mxu0 0.0
    %1026 = vmatprep.subr.mxu0 0.0
    %1027 = vmatpush1.msra.mxu0 0.0
    %1028 = vmatprep.subr.mxu0 0.0
    %1029 = vmatpush1.msra.mxu0 0.0
    %1030 = vmatprep.subr.mxu0 0.0
    %1031 = vmatpush1.msra.mxu0 0.0
    %1032 = vmatprep.subr.mxu0 0.0
    %1033 = vmatpush1.msra.mxu0 0.0
    %1034 = vmatprep.subr.mxu0 0.0
    %1035 = vmatpush1.msra.mxu0 0.0
    %1036 = vmatprep.subr.mxu0 0.0
    %1037 = vmatpush1.msra.mxu0 0.0
    %1038 = vmatprep.subr.mxu0 0.0
    %1039 = vmatpush1.msra.mxu0 0.0
    %1040 = vmatprep.subr.mxu0 0.0
    %1041 = vmatpush1.msra.mxu0 0.0
    %1042 = vmatprep.subr.mxu0 0.0
    %1043 = vmatpush1.msra.mxu0 0.0
    %1044 = vmatprep.subr.mxu0 0.0
    %1045 = vmatpush1.msra.mxu0 0.0
    %1046 = vmatprep.subr.mxu0 0.0
    %1047 = vmatpush1.msra.mxu0 0.0
    %1048 = vmatprep.mubr.f32.mxu0 0.0
    %1049 = vmatmul.mubr.f32.gmra.mrb[0].mxu0 %v982
    %v1050 = vpop.f32.mrb[0].mxu0
    %v1051 = vadd.f32 %v978, %v1050
    %v1052 = vpop.f32.mrb[0].mxu0
    %v1053 = vadd.f32 %v979, %v1052
    %1054 = vdwg.mxu0
    %v1055 = vxor.u32 %v1051, 2147483648
    %v1056 = vmul.f32 %v1055, 1.442695
    %v1057 = vpow.pop %v1056
    %v1058 = vadd.f32 %v1057, 1.0
    %v1059 = vrcp.pop %v1058
    %v1060 = vmul.f32 1.0, %v1059
    %v1061 = vtanh.pop %v1053
    %v1062 = vxor.u32 %v1053, 2147483648
    %v1063 = vmul.f32 %v1062, 1.442695
    %v1064 = vpow.pop %v1063
    %v1065 = vadd.f32 %v1064, 1.0
    %v1066 = vrcp.pop %v1065
    %v1067 = vmul.f32 1.0, %v1066
    %v1068 = vmul.f32 %v1060, %v967
    %v1069 = vmul.f32 %v1060, %v1061
    %1071 = vrot.lane.b32.xlu0 %v1069, 64
    %v1072 = vpop.permute.xlu0 %1071
    %v1074 = vadd.f32 %v1068, %v1072
    %v1075 = vtanh.pop %v1074
    %v1076 = vmul.f32 %v1067, %v1075
    %1078 = vrot.lane.b32.xlu0 %v1076, 64
    %v1079 = vpop.permute.xlu0 %1078
    %1081 = vst.msk [vmem:[#allocation2 + $0xc] sm:$0x3] %vm437, %v1079
    %1082 = vst.msk [vmem:[#allocation2 + $0x2] sm:$0x3] %vm439, %v1079
    %1083 = vst.msk [vmem:[#allocation3 + $0x2] sm:$0x3] %vm437, %v1079
    %1084 = vst.msk [vmem:[#allocation3 + $0xc] sm:$0x3] %vm439, %v1079
    %v1085 = vrot.slane %v318, 6
    %v1086 = vrot.slane %v319, 6
    %v1089 = vsel %vm336, %v1079, 0
    %1091 = vmatprep.subr.mxu0 %v321
    %1092 = vmatpush1.msra.mxu0 %v320
    %1093 = vmatprep.subr.mxu0 %v323
    %1094 = vmatpush1.msra.mxu0 %v322
    %1095 = vmatprep.subr.mxu0 %v325
    %1096 = vmatpush1.msra.mxu0 %v324
    %1097 = vmatprep.subr.mxu0 %v327
    %1098 = vmatpush1.msra.mxu0 %v326
    %1099 = vmatprep.subr.mxu0 %v329
    %1100 = vmatpush1.msra.mxu0 %v328
    %1101 = vmatprep.subr.mxu0 %v331
    %1102 = vmatpush1.msra.mxu0 %v330
    %1103 = vmatprep.subr.mxu0 %v333
    %1104 = vmatpush1.msra.mxu0 %v332
    %1105 = vmatprep.subr.mxu0 %v335
    %1106 = vmatpush1.msra.mxu0 %v334
    %1107 = vmatprep.subr.mxu0 0.0
    %1108 = vmatpush1.msra.mxu0 0.0
    %1109 = vmatprep.subr.mxu0 0.0
    %1110 = vmatpush1.msra.mxu0 0.0
    %1111 = vmatprep.subr.mxu0 0.0
    %1112 = vmatpush1.msra.mxu0 0.0
    %1113 = vmatprep.subr.mxu0 0.0
    %1114 = vmatpush1.msra.mxu0 0.0
    %1115 = vmatprep.subr.mxu0 0.0
    %1116 = vmatpush1.msra.mxu0 0.0
    %1117 = vmatprep.subr.mxu0 0.0
    %1118 = vmatpush1.msra.mxu0 0.0
    %1119 = vmatprep.subr.mxu0 0.0
    %1120 = vmatpush1.msra.mxu0 0.0
    %1121 = vmatprep.subr.mxu0 0.0
    %1122 = vmatpush1.msra.mxu0 0.0
    %1123 = vmatprep.subr.mxu0 0.0
    %1124 = vmatpush1.msra.mxu0 0.0
    %1125 = vmatprep.subr.mxu0 0.0
    %1126 = vmatpush1.msra.mxu0 0.0
    %1127 = vmatprep.subr.mxu0 0.0
    %1128 = vmatpush1.msra.mxu0 0.0
    %1129 = vmatprep.subr.mxu0 0.0
    %1130 = vmatpush1.msra.mxu0 0.0
    %1131 = vmatprep.subr.mxu0 0.0
    %1132 = vmatpush1.msra.mxu0 0.0
    %1133 = vmatprep.subr.mxu0 0.0
    %1134 = vmatpush1.msra.mxu0 0.0
    %1135 = vmatprep.subr.mxu0 0.0
    %1136 = vmatpush1.msra.mxu0 0.0
    %1137 = vmatprep.subr.mxu0 0.0
    %1138 = vmatpush1.msra.mxu0 0.0
    %1139 = vmatprep.subr.mxu0 0.0
    %1140 = vmatpush1.msra.mxu0 0.0
    %1141 = vmatprep.subr.mxu0 0.0
    %1142 = vmatpush1.msra.mxu0 0.0
    %1143 = vmatprep.subr.mxu0 0.0
    %1144 = vmatpush1.msra.mxu0 0.0
    %1145 = vmatprep.subr.mxu0 0.0
    %1146 = vmatpush1.msra.mxu0 0.0
    %1147 = vmatprep.subr.mxu0 0.0
    %1148 = vmatpush1.msra.mxu0 0.0
    %1149 = vmatprep.subr.mxu0 0.0
    %1150 = vmatpush1.msra.mxu0 0.0
    %1151 = vmatprep.subr.mxu0 0.0
    %1152 = vmatpush1.msra.mxu0 0.0
    %1153 = vmatprep.subr.mxu0 0.0
    %1154 = vmatpush1.msra.mxu0 0.0
    %1155 = vmatprep.mubr.f32.mxu0 0.0
    %1156 = vmatmul.mubr.f32.gmra.mrb[0].mxu0 %v1089
    %v1157 = vpop.f32.mrb[0].mxu0
    %v1158 = vadd.f32 %v1085, %v1157
    %v1159 = vpop.f32.mrb[0].mxu0
    %v1160 = vadd.f32 %v1086, %v1159
    %1161 = vdwg.mxu0
    %v1162 = vxor.u32 %v1158, 2147483648
    %v1163 = vmul.f32 %v1162, 1.442695
    %v1164 = vpow.pop %v1163
    %v1165 = vadd.f32 %v1164, 1.0
    %v1166 = vrcp.pop %v1165
    %v1167 = vmul.f32 1.0, %v1166
    %v1168 = vtanh.pop %v1160
    %v1169 = vxor.u32 %v1160, 2147483648
    %v1170 = vmul.f32 %v1169, 1.442695
    %v1171 = vpow.pop %v1170
    %v1172 = vadd.f32 %v1171, 1.0
    %v1173 = vrcp.pop %v1172
    %v1174 = vmul.f32 1.0, %v1173
    %v1175 = vmul.f32 %v1167, %v1074
    %v1176 = vmul.f32 %v1167, %v1168
    %1178 = vrot.lane.b32.xlu0 %v1176, 64
    %v1179 = vpop.permute.xlu0 %1178
    %v1181 = vadd.f32 %v1175, %v1179
    %v1182 = vtanh.pop %v1181
    %v1183 = vmul.f32 %v1174, %v1182
    %1185 = vrot.lane.b32.xlu0 %v1183, 64
    %v1186 = vpop.permute.xlu0 %1185
    %1188 = vst.msk [vmem:[#allocation2 + $0xe] sm:$0x3] %vm437, %v1186
    %1189 = vst.msk [vmem:[#allocation2] sm:$0x3] %vm439, %v1186
    %1190 = vst.msk [vmem:[#allocation3] sm:$0x3] %vm437, %v1186
    %1191 = vst.msk [vmem:[#allocation3 + $0xe] sm:$0x3] %vm439, %v1186
    %v1192 = vld [vmem:[#allocation2] sm:$0xff]
    %v1193 = vld [vmem:[#allocation2 + $0x8] sm:$0xff]
    %v1194 = vld [vmem:[#allocation3] sm:$0xff]
    %v1195 = vld [vmem:[#allocation3 + $0x8] sm:$0xff]
    %v1196 = vld [vmem:[#allocation7] sm:$0xff]
    %v1197 = vld [vmem:[#allocation7 + $0x8] sm:$0xff]
    %v1198 = vld [vmem:[#allocation7 + $0x10] sm:$0xff]
    %v1199 = vld [vmem:[#allocation7 + $0x18] sm:$0xff]
    %v1200 = vld [vmem:[#allocation7 + $0x20] sm:$0xff]
    %v1201 = vld [vmem:[#allocation7 + $0x28] sm:$0xff]
    %v1202 = vld [vmem:[#allocation7 + $0x30] sm:$0xff]
    %v1203 = vld [vmem:[#allocation7 + $0x38] sm:$0xff]
    %v1204 = vld [vmem:[#allocation7 + $0x40] sm:$0xff]
    %v1205 = vld [vmem:[#allocation7 + $0x48] sm:$0xff]
    %v1206 = vld [vmem:[#allocation7 + $0x50] sm:$0xff]
    %v1207 = vld [vmem:[#allocation7 + $0x58] sm:$0xff]
    %v1208 = vld [vmem:[#allocation7 + $0x60] sm:$0xff]
    %v1209 = vld [vmem:[#allocation7 + $0x68] sm:$0xff]
    %v1210 = vld [vmem:[#allocation7 + $0x70] sm:$0xff]
    %v1211 = vld [vmem:[#allocation7 + $0x78] sm:$0xff]
    %v1212 = vld [vmem:[#allocation9] sm:$0xff]
    %v1213 = vld [vmem:[#allocation9 + $0x8] sm:$0xff]
    %v1214 = vld [vmem:[#allocation9 + $0x10] sm:$0xff]
    %v1215 = vld [vmem:[#allocation9 + $0x18] sm:$0xff]
    %v1216 = vld [vmem:[#allocation9 + $0x20] sm:$0xff]
    %v1217 = vld [vmem:[#allocation9 + $0x28] sm:$0xff]
    %v1218 = vld [vmem:[#allocation9 + $0x30] sm:$0xff]
    %v1219 = vld [vmem:[#allocation9 + $0x38] sm:$0xff]
    %v1220 = vld [vmem:[#allocation9 + $0x40] sm:$0xff]
    %v1221 = vld [vmem:[#allocation9 + $0x48] sm:$0xff]
    %v1222 = vld [vmem:[#allocation9 + $0x50] sm:$0xff]
    %v1223 = vld [vmem:[#allocation9 + $0x58] sm:$0xff]
    %v1224 = vld [vmem:[#allocation9 + $0x60] sm:$0xff]
    %v1225 = vld [vmem:[#allocation9 + $0x68] sm:$0xff]
    %v1226 = vld [vmem:[#allocation9 + $0x70] sm:$0xff]
    %v1227 = vld [vmem:[#allocation9 + $0x78] sm:$0xff]
    %v1229 = vsel %vm336, %v1194, 0
    %v1232 = vsel %vm336, %v1195, 0
    %1234 = vmatprep.subr.mxu0 %v1213
    %1235 = vmatpush1.msra.mxu0 %v1212
    %1236 = vmatprep.subr.mxu0 %v1215
    %1237 = vmatpush1.msra.mxu0 %v1214
    %1238 = vmatprep.subr.mxu0 %v1217
    %1239 = vmatpush1.msra.mxu0 %v1216
    %1240 = vmatprep.subr.mxu0 %v1219
    %1241 = vmatpush1.msra.mxu0 %v1218
    %1242 = vmatprep.subr.mxu0 %v1221
    %1243 = vmatpush1.msra.mxu0 %v1220
    %1244 = vmatprep.subr.mxu0 %v1223
    %1245 = vmatpush1.msra.mxu0 %v1222
    %1246 = vmatprep.subr.mxu0 %v1225
    %1247 = vmatpush1.msra.mxu0 %v1224
    %1248 = vmatprep.subr.mxu0 %v1227
    %1249 = vmatpush1.msra.mxu0 %v1226
    %1250 = vmatprep.subr.mxu0 0.0
    %1251 = vmatpush1.msra.mxu0 0.0
    %1252 = vmatprep.subr.mxu0 0.0
    %1253 = vmatpush1.msra.mxu0 0.0
    %1254 = vmatprep.subr.mxu0 0.0
    %1255 = vmatpush1.msra.mxu0 0.0
    %1256 = vmatprep.subr.mxu0 0.0
    %1257 = vmatpush1.msra.mxu0 0.0
    %1258 = vmatprep.subr.mxu0 0.0
    %1259 = vmatpush1.msra.mxu0 0.0
    %1260 = vmatprep.subr.mxu0 0.0
    %1261 = vmatpush1.msra.mxu0 0.0
    %1262 = vmatprep.subr.mxu0 0.0
    %1263 = vmatpush1.msra.mxu0 0.0
    %1264 = vmatprep.subr.mxu0 0.0
    %1265 = vmatpush1.msra.mxu0 0.0
    %1266 = vmatprep.subr.mxu0 0.0
    %1267 = vmatpush1.msra.mxu0 0.0
    %1268 = vmatprep.subr.mxu0 0.0
    %1269 = vmatpush1.msra.mxu0 0.0
    %1270 = vmatprep.subr.mxu0 0.0
    %1271 = vmatpush1.msra.mxu0 0.0
    %1272 = vmatprep.subr.mxu0 0.0
    %1273 = vmatpush1.msra.mxu0 0.0
    %1274 = vmatprep.subr.mxu0 0.0
    %1275 = vmatpush1.msra.mxu0 0.0
    %1276 = vmatprep.subr.mxu0 0.0
    %1277 = vmatpush1.msra.mxu0 0.0
    %1278 = vmatprep.subr.mxu0 0.0
    %1279 = vmatpush1.msra.mxu0 0.0
    %1280 = vmatprep.subr.mxu0 0.0
    %1281 = vmatpush1.msra.mxu0 0.0
    %1282 = vmatprep.subr.mxu0 0.0
    %1283 = vmatpush1.msra.mxu0 0.0
    %1284 = vmatprep.subr.mxu0 0.0
    %1285 = vmatpush1.msra.mxu0 0.0
    %1286 = vmatprep.subr.mxu0 0.0
    %1287 = vmatpush1.msra.mxu0 0.0
    %1288 = vmatprep.subr.mxu0 0.0
    %1289 = vmatpush1.msra.mxu0 0.0
    %1290 = vmatprep.subr.mxu0 0.0
    %1291 = vmatpush1.msra.mxu0 0.0
    %1292 = vmatprep.subr.mxu0 0.0
    %1293 = vmatpush1.msra.mxu0 0.0
    %1294 = vmatprep.subr.mxu0 0.0
    %1295 = vmatpush1.msra.mxu0 0.0
    %1296 = vmatprep.subr.mxu0 0.0
    %1297 = vmatpush1.msra.mxu0 0.0
    %1298 = vmatprep.mubr.f32.mxu0 0.0
    %1299 = vmatmul.mubr.f32.gmra.mrb[0].mxu0 %v1229
    %v1300 = vpop.f32.mrb[0].mxu0
    %v1301 = vadd.f32 0.0, %v1300
    %v1302 = vpop.f32.mrb[0].mxu0
    %v1303 = vadd.f32 0.0, %v1302
    %1304 = vmatprep.mubr.f32.mxu0 0.0
    %1305 = vmatmul.mubr.f32.gmra.mrb[0].mxu0 %v1232
    %v1306 = vpop.f32.mrb[0].mxu0
    %v1307 = vadd.f32 0.0, %v1306
    %v1308 = vpop.f32.mrb[0].mxu0
    %v1309 = vadd.f32 0.0, %v1308
    %1310 = vdwg.mxu0
    %v1312 = vsel %vm336, %v1192, 0
    %v1315 = vsel %vm336, %v1193, 0
    %1317 = vmatprep.subr.mxu0 %v1197
    %1318 = vmatpush1.msra.mxu0 %v1196
    %1319 = vmatprep.subr.mxu0 %v1199
    %1320 = vmatpush1.msra.mxu0 %v1198
    %1321 = vmatprep.subr.mxu0 %v1201
    %1322 = vmatpush1.msra.mxu0 %v1200
    %1323 = vmatprep.subr.mxu0 %v1203
    %1324 = vmatpush1.msra.mxu0 %v1202
    %1325 = vmatprep.subr.mxu0 %v1205
    %1326 = vmatpush1.msra.mxu0 %v1204
    %1327 = vmatprep.subr.mxu0 %v1207
    %1328 = vmatpush1.msra.mxu0 %v1206
    %1329 = vmatprep.subr.mxu0 %v1209
    %1330 = vmatpush1.msra.mxu0 %v1208
    %1331 = vmatprep.subr.mxu0 %v1211
    %1332 = vmatpush1.msra.mxu0 %v1210
    %1333 = vmatprep.subr.mxu0 0.0
    %1334 = vmatpush1.msra.mxu0 0.0
    %1335 = vmatprep.subr.mxu0 0.0
    %1336 = vmatpush1.msra.mxu0 0.0
    %1337 = vmatprep.subr.mxu0 0.0
    %1338 = vmatpush1.msra.mxu0 0.0
    %1339 = vmatprep.subr.mxu0 0.0
    %1340 = vmatpush1.msra.mxu0 0.0
    %1341 = vmatprep.subr.mxu0 0.0
    %1342 = vmatpush1.msra.mxu0 0.0
    %1343 = vmatprep.subr.mxu0 0.0
    %1344 = vmatpush1.msra.mxu0 0.0
    %1345 = vmatprep.subr.mxu0 0.0
    %1346 = vmatpush1.msra.mxu0 0.0
    %1347 = vmatprep.subr.mxu0 0.0
    %1348 = vmatpush1.msra.mxu0 0.0
    %1349 = vmatprep.subr.mxu0 0.0
    %1350 = vmatpush1.msra.mxu0 0.0
    %1351 = vmatprep.subr.mxu0 0.0
    %1352 = vmatpush1.msra.mxu0 0.0
    %1353 = vmatprep.subr.mxu0 0.0
    %1354 = vmatpush1.msra.mxu0 0.0
    %1355 = vmatprep.subr.mxu0 0.0
    %1356 = vmatpush1.msra.mxu0 0.0
    %1357 = vmatprep.subr.mxu0 0.0
    %1358 = vmatpush1.msra.mxu0 0.0
    %1359 = vmatprep.subr.mxu0 0.0
    %1360 = vmatpush1.msra.mxu0 0.0
    %1361 = vmatprep.subr.mxu0 0.0
    %1362 = vmatpush1.msra.mxu0 0.0
    %1363 = vmatprep.subr.mxu0 0.0
    %1364 = vmatpush1.msra.mxu0 0.0
    %1365 = vmatprep.subr.mxu0 0.0
    %1366 = vmatpush1.msra.mxu0 0.0
    %1367 = vmatprep.subr.mxu0 0.0
    %1368 = vmatpush1.msra.mxu0 0.0
    %1369 = vmatprep.subr.mxu0 0.0
    %1370 = vmatpush1.msra.mxu0 0.0
    %1371 = vmatprep.subr.mxu0 0.0
    %1372 = vmatpush1.msra.mxu0 0.0
    %1373 = vmatprep.subr.mxu0 0.0
    %1374 = vmatpush1.msra.mxu0 0.0
    %1375 = vmatprep.subr.mxu0 0.0
    %1376 = vmatpush1.msra.mxu0 0.0
    %1377 = vmatprep.subr.mxu0 0.0
    %1378 = vmatpush1.msra.mxu0 0.0
    %1379 = vmatprep.subr.mxu0 0.0
    %1380 = vmatpush1.msra.mxu0 0.0
    %1381 = vmatprep.mubr.f32.mxu0 0.0
    %1382 = vmatmul.mubr.f32.gmra.mrb[0].mxu0 %v1312
    %v1383 = vpop.f32.mrb[0].mxu0
    %v1384 = vadd.f32 %v1301, %v1383
    %v1385 = vpop.f32.mrb[0].mxu0
    %v1386 = vadd.f32 %v1303, %v1385
    %1387 = vmatprep.mubr.f32.mxu0 0.0
    %1388 = vmatmul.mubr.f32.gmra.mrb[0].mxu0 %v1315
    %v1389 = vpop.f32.mrb[0].mxu0
    %v1390 = vadd.f32 %v1307, %v1389
    %v1391 = vpop.f32.mrb[0].mxu0
    %v1392 = vadd.f32 %v1309, %v1391
    %1393 = vdwg.mxu0
    %v1394 = vld [vmem:[%s9] sm:$0x3]
    %v1396 = vlaneseq
    %v1397 = vshrl.u32 %v1396, 7
    %v1398 = vsub.s32 0, %v1397
    %v1399 = vrot.slane %v1394, %v1398
    %v1400 = vlaneseq
    %v1401 = vshrl.u32 %v1400, 7
    %v1402 = vsub.s32 1, %v1401
    %v1403 = vrot.slane %v1394, %v1402
    %v1406 = vadd.f32 %v1384, %v1399
    %v1407 = vadd.f32 %v1386, %v1403
    %v1408 = vadd.f32 %v1390, %v1399
    %v1409 = vadd.f32 %v1392, %v1403
    %v1410 = vld [vmem:[#allocation10] sm:$0xff]
    %v1411 = vld [vmem:[#allocation10 + $0x8] sm:$0xff]
    %v1412 = vld [vmem:[#allocation10 + $0x10] sm:$0xff]
    %v1413 = vld [vmem:[#allocation10 + $0x18] sm:$0xff]
    %v1414 = vld [vmem:[#allocation10 + $0x20] sm:$0xff]
    %v1415 = vld [vmem:[#allocation10 + $0x28] sm:$0xff]
    %v1416 = vld [vmem:[#allocation10 + $0x30] sm:$0xff]
    %v1417 = vld [vmem:[#allocation10 + $0x38] sm:$0xff]
    %v1418 = vld [vmem:[#allocation10 + $0x40] sm:$0xff]
    %v1419 = vld [vmem:[#allocation10 + $0x48] sm:$0xff]
    %v1420 = vld [vmem:[#allocation10 + $0x50] sm:$0xff]
    %v1421 = vld [vmem:[#allocation10 + $0x58] sm:$0xff]
    %v1422 = vld [vmem:[#allocation10 + $0x60] sm:$0xff]
    %v1423 = vld [vmem:[#allocation10 + $0x68] sm:$0xff]
    %v1424 = vld [vmem:[#allocation10 + $0x70] sm:$0xff]
    %v1425 = vld [vmem:[#allocation10 + $0x78] sm:$0xff]
    %1426 = vmatprep.subr.mxu0 %v1411
    %1427 = vmatpush1.msra.mxu0 %v1410
    %1428 = vmatprep.subr.mxu0 %v1413
    %1429 = vmatpush1.msra.mxu0 %v1412
    %1430 = vmatprep.subr.mxu0 %v1415
    %1431 = vmatpush1.msra.mxu0 %v1414
    %1432 = vmatprep.subr.mxu0 %v1417
    %1433 = vmatpush1.msra.mxu0 %v1416
    %1434 = vmatprep.subr.mxu0 %v1419
    %1435 = vmatpush1.msra.mxu0 %v1418
    %1436 = vmatprep.subr.mxu0 %v1421
    %1437 = vmatpush1.msra.mxu0 %v1420
    %1438 = vmatprep.subr.mxu0 %v1423
    %1439 = vmatpush1.msra.mxu0 %v1422
    %1440 = vmatprep.subr.mxu0 %v1425
    %1441 = vmatpush1.msra.mxu0 %v1424
    %1442 = vmatprep.subr.mxu0 0.0
    %1443 = vmatpush1.msra.mxu0 0.0
    %1444 = vmatprep.subr.mxu0 0.0
    %1445 = vmatpush1.msra.mxu0 0.0
    %1446 = vmatprep.subr.mxu0 0.0
    %1447 = vmatpush1.msra.mxu0 0.0
    %1448 = vmatprep.subr.mxu0 0.0
    %1449 = vmatpush1.msra.mxu0 0.0
    %1450 = vmatprep.subr.mxu0 0.0
    %1451 = vmatpush1.msra.mxu0 0.0
    %1452 = vmatprep.subr.mxu0 0.0
    %1453 = vmatpush1.msra.mxu0 0.0
    %1454 = vmatprep.subr.mxu0 0.0
    %1455 = vmatpush1.msra.mxu0 0.0
    %1456 = vmatprep.subr.mxu0 0.0
    %1457 = vmatpush1.msra.mxu0 0.0
    %1458 = vmatprep.subr.mxu0 0.0
    %1459 = vmatpush1.msra.mxu0 0.0
    %1460 = vmatprep.subr.mxu0 0.0
    %1461 = vmatpush1.msra.mxu0 0.0
    %1462 = vmatprep.subr.mxu0 0.0
    %1463 = vmatpush1.msra.mxu0 0.0
    %1464 = vmatprep.subr.mxu0 0.0
    %1465 = vmatpush1.msra.mxu0 0.0
    %1466 = vmatprep.subr.mxu0 0.0
    %1467 = vmatpush1.msra.mxu0 0.0
    %1468 = vmatprep.subr.mxu0 0.0
    %1469 = vmatpush1.msra.mxu0 0.0
    %1470 = vmatprep.subr.mxu0 0.0
    %1471 = vmatpush1.msra.mxu0 0.0
    %1472 = vmatprep.subr.mxu0 0.0
    %1473 = vmatpush1.msra.mxu0 0.0
    %1474 = vmatprep.subr.mxu0 0.0
    %1475 = vmatpush1.msra.mxu0 0.0
    %1476 = vmatprep.subr.mxu0 0.0
    %1477 = vmatpush1.msra.mxu0 0.0
    %1478 = vmatprep.subr.mxu0 0.0
    %1479 = vmatpush1.msra.mxu0 0.0
    %1480 = vmatprep.subr.mxu0 0.0
    %1481 = vmatpush1.msra.mxu0 0.0
    %1482 = vmatprep.subr.mxu0 0.0
    %1483 = vmatpush1.msra.mxu0 0.0
    %1484 = vmatprep.subr.mxu0 0.0
    %1485 = vmatpush1.msra.mxu0 0.0
    %1486 = vmatprep.subr.mxu0 0.0
    %1487 = vmatpush1.msra.mxu0 0.0
    %1488 = vmatprep.subr.mxu0 0.0
    %1489 = vmatpush1.msra.mxu0 0.0
    %1490 = vmatprep.mubr.f32.mxu0 0.0
    %1491 = vmatmul.mubr.f32.gmra.mrb[0].mxu0 %v338
    %v1492 = vpop.f32.mrb[0].mxu0
    %v1493 = vadd.f32 %v1406, %v1492
    %v1494 = vpop.f32.mrb[0].mxu0
    %v1495 = vadd.f32 %v1407, %v1494
    %1496 = vdwg.mxu0
    %v1497 = vxor.u32 %v1493, 2147483648
    %v1498 = vmul.f32 %v1497, 1.442695
    %v1499 = vpow.pop %v1498
    %v1500 = vadd.f32 %v1499, 1.0
    %v1501 = vrcp.pop %v1500
    %v1502 = vmul.f32 1.0, %v1501
    %v1503 = vtanh.pop %v1495
    %v1504 = vxor.u32 %v1495, 2147483648
    %v1505 = vmul.f32 %v1504, 1.442695
    %v1506 = vpow.pop %v1505
    %v1507 = vadd.f32 %v1506, 1.0
    %v1508 = vrcp.pop %v1507
    %v1509 = vmul.f32 1.0, %v1508
    %v1510 = vmul.f32 %v1502, 0.0
    %v1511 = vmul.f32 %v1502, %v1503
    %1513 = vrot.lane.b32.xlu0 %v1511, 64
    %v1514 = vpop.permute.xlu0 %1513
    %v1516 = vadd.f32 %v1510, %v1514
    %v1517 = vtanh.pop %v1516
    %v1518 = vmul.f32 %v1509, %v1517
    %1520 = vrot.lane.b32.xlu0 %v1518, 64
    %v1521 = vpop.permute.xlu0 %1520
    %1523 = vst.msk [vmem:[#allocation2] sm:$0x3] %vm437, %v1521
    %1524 = vst.msk [vmem:[#allocation2 + $0xe] sm:$0x3] %vm439, %v1521
    %v1527 = vrot.slane %v1406, 2
    %v1528 = vrot.slane %v1407, 2
    %v1531 = vsel %vm336, %v1521, 0
    %1533 = vmatprep.subr.mxu0 %v1411
    %1534 = vmatpush1.msra.mxu0 %v1410
    %1535 = vmatprep.subr.mxu0 %v1413
    %1536 = vmatpush1.msra.mxu0 %v1412
    %1537 = vmatprep.subr.mxu0 %v1415
    %1538 = vmatpush1.msra.mxu0 %v1414
    %1539 = vmatprep.subr.mxu0 %v1417
    %1540 = vmatpush1.msra.mxu0 %v1416
    %1541 = vmatprep.subr.mxu0 %v1419
    %1542 = vmatpush1.msra.mxu0 %v1418
    %1543 = vmatprep.subr.mxu0 %v1421
    %1544 = vmatpush1.msra.mxu0 %v1420
    %1545 = vmatprep.subr.mxu0 %v1423
    %1546 = vmatpush1.msra.mxu0 %v1422
    %1547 = vmatprep.subr.mxu0 %v1425
    %1548 = vmatpush1.msra.mxu0 %v1424
    %1549 = vmatprep.subr.mxu0 0.0
    %1550 = vmatpush1.msra.mxu0 0.0
    %1551 = vmatprep.subr.mxu0 0.0
    %1552 = vmatpush1.msra.mxu0 0.0
    %1553 = vmatprep.subr.mxu0 0.0
    %1554 = vmatpush1.msra.mxu0 0.0
    %1555 = vmatprep.subr.mxu0 0.0
    %1556 = vmatpush1.msra.mxu0 0.0
    %1557 = vmatprep.subr.mxu0 0.0
    %1558 = vmatpush1.msra.mxu0 0.0
    %1559 = vmatprep.subr.mxu0 0.0
    %1560 = vmatpush1.msra.mxu0 0.0
    %1561 = vmatprep.subr.mxu0 0.0
    %1562 = vmatpush1.msra.mxu0 0.0
    %1563 = vmatprep.subr.mxu0 0.0
    %1564 = vmatpush1.msra.mxu0 0.0
    %1565 = vmatprep.subr.mxu0 0.0
    %1566 = vmatpush1.msra.mxu0 0.0
    %1567 = vmatprep.subr.mxu0 0.0
    %1568 = vmatpush1.msra.mxu0 0.0
    %1569 = vmatprep.subr.mxu0 0.0
    %1570 = vmatpush1.msra.mxu0 0.0
    %1571 = vmatprep.subr.mxu0 0.0
    %1572 = vmatpush1.msra.mxu0 0.0
    %1573 = vmatprep.subr.mxu0 0.0
    %1574 = vmatpush1.msra.mxu0 0.0
    %1575 = vmatprep.subr.mxu0 0.0
    %1576 = vmatpush1.msra.mxu0 0.0
    %1577 = vmatprep.subr.mxu0 0.0
    %1578 = vmatpush1.msra.mxu0 0.0
    %1579 = vmatprep.subr.mxu0 0.0
    %1580 = vmatpush1.msra.mxu0 0.0
    %1581 = vmatprep.subr.mxu0 0.0
    %1582 = vmatpush1.msra.mxu0 0.0
    %1583 = vmatprep.subr.mxu0 0.0
    %1584 = vmatpush1.msra.mxu0 0.0
    %1585 = vmatprep.subr.mxu0 0.0
    %1586 = vmatpush1.msra.mxu0 0.0
    %1587 = vmatprep.subr.mxu0 0.0
    %1588 = vmatpush1.msra.mxu0 0.0
    %1589 = vmatprep.subr.mxu0 0.0
    %1590 = vmatpush1.msra.mxu0 0.0
    %1591 = vmatprep.subr.mxu0 0.0
    %1592 = vmatpush1.msra.mxu0 0.0
    %1593 = vmatprep.subr.mxu0 0.0
    %1594 = vmatpush1.msra.mxu0 0.0
    %1595 = vmatprep.subr.mxu0 0.0
    %1596 = vmatpush1.msra.mxu0 0.0
    %1597 = vmatprep.mubr.f32.mxu0 0.0
    %1598 = vmatmul.mubr.f32.gmra.mrb[0].mxu0 %v1531
    %v1599 = vpop.f32.mrb[0].mxu0
    %v1600 = vadd.f32 %v1527, %v1599
    %v1601 = vpop.f32.mrb[0].mxu0
    %v1602 = vadd.f32 %v1528, %v1601
    %1603 = vdwg.mxu0
    %v1604 = vxor.u32 %v1600, 2147483648
    %v1605 = vmul.f32 %v1604, 1.442695
    %v1606 = vpow.pop %v1605
    %v1607 = vadd.f32 %v1606, 1.0
    %v1608 = vrcp.pop %v1607
    %v1609 = vmul.f32 1.0, %v1608
    %v1610 = vtanh.pop %v1602
    %v1611 = vxor.u32 %v1602, 2147483648
    %v1612 = vmul.f32 %v1611, 1.442695
    %v1613 = vpow.pop %v1612
    %v1614 = vadd.f32 %v1613, 1.0
    %v1615 = vrcp.pop %v1614
    %v1616 = vmul.f32 1.0, %v1615
    %v1617 = vmul.f32 %v1609, %v1516
    %v1618 = vmul.f32 %v1609, %v1610
    %1620 = vrot.lane.b32.xlu0 %v1618, 64
    %v1621 = vpop.permute.xlu0 %1620
    %v1623 = vadd.f32 %v1617, %v1621
    %v1624 = vtanh.pop %v1623
    %v1625 = vmul.f32 %v1616, %v1624
    %1627 = vrot.lane.b32.xlu0 %v1625, 64
    %v1628 = vpop.permute.xlu0 %1627
    %1630 = vst.msk [vmem:[#allocation2 + $0x2] sm:$0x3] %vm437, %v1628
    %1631 = vst.msk [vmem:[#allocation2 + $0xc] sm:$0x3] %vm439, %v1628
    %v1632 = vrot.slane %v1406, 4
    %v1633 = vrot.slane %v1407, 4
    %v1636 = vsel %vm336, %v1628, 0
    %1638 = vmatprep.subr.mxu0 %v1411
    %1639 = vmatpush1.msra.mxu0 %v1410
    %1640 = vmatprep.subr.mxu0 %v1413
    %1641 = vmatpush1.msra.mxu0 %v1412
    %1642 = vmatprep.subr.mxu0 %v1415
    %1643 = vmatpush1.msra.mxu0 %v1414
    %1644 = vmatprep.subr.mxu0 %v1417
    %1645 = vmatpush1.msra.mxu0 %v1416
    %1646 = vmatprep.subr.mxu0 %v1419
    %1647 = vmatpush1.msra.mxu0 %v1418
    %1648 = vmatprep.subr.mxu0 %v1421
    %1649 = vmatpush1.msra.mxu0 %v1420
    %1650 = vmatprep.subr.mxu0 %v1423
    %1651 = vmatpush1.msra.mxu0 %v1422
    %1652 = vmatprep.subr.mxu0 %v1425
    %1653 = vmatpush1.msra.mxu0 %v1424
    %1654 = vmatprep.subr.mxu0 0.0
    %1655 = vmatpush1.msra.mxu0 0.0
    %1656 = vmatprep.subr.mxu0 0.0
    %1657 = vmatpush1.msra.mxu0 0.0
    %1658 = vmatprep.subr.mxu0 0.0
    %1659 = vmatpush1.msra.mxu0 0.0
    %1660 = vmatprep.subr.mxu0 0.0
    %1661 = vmatpush1.msra.mxu0 0.0
    %1662 = vmatprep.subr.mxu0 0.0
    %1663 = vmatpush1.msra.mxu0 0.0
    %1664 = vmatprep.subr.mxu0 0.0
    %1665 = vmatpush1.msra.mxu0 0.0
    %1666 = vmatprep.subr.mxu0 0.0
    %1667 = vmatpush1.msra.mxu0 0.0
    %1668 = vmatprep.subr.mxu0 0.0
    %1669 = vmatpush1.msra.mxu0 0.0
    %1670 = vmatprep.subr.mxu0 0.0
    %1671 = vmatpush1.msra.mxu0 0.0
    %1672 = vmatprep.subr.mxu0 0.0
    %1673 = vmatpush1.msra.mxu0 0.0
    %1674 = vmatprep.subr.mxu0 0.0
    %1675 = vmatpush1.msra.mxu0 0.0
    %1676 = vmatprep.subr.mxu0 0.0
    %1677 = vmatpush1.msra.mxu0 0.0
    %1678 = vmatprep.subr.mxu0 0.0
    %1679 = vmatpush1.msra.mxu0 0.0
    %1680 = vmatprep.subr.mxu0 0.0
    %1681 = vmatpush1.msra.mxu0 0.0
    %1682 = vmatprep.subr.mxu0 0.0
    %1683 = vmatpush1.msra.mxu0 0.0
    %1684 = vmatprep.subr.mxu0 0.0
    %1685 = vmatpush1.msra.mxu0 0.0
    %1686 = vmatprep.subr.mxu0 0.0
    %1687 = vmatpush1.msra.mxu0 0.0
    %1688 = vmatprep.subr.mxu0 0.0
    %1689 = vmatpush1.msra.mxu0 0.0
    %1690 = vmatprep.subr.mxu0 0.0
    %1691 = vmatpush1.msra.mxu0 0.0
    %1692 = vmatprep.subr.mxu0 0.0
    %1693 = vmatpush1.msra.mxu0 0.0
    %1694 = vmatprep.subr.mxu0 0.0
    %1695 = vmatpush1.msra.mxu0 0.0
    %1696 = vmatprep.subr.mxu0 0.0
    %1697 = vmatpush1.msra.mxu0 0.0
    %1698 = vmatprep.subr.mxu0 0.0
    %1699 = vmatpush1.msra.mxu0 0.0
    %1700 = vmatprep.subr.mxu0 0.0
    %1701 = vmatpush1.msra.mxu0 0.0
    %1702 = vmatprep.mubr.f32.mxu0 0.0
    %1703 = vmatmul.mubr.f32.gmra.mrb[0].mxu0 %v1636
    %v1704 = vpop.f32.mrb[0].mxu0
    %v1705 = vadd.f32 %v1632, %v1704
    %v1706 = vpop.f32.mrb[0].mxu0
    %v1707 = vadd.f32 %v1633, %v1706
    %1708 = vdwg.mxu0
    %v1709 = vxor.u32 %v1705, 2147483648
    %v1710 = vmul.f32 %v1709, 1.442695
    %v1711 = vpow.pop %v1710
    %v1712 = vadd.f32 %v1711, 1.0
    %v1713 = vrcp.pop %v1712
    %v1714 = vmul.f32 1.0, %v1713
    %v1715 = vtanh.pop %v1707
    %v1716 = vxor.u32 %v1707, 2147483648
    %v1717 = vmul.f32 %v1716, 1.442695
    %v1718 = vpow.pop %v1717
    %v1719 = vadd.f32 %v1718, 1.0
    %v1720 = vrcp.pop %v1719
    %v1721 = vmul.f32 1.0, %v1720
    %v1722 = vmul.f32 %v1714, %v1623
    %v1723 = vmul.f32 %v1714, %v1715
    %1725 = vrot.lane.b32.xlu0 %v1723, 64
    %v1726 = vpop.permute.xlu0 %1725
    %v1728 = vadd.f32 %v1722, %v1726
    %v1729 = vtanh.pop %v1728
    %v1730 = vmul.f32 %v1721, %v1729
    %1732 = vrot.lane.b32.xlu0 %v1730, 64
    %v1733 = vpop.permute.xlu0 %1732
    %1735 = vst.msk [vmem:[#allocation2 + $0x4] sm:$0x3] %vm437, %v1733
    %1736 = vst.msk [vmem:[#allocation2 + $0xa] sm:$0x3] %vm439, %v1733
    %v1737 = vrot.slane %v1406, 6
    %v1738 = vrot.slane %v1407, 6
    %v1741 = vsel %vm336, %v1733, 0
    %1743 = vmatprep.subr.mxu0 %v1411
    %1744 = vmatpush1.msra.mxu0 %v1410
    %1745 = vmatprep.subr.mxu0 %v1413
    %1746 = vmatpush1.msra.mxu0 %v1412
    %1747 = vmatprep.subr.mxu0 %v1415
    %1748 = vmatpush1.msra.mxu0 %v1414
    %1749 = vmatprep.subr.mxu0 %v1417
    %1750 = vmatpush1.msra.mxu0 %v1416
    %1751 = vmatprep.subr.mxu0 %v1419
    %1752 = vmatpush1.msra.mxu0 %v1418
    %1753 = vmatprep.subr.mxu0 %v1421
    %1754 = vmatpush1.msra.mxu0 %v1420
    %1755 = vmatprep.subr.mxu0 %v1423
    %1756 = vmatpush1.msra.mxu0 %v1422
    %1757 = vmatprep.subr.mxu0 %v1425
    %1758 = vmatpush1.msra.mxu0 %v1424
    %1759 = vmatprep.subr.mxu0 0.0
    %1760 = vmatpush1.msra.mxu0 0.0
    %1761 = vmatprep.subr.mxu0 0.0
    %1762 = vmatpush1.msra.mxu0 0.0
    %1763 = vmatprep.subr.mxu0 0.0
    %1764 = vmatpush1.msra.mxu0 0.0
    %1765 = vmatprep.subr.mxu0 0.0
    %1766 = vmatpush1.msra.mxu0 0.0
    %1767 = vmatprep.subr.mxu0 0.0
    %1768 = vmatpush1.msra.mxu0 0.0
    %1769 = vmatprep.subr.mxu0 0.0
    %1770 = vmatpush1.msra.mxu0 0.0
    %1771 = vmatprep.subr.mxu0 0.0
    %1772 = vmatpush1.msra.mxu0 0.0
    %1773 = vmatprep.subr.mxu0 0.0
    %1774 = vmatpush1.msra.mxu0 0.0
    %1775 = vmatprep.subr.mxu0 0.0
    %1776 = vmatpush1.msra.mxu0 0.0
    %1777 = vmatprep.subr.mxu0 0.0
    %1778 = vmatpush1.msra.mxu0 0.0
    %1779 = vmatprep.subr.mxu0 0.0
    %1780 = vmatpush1.msra.mxu0 0.0
    %1781 = vmatprep.subr.mxu0 0.0
    %1782 = vmatpush1.msra.mxu0 0.0
    %1783 = vmatprep.subr.mxu0 0.0
    %1784 = vmatpush1.msra.mxu0 0.0
    %1785 = vmatprep.subr.mxu0 0.0
    %1786 = vmatpush1.msra.mxu0 0.0
    %1787 = vmatprep.subr.mxu0 0.0
    %1788 = vmatpush1.msra.mxu0 0.0
    %1789 = vmatprep.subr.mxu0 0.0
    %1790 = vmatpush1.msra.mxu0 0.0
    %1791 = vmatprep.subr.mxu0 0.0
    %1792 = vmatpush1.msra.mxu0 0.0
    %1793 = vmatprep.subr.mxu0 0.0
    %1794 = vmatpush1.msra.mxu0 0.0
    %1795 = vmatprep.subr.mxu0 0.0
    %1796 = vmatpush1.msra.mxu0 0.0
    %1797 = vmatprep.subr.mxu0 0.0
    %1798 = vmatpush1.msra.mxu0 0.0
    %1799 = vmatprep.subr.mxu0 0.0
    %1800 = vmatpush1.msra.mxu0 0.0
    %1801 = vmatprep.subr.mxu0 0.0
    %1802 = vmatpush1.msra.mxu0 0.0
    %1803 = vmatprep.subr.mxu0 0.0
    %1804 = vmatpush1.msra.mxu0 0.0
    %1805 = vmatprep.subr.mxu0 0.0
    %1806 = vmatpush1.msra.mxu0 0.0
    %1807 = vmatprep.mubr.f32.mxu0 0.0
    %1808 = vmatmul.mubr.f32.gmra.mrb[0].mxu0 %v1741
    %v1809 = vpop.f32.mrb[0].mxu0
    %v1810 = vadd.f32 %v1737, %v1809
    %v1811 = vpop.f32.mrb[0].mxu0
    %v1812 = vadd.f32 %v1738, %v1811
    %1813 = vdwg.mxu0
    %v1814 = vxor.u32 %v1810, 2147483648
    %v1815 = vmul.f32 %v1814, 1.442695
    %v1816 = vpow.pop %v1815
    %v1817 = vadd.f32 %v1816, 1.0
    %v1818 = vrcp.pop %v1817
    %v1819 = vmul.f32 1.0, %v1818
    %v1820 = vtanh.pop %v1812
    %v1821 = vxor.u32 %v1812, 2147483648
    %v1822 = vmul.f32 %v1821, 1.442695
    %v1823 = vpow.pop %v1822
    %v1824 = vadd.f32 %v1823, 1.0
    %v1825 = vrcp.pop %v1824
    %v1826 = vmul.f32 1.0, %v1825
    %v1827 = vmul.f32 %v1819, %v1728
    %v1828 = vmul.f32 %v1819, %v1820
    %1830 = vrot.lane.b32.xlu0 %v1828, 64
    %v1831 = vpop.permute.xlu0 %1830
    %v1833 = vadd.f32 %v1827, %v1831
    %v1834 = vtanh.pop %v1833
    %v1835 = vmul.f32 %v1826, %v1834
    %1837 = vrot.lane.b32.xlu0 %v1835, 64
    %v1838 = vpop.permute.xlu0 %1837
    %1840 = vst.msk [vmem:[#allocation2 + $0x6] sm:$0x3] %vm437, %v1838
    %1841 = vst.msk [vmem:[#allocation2 + $0x8] sm:$0x3] %vm439, %v1838
    %v1842 = vsel %vm336, %v1838, 0
    %1844 = vmatprep.subr.mxu0 %v1411
    %1845 = vmatpush1.msra.mxu0 %v1410
    %1846 = vmatprep.subr.mxu0 %v1413
    %1847 = vmatpush1.msra.mxu0 %v1412
    %1848 = vmatprep.subr.mxu0 %v1415
    %1849 = vmatpush1.msra.mxu0 %v1414
    %1850 = vmatprep.subr.mxu0 %v1417
    %1851 = vmatpush1.msra.mxu0 %v1416
    %1852 = vmatprep.subr.mxu0 %v1419
    %1853 = vmatpush1.msra.mxu0 %v1418
    %1854 = vmatprep.subr.mxu0 %v1421
    %1855 = vmatpush1.msra.mxu0 %v1420
    %1856 = vmatprep.subr.mxu0 %v1423
    %1857 = vmatpush1.msra.mxu0 %v1422
    %1858 = vmatprep.subr.mxu0 %v1425
    %1859 = vmatpush1.msra.mxu0 %v1424
    %1860 = vmatprep.subr.mxu0 0.0
    %1861 = vmatpush1.msra.mxu0 0.0
    %1862 = vmatprep.subr.mxu0 0.0
    %1863 = vmatpush1.msra.mxu0 0.0
    %1864 = vmatprep.subr.mxu0 0.0
    %1865 = vmatpush1.msra.mxu0 0.0
    %1866 = vmatprep.subr.mxu0 0.0
    %1867 = vmatpush1.msra.mxu0 0.0
    %1868 = vmatprep.subr.mxu0 0.0
    %1869 = vmatpush1.msra.mxu0 0.0
    %1870 = vmatprep.subr.mxu0 0.0
    %1871 = vmatpush1.msra.mxu0 0.0
    %1872 = vmatprep.subr.mxu0 0.0
    %1873 = vmatpush1.msra.mxu0 0.0
    %1874 = vmatprep.subr.mxu0 0.0
    %1875 = vmatpush1.msra.mxu0 0.0
    %1876 = vmatprep.subr.mxu0 0.0
    %1877 = vmatpush1.msra.mxu0 0.0
    %1878 = vmatprep.subr.mxu0 0.0
    %1879 = vmatpush1.msra.mxu0 0.0
    %1880 = vmatprep.subr.mxu0 0.0
    %1881 = vmatpush1.msra.mxu0 0.0
    %1882 = vmatprep.subr.mxu0 0.0
    %1883 = vmatpush1.msra.mxu0 0.0
    %1884 = vmatprep.subr.mxu0 0.0
    %1885 = vmatpush1.msra.mxu0 0.0
    %1886 = vmatprep.subr.mxu0 0.0
    %1887 = vmatpush1.msra.mxu0 0.0
    %1888 = vmatprep.subr.mxu0 0.0
    %1889 = vmatpush1.msra.mxu0 0.0
    %1890 = vmatprep.subr.mxu0 0.0
    %1891 = vmatpush1.msra.mxu0 0.0
    %1892 = vmatprep.subr.mxu0 0.0
    %1893 = vmatpush1.msra.mxu0 0.0
    %1894 = vmatprep.subr.mxu0 0.0
    %1895 = vmatpush1.msra.mxu0 0.0
    %1896 = vmatprep.subr.mxu0 0.0
    %1897 = vmatpush1.msra.mxu0 0.0
    %1898 = vmatprep.subr.mxu0 0.0
    %1899 = vmatpush1.msra.mxu0 0.0
    %1900 = vmatprep.subr.mxu0 0.0
    %1901 = vmatpush1.msra.mxu0 0.0
    %1902 = vmatprep.subr.mxu0 0.0
    %1903 = vmatpush1.msra.mxu0 0.0
    %1904 = vmatprep.subr.mxu0 0.0
    %1905 = vmatpush1.msra.mxu0 0.0
    %1906 = vmatprep.subr.mxu0 0.0
    %1907 = vmatpush1.msra.mxu0 0.0
    %1908 = vmatprep.mubr.f32.mxu0 0.0
    %1909 = vmatmul.mubr.f32.gmra.mrb[0].mxu0 %v1842
    %v1910 = vpop.f32.mrb[0].mxu0
    %v1911 = vadd.f32 %v1408, %v1910
    %v1912 = vpop.f32.mrb[0].mxu0
    %v1913 = vadd.f32 %v1409, %v1912
    %1914 = vdwg.mxu0
    %v1915 = vxor.u32 %v1911, 2147483648
    %v1916 = vmul.f32 %v1915, 1.442695
    %v1917 = vpow.pop %v1916
    %v1918 = vadd.f32 %v1917, 1.0
    %v1919 = vrcp.pop %v1918
    %v1920 = vmul.f32 1.0, %v1919
    %v1921 = vtanh.pop %v1913
    %v1922 = vxor.u32 %v1913, 2147483648
    %v1923 = vmul.f32 %v1922, 1.442695
    %v1924 = vpow.pop %v1923
    %v1925 = vadd.f32 %v1924, 1.0
    %v1926 = vrcp.pop %v1925
    %v1927 = vmul.f32 1.0, %v1926
    %v1928 = vmul.f32 %v1920, %v1833
    %v1929 = vmul.f32 %v1920, %v1921
    %1931 = vrot.lane.b32.xlu0 %v1929, 64
    %v1932 = vpop.permute.xlu0 %1931
    %v1934 = vadd.f32 %v1928, %v1932
    %v1935 = vtanh.pop %v1934
    %v1936 = vmul.f32 %v1927, %v1935
    %1938 = vrot.lane.b32.xlu0 %v1936, 64
    %v1939 = vpop.permute.xlu0 %1938
    %1941 = vst.msk [vmem:[#allocation2 + $0x8] sm:$0x3] %vm437, %v1939
    %1942 = vst.msk [vmem:[#allocation2 + $0x6] sm:$0x3] %vm439, %v1939
    %v1945 = vrot.slane %v1408, 2
    %v1946 = vrot.slane %v1409, 2
    %v1949 = vsel %vm336, %v1939, 0
    %1951 = vmatprep.subr.mxu0 %v1411
    %1952 = vmatpush1.msra.mxu0 %v1410
    %1953 = vmatprep.subr.mxu0 %v1413
    %1954 = vmatpush1.msra.mxu0 %v1412
    %1955 = vmatprep.subr.mxu0 %v1415
    %1956 = vmatpush1.msra.mxu0 %v1414
    %1957 = vmatprep.subr.mxu0 %v1417
    %1958 = vmatpush1.msra.mxu0 %v1416
    %1959 = vmatprep.subr.mxu0 %v1419
    %1960 = vmatpush1.msra.mxu0 %v1418
    %1961 = vmatprep.subr.mxu0 %v1421
    %1962 = vmatpush1.msra.mxu0 %v1420
    %1963 = vmatprep.subr.mxu0 %v1423
    %1964 = vmatpush1.msra.mxu0 %v1422
    %1965 = vmatprep.subr.mxu0 %v1425
    %1966 = vmatpush1.msra.mxu0 %v1424
    %1967 = vmatprep.subr.mxu0 0.0
    %1968 = vmatpush1.msra.mxu0 0.0
    %1969 = vmatprep.subr.mxu0 0.0
    %1970 = vmatpush1.msra.mxu0 0.0
    %1971 = vmatprep.subr.mxu0 0.0
    %1972 = vmatpush1.msra.mxu0 0.0
    %1973 = vmatprep.subr.mxu0 0.0
    %1974 = vmatpush1.msra.mxu0 0.0
    %1975 = vmatprep.subr.mxu0 0.0
    %1976 = vmatpush1.msra.mxu0 0.0
    %1977 = vmatprep.subr.mxu0 0.0
    %1978 = vmatpush1.msra.mxu0 0.0
    %1979 = vmatprep.subr.mxu0 0.0
    %1980 = vmatpush1.msra.mxu0 0.0
    %1981 = vmatprep.subr.mxu0 0.0
    %1982 = vmatpush1.msra.mxu0 0.0
    %1983 = vmatprep.subr.mxu0 0.0
    %1984 = vmatpush1.msra.mxu0 0.0
    %1985 = vmatprep.subr.mxu0 0.0
    %1986 = vmatpush1.msra.mxu0 0.0
    %1987 = vmatprep.subr.mxu0 0.0
    %1988 = vmatpush1.msra.mxu0 0.0
    %1989 = vmatprep.subr.mxu0 0.0
    %1990 = vmatpush1.msra.mxu0 0.0
    %1991 = vmatprep.subr.mxu0 0.0
    %1992 = vmatpush1.msra.mxu0 0.0
    %1993 = vmatprep.subr.mxu0 0.0
    %1994 = vmatpush1.msra.mxu0 0.0
    %1995 = vmatprep.subr.mxu0 0.0
    %1996 = vmatpush1.msra.mxu0 0.0
    %1997 = vmatprep.subr.mxu0 0.0
    %1998 = vmatpush1.msra.mxu0 0.0
    %1999 = vmatprep.subr.mxu0 0.0
    %2000 = vmatpush1.msra.mxu0 0.0
    %2001 = vmatprep.subr.mxu0 0.0
    %2002 = vmatpush1.msra.mxu0 0.0
    %2003 = vmatprep.subr.mxu0 0.0
    %2004 = vmatpush1.msra.mxu0 0.0
    %2005 = vmatprep.subr.mxu0 0.0
    %2006 = vmatpush1.msra.mxu0 0.0
    %2007 = vmatprep.subr.mxu0 0.0
    %2008 = vmatpush1.msra.mxu0 0.0
    %2009 = vmatprep.subr.mxu0 0.0
    %2010 = vmatpush1.msra.mxu0 0.0
    %2011 = vmatprep.subr.mxu0 0.0
    %2012 = vmatpush1.msra.mxu0 0.0
    %2013 = vmatprep.subr.mxu0 0.0
    %2014 = vmatpush1.msra.mxu0 0.0
    %2015 = vmatprep.mubr.f32.mxu0 0.0
    %2016 = vmatmul.mubr.f32.gmra.mrb[0].mxu0 %v1949
    %v2017 = vpop.f32.mrb[0].mxu0
    %v2018 = vadd.f32 %v1945, %v2017
    %v2019 = vpop.f32.mrb[0].mxu0
    %v2020 = vadd.f32 %v1946, %v2019
    %2021 = vdwg.mxu0
    %v2022 = vxor.u32 %v2018, 2147483648
    %v2023 = vmul.f32 %v2022, 1.442695
    %v2024 = vpow.pop %v2023
    %v2025 = vadd.f32 %v2024, 1.0
    %v2026 = vrcp.pop %v2025
    %v2027 = vmul.f32 1.0, %v2026
    %v2028 = vtanh.pop %v2020
    %v2029 = vxor.u32 %v2020, 2147483648
    %v2030 = vmul.f32 %v2029, 1.442695
    %v2031 = vpow.pop %v2030
    %v2032 = vadd.f32 %v2031, 1.0
    %v2033 = vrcp.pop %v2032
    %v2034 = vmul.f32 1.0, %v2033
    %v2035 = vmul.f32 %v2027, %v1934
    %v2036 = vmul.f32 %v2027, %v2028
    %2038 = vrot.lane.b32.xlu0 %v2036, 64
    %v2039 = vpop.permute.xlu0 %2038
    %v2041 = vadd.f32 %v2035, %v2039
    %v2042 = vtanh.pop %v2041
    %v2043 = vmul.f32 %v2034, %v2042
    %2045 = vrot.lane.b32.xlu0 %v2043, 64
    %v2046 = vpop.permute.xlu0 %2045
    %2048 = vst.msk [vmem:[#allocation2 + $0xa] sm:$0x3] %vm437, %v2046
    %2049 = vst.msk [vmem:[#allocation2 + $0x4] sm:$0x3] %vm439, %v2046
    %v2050 = vrot.slane %v1408, 4
    %v2051 = vrot.slane %v1409, 4
    %v2054 = vsel %vm336, %v2046, 0
    %2056 = vmatprep.subr.mxu0 %v1411
    %2057 = vmatpush1.msra.mxu0 %v1410
    %2058 = vmatprep.subr.mxu0 %v1413
    %2059 = vmatpush1.msra.mxu0 %v1412
    %2060 = vmatprep.subr.mxu0 %v1415
    %2061 = vmatpush1.msra.mxu0 %v1414
    %2062 = vmatprep.subr.mxu0 %v1417
    %2063 = vmatpush1.msra.mxu0 %v1416
    %2064 = vmatprep.subr.mxu0 %v1419
    %2065 = vmatpush1.msra.mxu0 %v1418
    %2066 = vmatprep.subr.mxu0 %v1421
    %2067 = vmatpush1.msra.mxu0 %v1420
    %2068 = vmatprep.subr.mxu0 %v1423
    %2069 = vmatpush1.msra.mxu0 %v1422
    %2070 = vmatprep.subr.mxu0 %v1425
    %2071 = vmatpush1.msra.mxu0 %v1424
    %2072 = vmatprep.subr.mxu0 0.0
    %2073 = vmatpush1.msra.mxu0 0.0
    %2074 = vmatprep.subr.mxu0 0.0
    %2075 = vmatpush1.msra.mxu0 0.0
    %2076 = vmatprep.subr.mxu0 0.0
    %2077 = vmatpush1.msra.mxu0 0.0
    %2078 = vmatprep.subr.mxu0 0.0
    %2079 = vmatpush1.msra.mxu0 0.0
    %2080 = vmatprep.subr.mxu0 0.0
    %2081 = vmatpush1.msra.mxu0 0.0
    %2082 = vmatprep.subr.mxu0 0.0
    %2083 = vmatpush1.msra.mxu0 0.0
    %2084 = vmatprep.subr.mxu0 0.0
    %2085 = vmatpush1.msra.mxu0 0.0
    %2086 = vmatprep.subr.mxu0 0.0
    %2087 = vmatpush1.msra.mxu0 0.0
    %2088 = vmatprep.subr.mxu0 0.0
    %2089 = vmatpush1.msra.mxu0 0.0
    %2090 = vmatprep.subr.mxu0 0.0
    %2091 = vmatpush1.msra.mxu0 0.0
    %2092 = vmatprep.subr.mxu0 0.0
    %2093 = vmatpush1.msra.mxu0 0.0
    %2094 = vmatprep.subr.mxu0 0.0
    %2095 = vmatpush1.msra.mxu0 0.0
    %2096 = vmatprep.subr.mxu0 0.0
    %2097 = vmatpush1.msra.mxu0 0.0
    %2098 = vmatprep.subr.mxu0 0.0
    %2099 = vmatpush1.msra.mxu0 0.0
    %2100 = vmatprep.subr.mxu0 0.0
    %2101 = vmatpush1.msra.mxu0 0.0
    %2102 = vmatprep.subr.mxu0 0.0
    %2103 = vmatpush1.msra.mxu0 0.0
    %2104 = vmatprep.subr.mxu0 0.0
    %2105 = vmatpush1.msra.mxu0 0.0
    %2106 = vmatprep.subr.mxu0 0.0
    %2107 = vmatpush1.msra.mxu0 0.0
    %2108 = vmatprep.subr.mxu0 0.0
    %2109 = vmatpush1.msra.mxu0 0.0
    %2110 = vmatprep.subr.mxu0 0.0
    %2111 = vmatpush1.msra.mxu0 0.0
    %2112 = vmatprep.subr.mxu0 0.0
    %2113 = vmatpush1.msra.mxu0 0.0
    %2114 = vmatprep.subr.mxu0 0.0
    %2115 = vmatpush1.msra.mxu0 0.0
    %2116 = vmatprep.subr.mxu0 0.0
    %2117 = vmatpush1.msra.mxu0 0.0
    %2118 = vmatprep.subr.mxu0 0.0
    %2119 = vmatpush1.msra.mxu0 0.0
    %2120 = vmatprep.mubr.f32.mxu0 0.0
    %2121 = vmatmul.mubr.f32.gmra.mrb[0].mxu0 %v2054
    %v2122 = vpop.f32.mrb[0].mxu0
    %v2123 = vadd.f32 %v2050, %v2122
    %v2124 = vpop.f32.mrb[0].mxu0
    %v2125 = vadd.f32 %v2051, %v2124
    %2126 = vdwg.mxu0
    %v2127 = vxor.u32 %v2123, 2147483648
    %v2128 = vmul.f32 %v2127, 1.442695
    %v2129 = vpow.pop %v2128
    %v2130 = vadd.f32 %v2129, 1.0
    %v2131 = vrcp.pop %v2130
    %v2132 = vmul.f32 1.0, %v2131
    %v2133 = vtanh.pop %v2125
    %v2134 = vxor.u32 %v2125, 2147483648
    %v2135 = vmul.f32 %v2134, 1.442695
    %v2136 = vpow.pop %v2135
    %v2137 = vadd.f32 %v2136, 1.0
    %v2138 = vrcp.pop %v2137
    %v2139 = vmul.f32 1.0, %v2138
    %v2140 = vmul.f32 %v2132, %v2041
    %v2141 = vmul.f32 %v2132, %v2133
    %2143 = vrot.lane.b32.xlu0 %v2141, 64
    %v2144 = vpop.permute.xlu0 %2143
    %v2146 = vadd.f32 %v2140, %v2144
    %v2147 = vtanh.pop %v2146
    %v2148 = vmul.f32 %v2139, %v2147
    %2150 = vrot.lane.b32.xlu0 %v2148, 64
    %v2151 = vpop.permute.xlu0 %2150
    %2153 = vst.msk [vmem:[#allocation2 + $0xc] sm:$0x3] %vm437, %v2151
    %2154 = vst.msk [vmem:[#allocation2 + $0x2] sm:$0x3] %vm439, %v2151
    %v2155 = vrot.slane %v1408, 6
    %v2156 = vrot.slane %v1409, 6
    %v2159 = vsel %vm336, %v2151, 0
    %2161 = vmatprep.subr.mxu0 %v1411
    %2162 = vmatpush1.msra.mxu0 %v1410
    %2163 = vmatprep.subr.mxu0 %v1413
    %2164 = vmatpush1.msra.mxu0 %v1412
    %2165 = vmatprep.subr.mxu0 %v1415
    %2166 = vmatpush1.msra.mxu0 %v1414
    %2167 = vmatprep.subr.mxu0 %v1417
    %2168 = vmatpush1.msra.mxu0 %v1416
    %2169 = vmatprep.subr.mxu0 %v1419
    %2170 = vmatpush1.msra.mxu0 %v1418
    %2171 = vmatprep.subr.mxu0 %v1421
    %2172 = vmatpush1.msra.mxu0 %v1420
    %2173 = vmatprep.subr.mxu0 %v1423
    %2174 = vmatpush1.msra.mxu0 %v1422
    %2175 = vmatprep.subr.mxu0 %v1425
    %2176 = vmatpush1.msra.mxu0 %v1424
    %2177 = vmatprep.subr.mxu0 0.0
    %2178 = vmatpush1.msra.mxu0 0.0
    %2179 = vmatprep.subr.mxu0 0.0
    %2180 = vmatpush1.msra.mxu0 0.0
    %2181 = vmatprep.subr.mxu0 0.0
    %2182 = vmatpush1.msra.mxu0 0.0
    %2183 = vmatprep.subr.mxu0 0.0
    %2184 = vmatpush1.msra.mxu0 0.0
    %2185 = vmatprep.subr.mxu0 0.0
    %2186 = vmatpush1.msra.mxu0 0.0
    %2187 = vmatprep.subr.mxu0 0.0
    %2188 = vmatpush1.msra.mxu0 0.0
    %2189 = vmatprep.subr.mxu0 0.0
    %2190 = vmatpush1.msra.mxu0 0.0
    %2191 = vmatprep.subr.mxu0 0.0
    %2192 = vmatpush1.msra.mxu0 0.0
    %2193 = vmatprep.subr.mxu0 0.0
    %2194 = vmatpush1.msra.mxu0 0.0
    %2195 = vmatprep.subr.mxu0 0.0
    %2196 = vmatpush1.msra.mxu0 0.0
    %2197 = vmatprep.subr.mxu0 0.0
    %2198 = vmatpush1.msra.mxu0 0.0
    %2199 = vmatprep.subr.mxu0 0.0
    %2200 = vmatpush1.msra.mxu0 0.0
    %2201 = vmatprep.subr.mxu0 0.0
    %2202 = vmatpush1.msra.mxu0 0.0
    %2203 = vmatprep.subr.mxu0 0.0
    %2204 = vmatpush1.msra.mxu0 0.0
    %2205 = vmatprep.subr.mxu0 0.0
    %2206 = vmatpush1.msra.mxu0 0.0
    %2207 = vmatprep.subr.mxu0 0.0
    %2208 = vmatpush1.msra.mxu0 0.0
    %2209 = vmatprep.subr.mxu0 0.0
    %2210 = vmatpush1.msra.mxu0 0.0
    %2211 = vmatprep.subr.mxu0 0.0
    %2212 = vmatpush1.msra.mxu0 0.0
    %2213 = vmatprep.subr.mxu0 0.0
    %2214 = vmatpush1.msra.mxu0 0.0
    %2215 = vmatprep.subr.mxu0 0.0
    %2216 = vmatpush1.msra.mxu0 0.0
    %2217 = vmatprep.subr.mxu0 0.0
    %2218 = vmatpush1.msra.mxu0 0.0
    %2219 = vmatprep.subr.mxu0 0.0
    %2220 = vmatpush1.msra.mxu0 0.0
    %2221 = vmatprep.subr.mxu0 0.0
    %2222 = vmatpush1.msra.mxu0 0.0
    %2223 = vmatprep.subr.mxu0 0.0
    %2224 = vmatpush1.msra.mxu0 0.0
    %2225 = vmatprep.mubr.f32.mxu0 0.0
    %2226 = vmatmul.mubr.f32.gmra.mrb[0].mxu0 %v2159
    %v2227 = vpop.f32.mrb[0].mxu0
    %v2228 = vadd.f32 %v2155, %v2227
    %v2229 = vpop.f32.mrb[0].mxu0
    %v2230 = vadd.f32 %v2156, %v2229
    %2231 = vdwg.mxu0
    %v2232 = vxor.u32 %v2228, 2147483648
    %v2233 = vmul.f32 %v2232, 1.442695
    %v2234 = vpow.pop %v2233
    %v2235 = vadd.f32 %v2234, 1.0
    %v2236 = vrcp.pop %v2235
    %v2237 = vmul.f32 1.0, %v2236
    %v2238 = vtanh.pop %v2230
    %v2239 = vxor.u32 %v2230, 2147483648
    %v2240 = vmul.f32 %v2239, 1.442695
    %v2241 = vpow.pop %v2240
    %v2242 = vadd.f32 %v2241, 1.0
    %v2243 = vrcp.pop %v2242
    %v2244 = vmul.f32 1.0, %v2243
    %v2245 = vmul.f32 %v2237, %v2146
    %v2246 = vmul.f32 %v2237, %v2238
    %2248 = vrot.lane.b32.xlu0 %v2246, 64
    %v2249 = vpop.permute.xlu0 %2248
    %v2251 = vadd.f32 %v2245, %v2249
    %v2252 = vtanh.pop %v2251
    %v2253 = vmul.f32 %v2244, %v2252
    %2255 = vrot.lane.b32.xlu0 %v2253, 64
    %v2256 = vpop.permute.xlu0 %2255
    %2258 = vst.msk [vmem:[#allocation2 + $0xe] sm:$0x3] %vm437, %v2256
    %2259 = vst.msk [vmem:[#allocation2] sm:$0x3] %vm439, %v2256
    %v2260 = vld [vmem:[#allocation2] sm:$0xff]
    %v2261 = vld [vmem:[#allocation2 + $0x8] sm:$0xff]
    %v2262 = vld [vmem:[%s11] sm:$0x3]
    %v2263 = vld [vmem:[#allocation12] sm:$0xff]
    %v2264 = vld [vmem:[#allocation12 + $0x8] sm:$0xff]
    %v2265 = vld [vmem:[#allocation12 + $0x10] sm:$0xff]
    %v2266 = vld [vmem:[#allocation12 + $0x18] sm:$0xff]
    %v2267 = vld [vmem:[#allocation12 + $0x20] sm:$0xff]
    %v2268 = vld [vmem:[#allocation12 + $0x28] sm:$0xff]
    %v2269 = vld [vmem:[#allocation12 + $0x30] sm:$0xff]
    %v2270 = vld [vmem:[#allocation12 + $0x38] sm:$0xff]
    %v2271 = vld [vmem:[#allocation12 + $0x40] sm:$0xff]
    %v2272 = vld [vmem:[#allocation12 + $0x48] sm:$0xff]
    %v2273 = vld [vmem:[#allocation12 + $0x50] sm:$0xff]
    %v2274 = vld [vmem:[#allocation12 + $0x58] sm:$0xff]
    %v2275 = vld [vmem:[#allocation12 + $0x60] sm:$0xff]
    %v2276 = vld [vmem:[#allocation12 + $0x68] sm:$0xff]
    %v2277 = vld [vmem:[#allocation12 + $0x70] sm:$0xff]
    %v2278 = vld [vmem:[#allocation12 + $0x78] sm:$0xff]
    %v2280 = vsel %vm336, %v2260, 0
    %2282 = vmatprep.subr.mxu0 %v2264
    %2283 = vmatpush1.msra.mxu0 %v2263
    %2284 = vmatprep.subr.mxu0 %v2266
    %2285 = vmatpush1.msra.mxu0 %v2265
    %2286 = vmatprep.subr.mxu0 %v2268
    %2287 = vmatpush1.msra.mxu0 %v2267
    %2288 = vmatprep.subr.mxu0 %v2270
    %2289 = vmatpush1.msra.mxu0 %v2269
    %2290 = vmatprep.subr.mxu0 %v2272
    %2291 = vmatpush1.msra.mxu0 %v2271
    %2292 = vmatprep.subr.mxu0 %v2274
    %2293 = vmatpush1.msra.mxu0 %v2273
    %2294 = vmatprep.subr.mxu0 %v2276
    %2295 = vmatpush1.msra.mxu0 %v2275
    %2296 = vmatprep.subr.mxu0 %v2278
    %2297 = vmatpush1.msra.mxu0 %v2277
    %2298 = vmatprep.subr.mxu0 0.0
    %2299 = vmatpush1.msra.mxu0 0.0
    %2300 = vmatprep.subr.mxu0 0.0
    %2301 = vmatpush1.msra.mxu0 0.0
    %2302 = vmatprep.subr.mxu0 0.0
    %2303 = vmatpush1.msra.mxu0 0.0
    %2304 = vmatprep.subr.mxu0 0.0
    %2305 = vmatpush1.msra.mxu0 0.0
    %2306 = vmatprep.subr.mxu0 0.0
    %2307 = vmatpush1.msra.mxu0 0.0
    %2308 = vmatprep.subr.mxu0 0.0
    %2309 = vmatpush1.msra.mxu0 0.0
    %2310 = vmatprep.subr.mxu0 0.0
    %2311 = vmatpush1.msra.mxu0 0.0
    %2312 = vmatprep.subr.mxu0 0.0
    %2313 = vmatpush1.msra.mxu0 0.0
    %2314 = vmatprep.subr.mxu0 0.0
    %2315 = vmatpush1.msra.mxu0 0.0
    %2316 = vmatprep.subr.mxu0 0.0
    %2317 = vmatpush1.msra.mxu0 0.0
    %2318 = vmatprep.subr.mxu0 0.0
    %2319 = vmatpush1.msra.mxu0 0.0
    %2320 = vmatprep.subr.mxu0 0.0
    %2321 = vmatpush1.msra.mxu0 0.0
    %2322 = vmatprep.subr.mxu0 0.0
    %2323 = vmatpush1.msra.mxu0 0.0
    %2324 = vmatprep.subr.mxu0 0.0
    %2325 = vmatpush1.msra.mxu0 0.0
    %2326 = vmatprep.subr.mxu0 0.0
    %2327 = vmatpush1.msra.mxu0 0.0
    %2328 = vmatprep.subr.mxu0 0.0
    %2329 = vmatpush1.msra.mxu0 0.0
    %2330 = vmatprep.subr.mxu0 0.0
    %2331 = vmatpush1.msra.mxu0 0.0
    %2332 = vmatprep.subr.mxu0 0.0
    %2333 = vmatpush1.msra.mxu0 0.0
    %2334 = vmatprep.subr.mxu0 0.0
    %2335 = vmatpush1.msra.mxu0 0.0
    %2336 = vmatprep.subr.mxu0 0.0
    %2337 = vmatpush1.msra.mxu0 0.0
    %2338 = vmatprep.subr.mxu0 0.0
    %2339 = vmatpush1.msra.mxu0 0.0
    %2340 = vmatprep.subr.mxu0 0.0
    %2341 = vmatpush1.msra.mxu0 0.0
    %2342 = vmatprep.subr.mxu0 0.0
    %2343 = vmatpush1.msra.mxu0 0.0
    %2344 = vmatprep.subr.mxu0 0.0
    %2345 = vmatpush1.msra.mxu0 0.0
    %2346 = vmatprep.mubr.f32.mxu0 0.0
    %2347 = vmatmul.mubr.f32.gmra.mrb[0].mxu0 %v2280
    %v2348 = vpop.f32.mrb[0].mxu0
    %v2349 = vadd.f32 0.0, %v2348
    %v2350 = vpop.f32.mrb[0].mxu0
    %v2351 = vadd.f32 0.0, %v2350
    %2352 = vdwg.mxu0
    %v2354 = vlaneseq
    %v2355 = vshrl.u32 %v2354, 7
    %v2356 = vsub.s32 0, %v2355
    %v2357 = vrot.slane %v2262, %v2356
    %v2358 = vlaneseq
    %v2359 = vshrl.u32 %v2358, 7
    %v2360 = vsub.s32 1, %v2359
    %v2361 = vrot.slane %v2262, %v2360
    %v2364 = vadd.f32 %v2357, %v2349
    %v2365 = vadd.f32 %v2361, %v2351
    %v2366 = vld [vmem:[#allocation12 + $0x80] sm:$0xff]
    %v2367 = vld [vmem:[#allocation12 + $0x88] sm:$0xff]
    %v2368 = vld [vmem:[#allocation12 + $0x90] sm:$0xff]
    %v2369 = vld [vmem:[#allocation12 + $0x98] sm:$0xff]
    %v2370 = vld [vmem:[#allocation12 + $0xa0] sm:$0xff]
    %v2371 = vld [vmem:[#allocation12 + $0xa8] sm:$0xff]
    %v2372 = vld [vmem:[#allocation12 + $0xb0] sm:$0xff]
    %v2373 = vld [vmem:[#allocation12 + $0xb8] sm:$0xff]
    %v2374 = vld [vmem:[#allocation12 + $0xc0] sm:$0xff]
    %v2375 = vld [vmem:[#allocation12 + $0xc8] sm:$0xff]
    %v2376 = vld [vmem:[#allocation12 + $0xd0] sm:$0xff]
    %v2377 = vld [vmem:[#allocation12 + $0xd8] sm:$0xff]
    %v2378 = vld [vmem:[#allocation12 + $0xe0] sm:$0xff]
    %v2379 = vld [vmem:[#allocation12 + $0xe8] sm:$0xff]
    %v2380 = vld [vmem:[#allocation12 + $0xf0] sm:$0xff]
    %v2381 = vld [vmem:[#allocation12 + $0xf8] sm:$0xff]
    %v2382 = vrot.slane %v2260, 2
    %v2383 = vsel %vm336, %v2382, 0
    %2385 = vmatprep.subr.mxu0 %v2367
    %2386 = vmatpush1.msra.mxu0 %v2366
    %2387 = vmatprep.subr.mxu0 %v2369
    %2388 = vmatpush1.msra.mxu0 %v2368
    %2389 = vmatprep.subr.mxu0 %v2371
    %2390 = vmatpush1.msra.mxu0 %v2370
    %2391 = vmatprep.subr.mxu0 %v2373
    %2392 = vmatpush1.msra.mxu0 %v2372
    %2393 = vmatprep.subr.mxu0 %v2375
    %2394 = vmatpush1.msra.mxu0 %v2374
    %2395 = vmatprep.subr.mxu0 %v2377
    %2396 = vmatpush1.msra.mxu0 %v2376
    %2397 = vmatprep.subr.mxu0 %v2379
    %2398 = vmatpush1.msra.mxu0 %v2378
    %2399 = vmatprep.subr.mxu0 %v2381
    %2400 = vmatpush1.msra.mxu0 %v2380
    %2401 = vmatprep.subr.mxu0 0.0
    %2402 = vmatpush1.msra.mxu0 0.0
    %2403 = vmatprep.subr.mxu0 0.0
    %2404 = vmatpush1.msra.mxu0 0.0
    %2405 = vmatprep.subr.mxu0 0.0
    %2406 = vmatpush1.msra.mxu0 0.0
    %2407 = vmatprep.subr.mxu0 0.0
    %2408 = vmatpush1.msra.mxu0 0.0
    %2409 = vmatprep.subr.mxu0 0.0
    %2410 = vmatpush1.msra.mxu0 0.0
    %2411 = vmatprep.subr.mxu0 0.0
    %2412 = vmatpush1.msra.mxu0 0.0
    %2413 = vmatprep.subr.mxu0 0.0
    %2414 = vmatpush1.msra.mxu0 0.0
    %2415 = vmatprep.subr.mxu0 0.0
    %2416 = vmatpush1.msra.mxu0 0.0
    %2417 = vmatprep.subr.mxu0 0.0
    %2418 = vmatpush1.msra.mxu0 0.0
    %2419 = vmatprep.subr.mxu0 0.0
    %2420 = vmatpush1.msra.mxu0 0.0
    %2421 = vmatprep.subr.mxu0 0.0
    %2422 = vmatpush1.msra.mxu0 0.0
    %2423 = vmatprep.subr.mxu0 0.0
    %2424 = vmatpush1.msra.mxu0 0.0
    %2425 = vmatprep.subr.mxu0 0.0
    %2426 = vmatpush1.msra.mxu0 0.0
    %2427 = vmatprep.subr.mxu0 0.0
    %2428 = vmatpush1.msra.mxu0 0.0
    %2429 = vmatprep.subr.mxu0 0.0
    %2430 = vmatpush1.msra.mxu0 0.0
    %2431 = vmatprep.subr.mxu0 0.0
    %2432 = vmatpush1.msra.mxu0 0.0
    %2433 = vmatprep.subr.mxu0 0.0
    %2434 = vmatpush1.msra.mxu0 0.0
    %2435 = vmatprep.subr.mxu0 0.0
    %2436 = vmatpush1.msra.mxu0 0.0
    %2437 = vmatprep.subr.mxu0 0.0
    %2438 = vmatpush1.msra.mxu0 0.0
    %2439 = vmatprep.subr.mxu0 0.0
    %2440 = vmatpush1.msra.mxu0 0.0
    %2441 = vmatprep.subr.mxu0 0.0
    %2442 = vmatpush1.msra.mxu0 0.0
    %2443 = vmatprep.subr.mxu0 0.0
    %2444 = vmatpush1.msra.mxu0 0.0
    %2445 = vmatprep.subr.mxu0 0.0
    %2446 = vmatpush1.msra.mxu0 0.0
    %2447 = vmatprep.subr.mxu0 0.0
    %2448 = vmatpush1.msra.mxu0 0.0
    %2449 = vmatprep.mubr.f32.mxu0 0.0
    %2450 = vmatmul.mubr.f32.gmra.mrb[0].mxu0 %v2383
    %v2451 = vpop.f32.mrb[0].mxu0
    %v2452 = vadd.f32 0.0, %v2451
    %v2453 = vpop.f32.mrb[0].mxu0
    %v2454 = vadd.f32 0.0, %v2453
    %2455 = vdwg.mxu0
    %v2456 = vadd.f32 %v2364, %v2452
    %v2457 = vadd.f32 %v2365, %v2454
    %v2458 = vld [vmem:[#allocation12 + $0x100] sm:$0xff]
    %v2459 = vld [vmem:[#allocation12 + $0x108] sm:$0xff]
    %v2460 = vld [vmem:[#allocation12 + $0x110] sm:$0xff]
    %v2461 = vld [vmem:[#allocation12 + $0x118] sm:$0xff]
    %v2462 = vld [vmem:[#allocation12 + $0x120] sm:$0xff]
    %v2463 = vld [vmem:[#allocation12 + $0x128] sm:$0xff]
    %v2464 = vld [vmem:[#allocation12 + $0x130] sm:$0xff]
    %v2465 = vld [vmem:[#allocation12 + $0x138] sm:$0xff]
    %v2466 = vld [vmem:[#allocation12 + $0x140] sm:$0xff]
    %v2467 = vld [vmem:[#allocation12 + $0x148] sm:$0xff]
    %v2468 = vld [vmem:[#allocation12 + $0x150] sm:$0xff]
    %v2469 = vld [vmem:[#allocation12 + $0x158] sm:$0xff]
    %v2470 = vld [vmem:[#allocation12 + $0x160] sm:$0xff]
    %v2471 = vld [vmem:[#allocation12 + $0x168] sm:$0xff]
    %v2472 = vld [vmem:[#allocation12 + $0x170] sm:$0xff]
    %v2473 = vld [vmem:[#allocation12 + $0x178] sm:$0xff]
    %v2474 = vrot.slane %v2260, 4
    %v2475 = vsel %vm336, %v2474, 0
    %2477 = vmatprep.subr.mxu0 %v2459
    %2478 = vmatpush1.msra.mxu0 %v2458
    %2479 = vmatprep.subr.mxu0 %v2461
    %2480 = vmatpush1.msra.mxu0 %v2460
    %2481 = vmatprep.subr.mxu0 %v2463
    %2482 = vmatpush1.msra.mxu0 %v2462
    %2483 = vmatprep.subr.mxu0 %v2465
    %2484 = vmatpush1.msra.mxu0 %v2464
    %2485 = vmatprep.subr.mxu0 %v2467
    %2486 = vmatpush1.msra.mxu0 %v2466
    %2487 = vmatprep.subr.mxu0 %v2469
    %2488 = vmatpush1.msra.mxu0 %v2468
    %2489 = vmatprep.subr.mxu0 %v2471
    %2490 = vmatpush1.msra.mxu0 %v2470
    %2491 = vmatprep.subr.mxu0 %v2473
    %2492 = vmatpush1.msra.mxu0 %v2472
    %2493 = vmatprep.subr.mxu0 0.0
    %2494 = vmatpush1.msra.mxu0 0.0
    %2495 = vmatprep.subr.mxu0 0.0
    %2496 = vmatpush1.msra.mxu0 0.0
    %2497 = vmatprep.subr.mxu0 0.0
    %2498 = vmatpush1.msra.mxu0 0.0
    %2499 = vmatprep.subr.mxu0 0.0
    %2500 = vmatpush1.msra.mxu0 0.0
    %2501 = vmatprep.subr.mxu0 0.0
    %2502 = vmatpush1.msra.mxu0 0.0
    %2503 = vmatprep.subr.mxu0 0.0
    %2504 = vmatpush1.msra.mxu0 0.0
    %2505 = vmatprep.subr.mxu0 0.0
    %2506 = vmatpush1.msra.mxu0 0.0
    %2507 = vmatprep.subr.mxu0 0.0
    %2508 = vmatpush1.msra.mxu0 0.0
    %2509 = vmatprep.subr.mxu0 0.0
    %2510 = vmatpush1.msra.mxu0 0.0
    %2511 = vmatprep.subr.mxu0 0.0
    %2512 = vmatpush1.msra.mxu0 0.0
    %2513 = vmatprep.subr.mxu0 0.0
    %2514 = vmatpush1.msra.mxu0 0.0
    %2515 = vmatprep.subr.mxu0 0.0
    %2516 = vmatpush1.msra.mxu0 0.0
    %2517 = vmatprep.subr.mxu0 0.0
    %2518 = vmatpush1.msra.mxu0 0.0
    %2519 = vmatprep.subr.mxu0 0.0
    %2520 = vmatpush1.msra.mxu0 0.0
    %2521 = vmatprep.subr.mxu0 0.0
    %2522 = vmatpush1.msra.mxu0 0.0
    %2523 = vmatprep.subr.mxu0 0.0
    %2524 = vmatpush1.msra.mxu0 0.0
    %2525 = vmatprep.subr.mxu0 0.0
    %2526 = vmatpush1.msra.mxu0 0.0
    %2527 = vmatprep.subr.mxu0 0.0
    %2528 = vmatpush1.msra.mxu0 0.0
    %2529 = vmatprep.subr.mxu0 0.0
    %2530 = vmatpush1.msra.mxu0 0.0
    %2531 = vmatprep.subr.mxu0 0.0
    %2532 = vmatpush1.msra.mxu0 0.0
    %2533 = vmatprep.subr.mxu0 0.0
    %2534 = vmatpush1.msra.mxu0 0.0
    %2535 = vmatprep.subr.mxu0 0.0
    %2536 = vmatpush1.msra.mxu0 0.0
    %2537 = vmatprep.subr.mxu0 0.0
    %2538 = vmatpush1.msra.mxu0 0.0
    %2539 = vmatprep.subr.mxu0 0.0
    %2540 = vmatpush1.msra.mxu0 0.0
    %2541 = vmatprep.mubr.f32.mxu0 0.0
    %2542 = vmatmul.mubr.f32.gmra.mrb[0].mxu0 %v2475
    %v2543 = vpop.f32.mrb[0].mxu0
    %v2544 = vadd.f32 0.0, %v2543
    %v2545 = vpop.f32.mrb[0].mxu0
    %v2546 = vadd.f32 0.0, %v2545
    %2547 = vdwg.mxu0
    %v2548 = vadd.f32 %v2456, %v2544
    %v2549 = vadd.f32 %v2457, %v2546
    %v2550 = vld [vmem:[#allocation12 + $0x180] sm:$0xff]
    %v2551 = vld [vmem:[#allocation12 + $0x188] sm:$0xff]
    %v2552 = vld [vmem:[#allocation12 + $0x190] sm:$0xff]
    %v2553 = vld [vmem:[#allocation12 + $0x198] sm:$0xff]
    %v2554 = vld [vmem:[#allocation12 + $0x1a0] sm:$0xff]
    %v2555 = vld [vmem:[#allocation12 + $0x1a8] sm:$0xff]
    %v2556 = vld [vmem:[#allocation12 + $0x1b0] sm:$0xff]
    %v2557 = vld [vmem:[#allocation12 + $0x1b8] sm:$0xff]
    %v2558 = vld [vmem:[#allocation12 + $0x1c0] sm:$0xff]
    %v2559 = vld [vmem:[#allocation12 + $0x1c8] sm:$0xff]
    %v2560 = vld [vmem:[#allocation12 + $0x1d0] sm:$0xff]
    %v2561 = vld [vmem:[#allocation12 + $0x1d8] sm:$0xff]
    %v2562 = vld [vmem:[#allocation12 + $0x1e0] sm:$0xff]
    %v2563 = vld [vmem:[#allocation12 + $0x1e8] sm:$0xff]
    %v2564 = vld [vmem:[#allocation12 + $0x1f0] sm:$0xff]
    %v2565 = vld [vmem:[#allocation12 + $0x1f8] sm:$0xff]
    %v2566 = vrot.slane %v2260, 6
    %v2567 = vsel %vm336, %v2566, 0
    %2569 = vmatprep.subr.mxu0 %v2551
    %2570 = vmatpush1.msra.mxu0 %v2550
    %2571 = vmatprep.subr.mxu0 %v2553
    %2572 = vmatpush1.msra.mxu0 %v2552
    %2573 = vmatprep.subr.mxu0 %v2555
    %2574 = vmatpush1.msra.mxu0 %v2554
    %2575 = vmatprep.subr.mxu0 %v2557
    %2576 = vmatpush1.msra.mxu0 %v2556
    %2577 = vmatprep.subr.mxu0 %v2559
    %2578 = vmatpush1.msra.mxu0 %v2558
    %2579 = vmatprep.subr.mxu0 %v2561
    %2580 = vmatpush1.msra.mxu0 %v2560
    %2581 = vmatprep.subr.mxu0 %v2563
    %2582 = vmatpush1.msra.mxu0 %v2562
    %2583 = vmatprep.subr.mxu0 %v2565
    %2584 = vmatpush1.msra.mxu0 %v2564
    %2585 = vmatprep.subr.mxu0 0.0
    %2586 = vmatpush1.msra.mxu0 0.0
    %2587 = vmatprep.subr.mxu0 0.0
    %2588 = vmatpush1.msra.mxu0 0.0
    %2589 = vmatprep.subr.mxu0 0.0
    %2590 = vmatpush1.msra.mxu0 0.0
    %2591 = vmatprep.subr.mxu0 0.0
    %2592 = vmatpush1.msra.mxu0 0.0
    %2593 = vmatprep.subr.mxu0 0.0
    %2594 = vmatpush1.msra.mxu0 0.0
    %2595 = vmatprep.subr.mxu0 0.0
    %2596 = vmatpush1.msra.mxu0 0.0
    %2597 = vmatprep.subr.mxu0 0.0
    %2598 = vmatpush1.msra.mxu0 0.0
    %2599 = vmatprep.subr.mxu0 0.0
    %2600 = vmatpush1.msra.mxu0 0.0
    %2601 = vmatprep.subr.mxu0 0.0
    %2602 = vmatpush1.msra.mxu0 0.0
    %2603 = vmatprep.subr.mxu0 0.0
    %2604 = vmatpush1.msra.mxu0 0.0
    %2605 = vmatprep.subr.mxu0 0.0
    %2606 = vmatpush1.msra.mxu0 0.0
    %2607 = vmatprep.subr.mxu0 0.0
    %2608 = vmatpush1.msra.mxu0 0.0
    %2609 = vmatprep.subr.mxu0 0.0
    %2610 = vmatpush1.msra.mxu0 0.0
    %2611 = vmatprep.subr.mxu0 0.0
    %2612 = vmatpush1.msra.mxu0 0.0
    %2613 = vmatprep.subr.mxu0 0.0
    %2614 = vmatpush1.msra.mxu0 0.0
    %2615 = vmatprep.subr.mxu0 0.0
    %2616 = vmatpush1.msra.mxu0 0.0
    %2617 = vmatprep.subr.mxu0 0.0
    %2618 = vmatpush1.msra.mxu0 0.0
    %2619 = vmatprep.subr.mxu0 0.0
    %2620 = vmatpush1.msra.mxu0 0.0
    %2621 = vmatprep.subr.mxu0 0.0
    %2622 = vmatpush1.msra.mxu0 0.0
    %2623 = vmatprep.subr.mxu0 0.0
    %2624 = vmatpush1.msra.mxu0 0.0
    %2625 = vmatprep.subr.mxu0 0.0
    %2626 = vmatpush1.msra.mxu0 0.0
    %2627 = vmatprep.subr.mxu0 0.0
    %2628 = vmatpush1.msra.mxu0 0.0
    %2629 = vmatprep.subr.mxu0 0.0
    %2630 = vmatpush1.msra.mxu0 0.0
    %2631 = vmatprep.subr.mxu0 0.0
    %2632 = vmatpush1.msra.mxu0 0.0
    %2633 = vmatprep.mubr.f32.mxu0 0.0
    %2634 = vmatmul.mubr.f32.gmra.mrb[0].mxu0 %v2567
    %v2635 = vpop.f32.mrb[0].mxu0
    %v2636 = vadd.f32 0.0, %v2635
    %v2637 = vpop.f32.mrb[0].mxu0
    %v2638 = vadd.f32 0.0, %v2637
    %2639 = vdwg.mxu0
    %v2640 = vadd.f32 %v2548, %v2636
    %v2641 = vadd.f32 %v2549, %v2638
    %v2642 = vld [vmem:[#allocation12 + $0x200] sm:$0xff]
    %v2643 = vld [vmem:[#allocation12 + $0x208] sm:$0xff]
    %v2644 = vld [vmem:[#allocation12 + $0x210] sm:$0xff]
    %v2645 = vld [vmem:[#allocation12 + $0x218] sm:$0xff]
    %v2646 = vld [vmem:[#allocation12 + $0x220] sm:$0xff]
    %v2647 = vld [vmem:[#allocation12 + $0x228] sm:$0xff]
    %v2648 = vld [vmem:[#allocation12 + $0x230] sm:$0xff]
    %v2649 = vld [vmem:[#allocation12 + $0x238] sm:$0xff]
    %v2650 = vld [vmem:[#allocation12 + $0x240] sm:$0xff]
    %v2651 = vld [vmem:[#allocation12 + $0x248] sm:$0xff]
    %v2652 = vld [vmem:[#allocation12 + $0x250] sm:$0xff]
    %v2653 = vld [vmem:[#allocation12 + $0x258] sm:$0xff]
    %v2654 = vld [vmem:[#allocation12 + $0x260] sm:$0xff]
    %v2655 = vld [vmem:[#allocation12 + $0x268] sm:$0xff]
    %v2656 = vld [vmem:[#allocation12 + $0x270] sm:$0xff]
    %v2657 = vld [vmem:[#allocation12 + $0x278] sm:$0xff]
    %v2659 = vsel %vm336, %v2261, 0
    %2661 = vmatprep.subr.mxu0 %v2643
    %2662 = vmatpush1.msra.mxu0 %v2642
    %2663 = vmatprep.subr.mxu0 %v2645
    %2664 = vmatpush1.msra.mxu0 %v2644
    %2665 = vmatprep.subr.mxu0 %v2647
    %2666 = vmatpush1.msra.mxu0 %v2646
    %2667 = vmatprep.subr.mxu0 %v2649
    %2668 = vmatpush1.msra.mxu0 %v2648
    %2669 = vmatprep.subr.mxu0 %v2651
    %2670 = vmatpush1.msra.mxu0 %v2650
    %2671 = vmatprep.subr.mxu0 %v2653
    %2672 = vmatpush1.msra.mxu0 %v2652
    %2673 = vmatprep.subr.mxu0 %v2655
    %2674 = vmatpush1.msra.mxu0 %v2654
    %2675 = vmatprep.subr.mxu0 %v2657
    %2676 = vmatpush1.msra.mxu0 %v2656
    %2677 = vmatprep.subr.mxu0 0.0
    %2678 = vmatpush1.msra.mxu0 0.0
    %2679 = vmatprep.subr.mxu0 0.0
    %2680 = vmatpush1.msra.mxu0 0.0
    %2681 = vmatprep.subr.mxu0 0.0
    %2682 = vmatpush1.msra.mxu0 0.0
    %2683 = vmatprep.subr.mxu0 0.0
    %2684 = vmatpush1.msra.mxu0 0.0
    %2685 = vmatprep.subr.mxu0 0.0
    %2686 = vmatpush1.msra.mxu0 0.0
    %2687 = vmatprep.subr.mxu0 0.0
    %2688 = vmatpush1.msra.mxu0 0.0
    %2689 = vmatprep.subr.mxu0 0.0
    %2690 = vmatpush1.msra.mxu0 0.0
    %2691 = vmatprep.subr.mxu0 0.0
    %2692 = vmatpush1.msra.mxu0 0.0
    %2693 = vmatprep.subr.mxu0 0.0
    %2694 = vmatpush1.msra.mxu0 0.0
    %2695 = vmatprep.subr.mxu0 0.0
    %2696 = vmatpush1.msra.mxu0 0.0
    %2697 = vmatprep.subr.mxu0 0.0
    %2698 = vmatpush1.msra.mxu0 0.0
    %2699 = vmatprep.subr.mxu0 0.0
    %2700 = vmatpush1.msra.mxu0 0.0
    %2701 = vmatprep.subr.mxu0 0.0
    %2702 = vmatpush1.msra.mxu0 0.0
    %2703 = vmatprep.subr.mxu0 0.0
    %2704 = vmatpush1.msra.mxu0 0.0
    %2705 = vmatprep.subr.mxu0 0.0
    %2706 = vmatpush1.msra.mxu0 0.0
    %2707 = vmatprep.subr.mxu0 0.0
    %2708 = vmatpush1.msra.mxu0 0.0
    %2709 = vmatprep.subr.mxu0 0.0
    %2710 = vmatpush1.msra.mxu0 0.0
    %2711 = vmatprep.subr.mxu0 0.0
    %2712 = vmatpush1.msra.mxu0 0.0
    %2713 = vmatprep.subr.mxu0 0.0
    %2714 = vmatpush1.msra.mxu0 0.0
    %2715 = vmatprep.subr.mxu0 0.0
    %2716 = vmatpush1.msra.mxu0 0.0
    %2717 = vmatprep.subr.mxu0 0.0
    %2718 = vmatpush1.msra.mxu0 0.0
    %2719 = vmatprep.subr.mxu0 0.0
    %2720 = vmatpush1.msra.mxu0 0.0
    %2721 = vmatprep.subr.mxu0 0.0
    %2722 = vmatpush1.msra.mxu0 0.0
    %2723 = vmatprep.subr.mxu0 0.0
    %2724 = vmatpush1.msra.mxu0 0.0
    %2725 = vmatprep.mubr.f32.mxu0 0.0
    %2726 = vmatmul.mubr.f32.gmra.mrb[0].mxu0 %v2659
    %v2727 = vpop.f32.mrb[0].mxu0
    %v2728 = vadd.f32 0.0, %v2727
    %v2729 = vpop.f32.mrb[0].mxu0
    %v2730 = vadd.f32 0.0, %v2729
    %2731 = vdwg.mxu0
    %v2732 = vadd.f32 %v2640, %v2728
    %v2733 = vadd.f32 %v2641, %v2730
    %v2734 = vld [vmem:[#allocation12 + $0x280] sm:$0xff]
    %v2735 = vld [vmem:[#allocation12 + $0x288] sm:$0xff]
    %v2736 = vld [vmem:[#allocation12 + $0x290] sm:$0xff]
    %v2737 = vld [vmem:[#allocation12 + $0x298] sm:$0xff]
    %v2738 = vld [vmem:[#allocation12 + $0x2a0] sm:$0xff]
    %v2739 = vld [vmem:[#allocation12 + $0x2a8] sm:$0xff]
    %v2740 = vld [vmem:[#allocation12 + $0x2b0] sm:$0xff]
    %v2741 = vld [vmem:[#allocation12 + $0x2b8] sm:$0xff]
    %v2742 = vld [vmem:[#allocation12 + $0x2c0] sm:$0xff]
    %v2743 = vld [vmem:[#allocation12 + $0x2c8] sm:$0xff]
    %v2744 = vld [vmem:[#allocation12 + $0x2d0] sm:$0xff]
    %v2745 = vld [vmem:[#allocation12 + $0x2d8] sm:$0xff]
    %v2746 = vld [vmem:[#allocation12 + $0x2e0] sm:$0xff]
    %v2747 = vld [vmem:[#allocation12 + $0x2e8] sm:$0xff]
    %v2748 = vld [vmem:[#allocation12 + $0x2f0] sm:$0xff]
    %v2749 = vld [vmem:[#allocation12 + $0x2f8] sm:$0xff]
    %v2750 = vrot.slane %v2261, 2
    %v2751 = vsel %vm336, %v2750, 0
    %2753 = vmatprep.subr.mxu0 %v2735
    %2754 = vmatpush1.msra.mxu0 %v2734
    %2755 = vmatprep.subr.mxu0 %v2737
    %2756 = vmatpush1.msra.mxu0 %v2736
    %2757 = vmatprep.subr.mxu0 %v2739
    %2758 = vmatpush1.msra.mxu0 %v2738
    %2759 = vmatprep.subr.mxu0 %v2741
    %2760 = vmatpush1.msra.mxu0 %v2740
    %2761 = vmatprep.subr.mxu0 %v2743
    %2762 = vmatpush1.msra.mxu0 %v2742
    %2763 = vmatprep.subr.mxu0 %v2745
    %2764 = vmatpush1.msra.mxu0 %v2744
    %2765 = vmatprep.subr.mxu0 %v2747
    %2766 = vmatpush1.msra.mxu0 %v2746
    %2767 = vmatprep.subr.mxu0 %v2749
    %2768 = vmatpush1.msra.mxu0 %v2748
    %2769 = vmatprep.subr.mxu0 0.0
    %2770 = vmatpush1.msra.mxu0 0.0
    %2771 = vmatprep.subr.mxu0 0.0
    %2772 = vmatpush1.msra.mxu0 0.0
    %2773 = vmatprep.subr.mxu0 0.0
    %2774 = vmatpush1.msra.mxu0 0.0
    %2775 = vmatprep.subr.mxu0 0.0
    %2776 = vmatpush1.msra.mxu0 0.0
    %2777 = vmatprep.subr.mxu0 0.0
    %2778 = vmatpush1.msra.mxu0 0.0
    %2779 = vmatprep.subr.mxu0 0.0
    %2780 = vmatpush1.msra.mxu0 0.0
    %2781 = vmatprep.subr.mxu0 0.0
    %2782 = vmatpush1.msra.mxu0 0.0
    %2783 = vmatprep.subr.mxu0 0.0
    %2784 = vmatpush1.msra.mxu0 0.0
    %2785 = vmatprep.subr.mxu0 0.0
    %2786 = vmatpush1.msra.mxu0 0.0
    %2787 = vmatprep.subr.mxu0 0.0
    %2788 = vmatpush1.msra.mxu0 0.0
    %2789 = vmatprep.subr.mxu0 0.0
    %2790 = vmatpush1.msra.mxu0 0.0
    %2791 = vmatprep.subr.mxu0 0.0
    %2792 = vmatpush1.msra.mxu0 0.0
    %2793 = vmatprep.subr.mxu0 0.0
    %2794 = vmatpush1.msra.mxu0 0.0
    %2795 = vmatprep.subr.mxu0 0.0
    %2796 = vmatpush1.msra.mxu0 0.0
    %2797 = vmatprep.subr.mxu0 0.0
    %2798 = vmatpush1.msra.mxu0 0.0
    %2799 = vmatprep.subr.mxu0 0.0
    %2800 = vmatpush1.msra.mxu0 0.0
    %2801 = vmatprep.subr.mxu0 0.0
    %2802 = vmatpush1.msra.mxu0 0.0
    %2803 = vmatprep.subr.mxu0 0.0
    %2804 = vmatpush1.msra.mxu0 0.0
    %2805 = vmatprep.subr.mxu0 0.0
    %2806 = vmatpush1.msra.mxu0 0.0
    %2807 = vmatprep.subr.mxu0 0.0
    %2808 = vmatpush1.msra.mxu0 0.0
    %2809 = vmatprep.subr.mxu0 0.0
    %2810 = vmatpush1.msra.mxu0 0.0
    %2811 = vmatprep.subr.mxu0 0.0
    %2812 = vmatpush1.msra.mxu0 0.0
    %2813 = vmatprep.subr.mxu0 0.0
    %2814 = vmatpush1.msra.mxu0 0.0
    %2815 = vmatprep.subr.mxu0 0.0
    %2816 = vmatpush1.msra.mxu0 0.0
    %2817 = vmatprep.mubr.f32.mxu0 0.0
    %2818 = vmatmul.mubr.f32.gmra.mrb[0].mxu0 %v2751
    %v2819 = vpop.f32.mrb[0].mxu0
    %v2820 = vadd.f32 0.0, %v2819
    %v2821 = vpop.f32.mrb[0].mxu0
    %v2822 = vadd.f32 0.0, %v2821
    %2823 = vdwg.mxu0
    %v2824 = vadd.f32 %v2732, %v2820
    %v2825 = vadd.f32 %v2733, %v2822
    %v2826 = vld [vmem:[#allocation12 + $0x300] sm:$0xff]
    %v2827 = vld [vmem:[#allocation12 + $0x308] sm:$0xff]
    %v2828 = vld [vmem:[#allocation12 + $0x310] sm:$0xff]
    %v2829 = vld [vmem:[#allocation12 + $0x318] sm:$0xff]
    %v2830 = vld [vmem:[#allocation12 + $0x320] sm:$0xff]
    %v2831 = vld [vmem:[#allocation12 + $0x328] sm:$0xff]
    %v2832 = vld [vmem:[#allocation12 + $0x330] sm:$0xff]
    %v2833 = vld [vmem:[#allocation12 + $0x338] sm:$0xff]
    %v2834 = vld [vmem:[#allocation12 + $0x340] sm:$0xff]
    %v2835 = vld [vmem:[#allocation12 + $0x348] sm:$0xff]
    %v2836 = vld [vmem:[#allocation12 + $0x350] sm:$0xff]
    %v2837 = vld [vmem:[#allocation12 + $0x358] sm:$0xff]
    %v2838 = vld [vmem:[#allocation12 + $0x360] sm:$0xff]
    %v2839 = vld [vmem:[#allocation12 + $0x368] sm:$0xff]
    %v2840 = vld [vmem:[#allocation12 + $0x370] sm:$0xff]
    %v2841 = vld [vmem:[#allocation12 + $0x378] sm:$0xff]
    %v2842 = vrot.slane %v2261, 4
    %v2843 = vsel %vm336, %v2842, 0
    %2845 = vmatprep.subr.mxu0 %v2827
    %2846 = vmatpush1.msra.mxu0 %v2826
    %2847 = vmatprep.subr.mxu0 %v2829
    %2848 = vmatpush1.msra.mxu0 %v2828
    %2849 = vmatprep.subr.mxu0 %v2831
    %2850 = vmatpush1.msra.mxu0 %v2830
    %2851 = vmatprep.subr.mxu0 %v2833
    %2852 = vmatpush1.msra.mxu0 %v2832
    %2853 = vmatprep.subr.mxu0 %v2835
    %2854 = vmatpush1.msra.mxu0 %v2834
    %2855 = vmatprep.subr.mxu0 %v2837
    %2856 = vmatpush1.msra.mxu0 %v2836
    %2857 = vmatprep.subr.mxu0 %v2839
    %2858 = vmatpush1.msra.mxu0 %v2838
    %2859 = vmatprep.subr.mxu0 %v2841
    %2860 = vmatpush1.msra.mxu0 %v2840
    %2861 = vmatprep.subr.mxu0 0.0
    %2862 = vmatpush1.msra.mxu0 0.0
    %2863 = vmatprep.subr.mxu0 0.0
    %2864 = vmatpush1.msra.mxu0 0.0
    %2865 = vmatprep.subr.mxu0 0.0
    %2866 = vmatpush1.msra.mxu0 0.0
    %2867 = vmatprep.subr.mxu0 0.0
    %2868 = vmatpush1.msra.mxu0 0.0
    %2869 = vmatprep.subr.mxu0 0.0
    %2870 = vmatpush1.msra.mxu0 0.0
    %2871 = vmatprep.subr.mxu0 0.0
    %2872 = vmatpush1.msra.mxu0 0.0
    %2873 = vmatprep.subr.mxu0 0.0
    %2874 = vmatpush1.msra.mxu0 0.0
    %2875 = vmatprep.subr.mxu0 0.0
    %2876 = vmatpush1.msra.mxu0 0.0
    %2877 = vmatprep.subr.mxu0 0.0
    %2878 = vmatpush1.msra.mxu0 0.0
    %2879 = vmatprep.subr.mxu0 0.0
    %2880 = vmatpush1.msra.mxu0 0.0
    %2881 = vmatprep.subr.mxu0 0.0
    %2882 = vmatpush1.msra.mxu0 0.0
    %2883 = vmatprep.subr.mxu0 0.0
    %2884 = vmatpush1.msra.mxu0 0.0
    %2885 = vmatprep.subr.mxu0 0.0
    %2886 = vmatpush1.msra.mxu0 0.0
    %2887 = vmatprep.subr.mxu0 0.0
    %2888 = vmatpush1.msra.mxu0 0.0
    %2889 = vmatprep.subr.mxu0 0.0
    %2890 = vmatpush1.msra.mxu0 0.0
    %2891 = vmatprep.subr.mxu0 0.0
    %2892 = vmatpush1.msra.mxu0 0.0
    %2893 = vmatprep.subr.mxu0 0.0
    %2894 = vmatpush1.msra.mxu0 0.0
    %2895 = vmatprep.subr.mxu0 0.0
    %2896 = vmatpush1.msra.mxu0 0.0
    %2897 = vmatprep.subr.mxu0 0.0
    %2898 = vmatpush1.msra.mxu0 0.0
    %2899 = vmatprep.subr.mxu0 0.0
    %2900 = vmatpush1.msra.mxu0 0.0
    %2901 = vmatprep.subr.mxu0 0.0
    %2902 = vmatpush1.msra.mxu0 0.0
    %2903 = vmatprep.subr.mxu0 0.0
    %2904 = vmatpush1.msra.mxu0 0.0
    %2905 = vmatprep.subr.mxu0 0.0
    %2906 = vmatpush1.msra.mxu0 0.0
    %2907 = vmatprep.subr.mxu0 0.0
    %2908 = vmatpush1.msra.mxu0 0.0
    %2909 = vmatprep.mubr.f32.mxu0 0.0
    %2910 = vmatmul.mubr.f32.gmra.mrb[0].mxu0 %v2843
    %v2911 = vpop.f32.mrb[0].mxu0
    %v2912 = vadd.f32 0.0, %v2911
    %v2913 = vpop.f32.mrb[0].mxu0
    %v2914 = vadd.f32 0.0, %v2913
    %2915 = vdwg.mxu0
    %v2916 = vadd.f32 %v2824, %v2912
    %v2917 = vadd.f32 %v2825, %v2914
    %v2918 = vld [vmem:[#allocation12 + $0x380] sm:$0xff]
    %v2919 = vld [vmem:[#allocation12 + $0x388] sm:$0xff]
    %v2920 = vld [vmem:[#allocation12 + $0x390] sm:$0xff]
    %v2921 = vld [vmem:[#allocation12 + $0x398] sm:$0xff]
    %v2922 = vld [vmem:[#allocation12 + $0x3a0] sm:$0xff]
    %v2923 = vld [vmem:[#allocation12 + $0x3a8] sm:$0xff]
    %v2924 = vld [vmem:[#allocation12 + $0x3b0] sm:$0xff]
    %v2925 = vld [vmem:[#allocation12 + $0x3b8] sm:$0xff]
    %v2926 = vld [vmem:[#allocation12 + $0x3c0] sm:$0xff]
    %v2927 = vld [vmem:[#allocation12 + $0x3c8] sm:$0xff]
    %v2928 = vld [vmem:[#allocation12 + $0x3d0] sm:$0xff]
    %v2929 = vld [vmem:[#allocation12 + $0x3d8] sm:$0xff]
    %v2930 = vld [vmem:[#allocation12 + $0x3e0] sm:$0xff]
    %v2931 = vld [vmem:[#allocation12 + $0x3e8] sm:$0xff]
    %v2932 = vld [vmem:[#allocation12 + $0x3f0] sm:$0xff]
    %v2933 = vld [vmem:[#allocation12 + $0x3f8] sm:$0xff]
    %v2934 = vrot.slane %v2261, 6
    %v2935 = vsel %vm336, %v2934, 0
    %2937 = vmatprep.subr.mxu0 %v2919
    %2938 = vmatpush1.msra.mxu0 %v2918
    %2939 = vmatprep.subr.mxu0 %v2921
    %2940 = vmatpush1.msra.mxu0 %v2920
    %2941 = vmatprep.subr.mxu0 %v2923
    %2942 = vmatpush1.msra.mxu0 %v2922
    %2943 = vmatprep.subr.mxu0 %v2925
    %2944 = vmatpush1.msra.mxu0 %v2924
    %2945 = vmatprep.subr.mxu0 %v2927
    %2946 = vmatpush1.msra.mxu0 %v2926
    %2947 = vmatprep.subr.mxu0 %v2929
    %2948 = vmatpush1.msra.mxu0 %v2928
    %2949 = vmatprep.subr.mxu0 %v2931
    %2950 = vmatpush1.msra.mxu0 %v2930
    %2951 = vmatprep.subr.mxu0 %v2933
    %2952 = vmatpush1.msra.mxu0 %v2932
    %2953 = vmatprep.subr.mxu0 0.0
    %2954 = vmatpush1.msra.mxu0 0.0
    %2955 = vmatprep.subr.mxu0 0.0
    %2956 = vmatpush1.msra.mxu0 0.0
    %2957 = vmatprep.subr.mxu0 0.0
    %2958 = vmatpush1.msra.mxu0 0.0
    %2959 = vmatprep.subr.mxu0 0.0
    %2960 = vmatpush1.msra.mxu0 0.0
    %2961 = vmatprep.subr.mxu0 0.0
    %2962 = vmatpush1.msra.mxu0 0.0
    %2963 = vmatprep.subr.mxu0 0.0
    %2964 = vmatpush1.msra.mxu0 0.0
    %2965 = vmatprep.subr.mxu0 0.0
    %2966 = vmatpush1.msra.mxu0 0.0
    %2967 = vmatprep.subr.mxu0 0.0
    %2968 = vmatpush1.msra.mxu0 0.0
    %2969 = vmatprep.subr.mxu0 0.0
    %2970 = vmatpush1.msra.mxu0 0.0
    %2971 = vmatprep.subr.mxu0 0.0
    %2972 = vmatpush1.msra.mxu0 0.0
    %2973 = vmatprep.subr.mxu0 0.0
    %2974 = vmatpush1.msra.mxu0 0.0
    %2975 = vmatprep.subr.mxu0 0.0
    %2976 = vmatpush1.msra.mxu0 0.0
    %2977 = vmatprep.subr.mxu0 0.0
    %2978 = vmatpush1.msra.mxu0 0.0
    %2979 = vmatprep.subr.mxu0 0.0
    %2980 = vmatpush1.msra.mxu0 0.0
    %2981 = vmatprep.subr.mxu0 0.0
    %2982 = vmatpush1.msra.mxu0 0.0
    %2983 = vmatprep.subr.mxu0 0.0
    %2984 = vmatpush1.msra.mxu0 0.0
    %2985 = vmatprep.subr.mxu0 0.0
    %2986 = vmatpush1.msra.mxu0 0.0
    %2987 = vmatprep.subr.mxu0 0.0
    %2988 = vmatpush1.msra.mxu0 0.0
    %2989 = vmatprep.subr.mxu0 0.0
    %2990 = vmatpush1.msra.mxu0 0.0
    %2991 = vmatprep.subr.mxu0 0.0
    %2992 = vmatpush1.msra.mxu0 0.0
    %2993 = vmatprep.subr.mxu0 0.0
    %2994 = vmatpush1.msra.mxu0 0.0
    %2995 = vmatprep.subr.mxu0 0.0
    %2996 = vmatpush1.msra.mxu0 0.0
    %2997 = vmatprep.subr.mxu0 0.0
    %2998 = vmatpush1.msra.mxu0 0.0
    %2999 = vmatprep.subr.mxu0 0.0
    %3000 = vmatpush1.msra.mxu0 0.0
    %3001 = vmatprep.mubr.f32.mxu0 0.0
    %3002 = vmatmul.mubr.f32.gmra.mrb[0].mxu0 %v2935
    %v3003 = vpop.f32.mrb[0].mxu0
    %v3004 = vadd.f32 0.0, %v3003
    %v3005 = vpop.f32.mrb[0].mxu0
    %v3006 = vadd.f32 0.0, %v3005
    %3007 = vdwg.mxu0
    %v3008 = vadd.f32 %v2916, %v3004
    %v3009 = vadd.f32 %v2917, %v3006
    %v3010 = vmax.f32 %v3008, 0.0
    %v3011 = vmax.f32 %v3009, 0.0
    %v3012 = vld [vmem:[%s12] sm:$0xff]
    %v3013 = vld [vmem:[%s12 + $0x8] sm:$0xff]
    %v3014 = vld [vmem:[%s12 + $0x10] sm:$0xff]
    %v3015 = vld [vmem:[%s12 + $0x18] sm:$0xff]
    %v3016 = vld [vmem:[%s12 + $0x20] sm:$0xff]
    %v3017 = vld [vmem:[%s12 + $0x28] sm:$0xff]
    %v3018 = vld [vmem:[%s12 + $0x30] sm:$0xff]
    %v3019 = vld [vmem:[%s12 + $0x38] sm:$0xff]
    %v3020 = vld [vmem:[%s12 + $0x40] sm:$0xff]
    %v3021 = vld [vmem:[%s12 + $0x48] sm:$0xff]
    %v3022 = vld [vmem:[%s12 + $0x50] sm:$0xff]
    %v3023 = vld [vmem:[%s12 + $0x58] sm:$0xff]
    %v3024 = vld [vmem:[%s12 + $0x60] sm:$0xff]
    %v3025 = vld [vmem:[%s12 + $0x68] sm:$0xff]
    %v3026 = vld [vmem:[%s12 + $0x70] sm:$0xff]
    %v3027 = vld [vmem:[%s12 + $0x78] sm:$0xff]
    %v3028 = vld [vmem:[%s12 + $0x80] sm:$0xff]
    %v3029 = vld [vmem:[%s12 + $0x88] sm:$0xff]
    %v3030 = vld [vmem:[%s12 + $0x90] sm:$0xff]
    %v3031 = vld [vmem:[%s12 + $0x98] sm:$0xff]
    %v3032 = vld [vmem:[%s12 + $0xa0] sm:$0xff]
    %v3033 = vld [vmem:[%s12 + $0xa8] sm:$0xff]
    %v3034 = vld [vmem:[%s12 + $0xb0] sm:$0xff]
    %v3035 = vld [vmem:[%s12 + $0xb8] sm:$0xff]
    %v3036 = vld [vmem:[%s12 + $0xc0] sm:$0xff]
    %v3037 = vld [vmem:[%s12 + $0xc8] sm:$0xff]
    %v3038 = vld [vmem:[%s12 + $0xd0] sm:$0xff]
    %v3039 = vld [vmem:[%s12 + $0xd8] sm:$0xff]
    %v3040 = vld [vmem:[%s12 + $0xe0] sm:$0xff]
    %v3041 = vld [vmem:[%s12 + $0xe8] sm:$0xff]
    %v3042 = vld [vmem:[%s12 + $0xf0] sm:$0xff]
    %v3043 = vld [vmem:[%s12 + $0xf8] sm:$0xff]
    %v3044 = vld [vmem:[%s13] sm:$0x1]
    %v3046 = vlaneseq
    %v3047 = vshrl.u32 %v3046, 7
    %v3048 = vsub.s32 0, %v3047
    %v3049 = vrot.slane %v3044, %v3048
    %3051 = vmatprep.subr.mxu0 0.0
    %3052 = vmatpush1.msra.mxu0 %v3012
    %3053 = vmatprep.subr.mxu0 0.0
    %3054 = vmatpush1.msra.mxu0 %v3013
    %3055 = vmatprep.subr.mxu0 0.0
    %3056 = vmatpush1.msra.mxu0 %v3014
    %3057 = vmatprep.subr.mxu0 0.0
    %3058 = vmatpush1.msra.mxu0 %v3015
    %3059 = vmatprep.subr.mxu0 0.0
    %3060 = vmatpush1.msra.mxu0 %v3016
    %3061 = vmatprep.subr.mxu0 0.0
    %3062 = vmatpush1.msra.mxu0 %v3017
    %3063 = vmatprep.subr.mxu0 0.0
    %3064 = vmatpush1.msra.mxu0 %v3018
    %3065 = vmatprep.subr.mxu0 0.0
    %3066 = vmatpush1.msra.mxu0 %v3019
    %3067 = vmatprep.subr.mxu0 0.0
    %3068 = vmatpush1.msra.mxu0 %v3020
    %3069 = vmatprep.subr.mxu0 0.0
    %3070 = vmatpush1.msra.mxu0 %v3021
    %3071 = vmatprep.subr.mxu0 0.0
    %3072 = vmatpush1.msra.mxu0 %v3022
    %3073 = vmatprep.subr.mxu0 0.0
    %3074 = vmatpush1.msra.mxu0 %v3023
    %3075 = vmatprep.subr.mxu0 0.0
    %3076 = vmatpush1.msra.mxu0 %v3024
    %3077 = vmatprep.subr.mxu0 0.0
    %3078 = vmatpush1.msra.mxu0 %v3025
    %3079 = vmatprep.subr.mxu0 0.0
    %3080 = vmatpush1.msra.mxu0 %v3026
    %3081 = vmatprep.subr.mxu0 0.0
    %3082 = vmatpush1.msra.mxu0 %v3027
    %3083 = vmatprep.subr.mxu0 0.0
    %3084 = vmatpush1.msra.mxu0 %v3028
    %3085 = vmatprep.subr.mxu0 0.0
    %3086 = vmatpush1.msra.mxu0 %v3029
    %3087 = vmatprep.subr.mxu0 0.0
    %3088 = vmatpush1.msra.mxu0 %v3030
    %3089 = vmatprep.subr.mxu0 0.0
    %3090 = vmatpush1.msra.mxu0 %v3031
    %3091 = vmatprep.subr.mxu0 0.0
    %3092 = vmatpush1.msra.mxu0 %v3032
    %3093 = vmatprep.subr.mxu0 0.0
    %3094 = vmatpush1.msra.mxu0 %v3033
    %3095 = vmatprep.subr.mxu0 0.0
    %3096 = vmatpush1.msra.mxu0 %v3034
    %3097 = vmatprep.subr.mxu0 0.0
    %3098 = vmatpush1.msra.mxu0 %v3035
    %3099 = vmatprep.subr.mxu0 0.0
    %3100 = vmatpush1.msra.mxu0 %v3036
    %3101 = vmatprep.subr.mxu0 0.0
    %3102 = vmatpush1.msra.mxu0 %v3037
    %3103 = vmatprep.subr.mxu0 0.0
    %3104 = vmatpush1.msra.mxu0 %v3038
    %3105 = vmatprep.subr.mxu0 0.0
    %3106 = vmatpush1.msra.mxu0 %v3039
    %3107 = vmatprep.subr.mxu0 0.0
    %3108 = vmatpush1.msra.mxu0 %v3040
    %3109 = vmatprep.subr.mxu0 0.0
    %3110 = vmatpush1.msra.mxu0 %v3041
    %3111 = vmatprep.subr.mxu0 0.0
    %3112 = vmatpush1.msra.mxu0 %v3042
    %3113 = vmatprep.subr.mxu0 0.0
    %3114 = vmatpush1.msra.mxu0 %v3043
    %3115 = vmatprep.mubr.f32.mxu0 %v3011
    %3116 = vmatmul.mubr.f32.gmra.mrb[0].mxu0 %v3010
    %v3117 = vpop.f32.mrb[0].mxu0
    %v3118 = vadd.f32 %v3049, %v3117
    %v3119 = vpop.f32.mrb[0].mxu0
    %3120 = vdwg.mxu0
    %v3121 = vmax.f32 %v3118, 0.0
    %v3122 = vld [vmem:[%s14] sm:$0xff]
    %v3123 = vld [vmem:[%s14 + $0x8] sm:$0xff]
    %v3124 = vld [vmem:[%s14 + $0x10] sm:$0xff]
    %v3125 = vld [vmem:[%s14 + $0x18] sm:$0xff]
    %v3126 = vld [vmem:[%s14 + $0x20] sm:$0xff]
    %v3127 = vld [vmem:[%s14 + $0x28] sm:$0xff]
    %v3128 = vld [vmem:[%s14 + $0x30] sm:$0xff]
    %v3129 = vld [vmem:[%s14 + $0x38] sm:$0xff]
    %v3130 = vld [vmem:[%s14 + $0x40] sm:$0xff]
    %v3131 = vld [vmem:[%s14 + $0x48] sm:$0xff]
    %v3132 = vld [vmem:[%s14 + $0x50] sm:$0xff]
    %v3133 = vld [vmem:[%s14 + $0x58] sm:$0xff]
    %v3134 = vld [vmem:[%s14 + $0x60] sm:$0xff]
    %v3135 = vld [vmem:[%s14 + $0x68] sm:$0xff]
    %v3136 = vld [vmem:[%s14 + $0x70] sm:$0xff]
    %v3137 = vld [vmem:[%s14 + $0x78] sm:$0xff]
    %v3138 = vld [vmem:[%s15] sm:$0x1]
    %v3140 = vlaneseq
    %v3141 = vshrl.u32 %v3140, 7
    %v3142 = vsub.s32 0, %v3141
    %v3143 = vrot.slane %v3138, %v3142
    %3145 = vmatprep.subr.mxu0 0.0
    %3146 = vmatpush1.msra.mxu0 %v3122
    %3147 = vmatprep.subr.mxu0 0.0
    %3148 = vmatpush1.msra.mxu0 %v3123
    %3149 = vmatprep.subr.mxu0 0.0
    %3150 = vmatpush1.msra.mxu0 %v3124
    %3151 = vmatprep.subr.mxu0 0.0
    %3152 = vmatpush1.msra.mxu0 %v3125
    %3153 = vmatprep.subr.mxu0 0.0
    %3154 = vmatpush1.msra.mxu0 %v3126
    %3155 = vmatprep.subr.mxu0 0.0
    %3156 = vmatpush1.msra.mxu0 %v3127
    %3157 = vmatprep.subr.mxu0 0.0
    %3158 = vmatpush1.msra.mxu0 %v3128
    %3159 = vmatprep.subr.mxu0 0.0
    %3160 = vmatpush1.msra.mxu0 %v3129
    %3161 = vmatprep.subr.mxu0 0.0
    %3162 = vmatpush1.msra.mxu0 %v3130
    %3163 = vmatprep.subr.mxu0 0.0
    %3164 = vmatpush1.msra.mxu0 %v3131
    %3165 = vmatprep.subr.mxu0 0.0
    %3166 = vmatpush1.msra.mxu0 %v3132
    %3167 = vmatprep.subr.mxu0 0.0
    %3168 = vmatpush1.msra.mxu0 %v3133
    %3169 = vmatprep.subr.mxu0 0.0
    %3170 = vmatpush1.msra.mxu0 %v3134
    %3171 = vmatprep.subr.mxu0 0.0
    %3172 = vmatpush1.msra.mxu0 %v3135
    %3173 = vmatprep.subr.mxu0 0.0
    %3174 = vmatpush1.msra.mxu0 %v3136
    %3175 = vmatprep.subr.mxu0 0.0
    %3176 = vmatpush1.msra.mxu0 %v3137
    %3177 = vmatprep.subr.mxu0 0.0
    %3178 = vmatpush1.msra.mxu0 0.0
    %3179 = vmatprep.subr.mxu0 0.0
    %3180 = vmatpush1.msra.mxu0 0.0
    %3181 = vmatprep.subr.mxu0 0.0
    %3182 = vmatpush1.msra.mxu0 0.0
    %3183 = vmatprep.subr.mxu0 0.0
    %3184 = vmatpush1.msra.mxu0 0.0
    %3185 = vmatprep.subr.mxu0 0.0
    %3186 = vmatpush1.msra.mxu0 0.0
    %3187 = vmatprep.subr.mxu0 0.0
    %3188 = vmatpush1.msra.mxu0 0.0
    %3189 = vmatprep.subr.mxu0 0.0
    %3190 = vmatpush1.msra.mxu0 0.0
    %3191 = vmatprep.subr.mxu0 0.0
    %3192 = vmatpush1.msra.mxu0 0.0
    %3193 = vmatprep.subr.mxu0 0.0
    %3194 = vmatpush1.msra.mxu0 0.0
    %3195 = vmatprep.subr.mxu0 0.0
    %3196 = vmatpush1.msra.mxu0 0.0
    %3197 = vmatprep.subr.mxu0 0.0
    %3198 = vmatpush1.msra.mxu0 0.0
    %3199 = vmatprep.subr.mxu0 0.0
    %3200 = vmatpush1.msra.mxu0 0.0
    %3201 = vmatprep.subr.mxu0 0.0
    %3202 = vmatpush1.msra.mxu0 0.0
    %3203 = vmatprep.subr.mxu0 0.0
    %3204 = vmatpush1.msra.mxu0 0.0
    %3205 = vmatprep.subr.mxu0 0.0
    %3206 = vmatpush1.msra.mxu0 0.0
    %3207 = vmatprep.subr.mxu0 0.0
    %3208 = vmatpush1.msra.mxu0 0.0
    %3209 = vmatprep.mubr.f32.mxu0 0.0
    %3210 = vmatmul.mubr.f32.gmra.mrb[0].mxu0 %v3121
    %v3211 = vpop.f32.mrb[0].mxu0
    %v3212 = vadd.f32 %v3143, %v3211
    %v3213 = vpop.f32.mrb[0].mxu0
    %3214 = vdwg.mxu0
    %v3215 = vmax.f32 %v3212, 0.0
    %v3216 = vld [vmem:[%s16] sm:$0x1]
    %v3218 = vlaneseq
    %v3219 = vshrl.u32 %v3218, 7
    %v3220 = vsub.s32 0, %v3219
    %v3221 = vrot.slane %v3216, %v3220
    %v3223 = vmul.f32 %v3215, %v3221
    %vm3224 = vcmask 517120
    %v3225 = vsel %vm3224, %v3223, 0.0
    %3226 = vadd.xlane.f32.xlu0 %v3225
    %v3227 = vpop.xlane.xlu0 %3226
    %v3228 = vld [vmem:[#allocation4] sm:$0x1]
    %v3230 = vlaneseq
    %v3231 = vshrl.u32 %v3230, 7
    %v3232 = vsub.s32 0, %v3231
    %v3233 = vrot.slane %v3228, %v3232
    %v3235 = vadd.f32 %v3227, %v3233
    %vm3236 = vcmask 1024
    %3237 = vst.msk [vmem:[%s18] sm:$0x3] %vm3236, %v3235
    // Predicated region
    $region94: #{bilstm_forward.1} parent=1 // pred_check
      _
    $region95: #{bilstm_forward.1} parent=1 // pred_check_branch
      %3239 = sbr.rel (0) target = $region97
    $region96: #{bilstm_forward.1} parent=1 // pred_region
      _
    $region97: #{bilstm_forward.1} parent=1 // pred_fallthru
      _
    // Predicated region
    $region98: #{bilstm_forward.1} parent=1 // pred_check
      _
    $region99: #{bilstm_forward.1} parent=1 // pred_check_branch
      %3241 = sbr.rel (0) target = $region101
    $region100: #{bilstm_forward.1} parent=1 // pred_region
      _
    $region101: #{bilstm_forward.1} parent=1 // pred_fallthru
      _
    %3242 = vsyncpa [#allocation6], 1
    %3243 = vsyncpa [#allocation8], 1
    %3244 = vsyncpa [#allocation11], 1

</llo_original>
